<compile_context>
chip_gen: v6e
topology: v6e:2x2x1
jax: 0.10.0
libtpu: 0.0.40
codegen_flags: <defaults>
</compile_context>

<pallas_src>
import jax
import jax.numpy as jnp
from jax.experimental import pallas as pl
from jax.experimental.pallas import tpu as pltpu


_LANES = 128          # vreg lane width: last block dim multiple of this
_BF16_SUBLANES = 16   # bf16 vregs pack [16, 128]: batch-tile alignment target


def _round_up(x, m):
    return ((x + m - 1) // m) * m


def _device_kind():
    try:
        return jax.devices()[0].device_kind.lower()
    except Exception:
        return ""


def _internal_lane_target():
    # v6e / v7x MXUs are 2x256^2: pad >=128-wide internal dims up to 256.
    # v5e MXUs are 4x128^2: padding to 256 would double real work, keep 128.
    kind = _device_kind()
    if "v6" in kind or "v7" in kind:
        return 256
    return _LANES


def _num_tensorcores():
    # v7x has 2 TensorCores per chip; v5e/v6e have 1.
    return 2 if "v7" in _device_kind() else 1


def _vmem_capacity_bytes():
    try:
        cap = getattr(pltpu.get_tpu_info(), "vmem_capacity_bytes", None)
        if cap:
            return int(cap)
    except Exception:
        pass
    return (64 << 20) if "v7" in _device_kind() else (128 << 20)


def _pad_internal(dim, lane_target):
    if lane_target > _LANES and dim >= _LANES:
        return _round_up(dim, lane_target)
    return _round_up(dim, _LANES)


def _pad2d(w, rows, cols):
    r, c = w.shape
    if r == rows and c == cols:
        return w
    return jnp.pad(w, ((0, rows - r), (0, cols - c)))


# --------------------------------------------------------------------------
# Kernel
# --------------------------------------------------------------------------
def _fcae_kernel(
    x_ref,
    # encoder weights
    we1_ref, be1_ref, we2_ref, be2_ref, we3_ref, be3_ref,
    # mu head
    wmu_ref, bmu_ref,
    # decoder weights
    wd1_ref, bd1_ref, wd2_ref, bd2_ref, wd3_ref, bd3_ref, wd4_ref, bd4_ref,
    out_ref,
):
    compute_dtype = x_ref.dtype   # bf16 activations feed the MXU fast path

    def linear(h, w_ref, b_ref, relu, out_dtype):
        # bf16 @ bf16 with f32 accumulation on the MXU; f32 bias add.
        y = jnp.dot(h, w_ref[...], preferred_element_type=jnp.float32)
        y = (y + b_ref[...]).astype(out_dtype)   # (1, N) bias broadcasts over rows
        if relu:
            # max(., 0) commutes with the bf16 downcast: doing it after the
            # cast halves VPU vreg traffic on bf16-VALU chips (v6e/v7x).
            y = jnp.maximum(y, 0)
        return y

    h = x_ref[...]
    # encoder
    h = linear(h, we1_ref, be1_ref, True, compute_dtype)
    h = linear(h, we2_ref, be2_ref, True, compute_dtype)
    h = linear(h, we3_ref, be3_ref, True, compute_dtype)
    # latent mean (self.z_mean in the torch module; not returned by forward())
    mu = linear(h, wmu_ref, bmu_ref, False, compute_dtype)
    # decoder
    h = linear(mu, wd1_ref, bd1_ref, True, compute_dtype)
    h = linear(h, wd2_ref, bd2_ref, True, compute_dtype)
    h = linear(h, wd3_ref, bd3_ref, True, compute_dtype)
    out_ref[...] = linear(h, wd4_ref, bd4_ref, False, out_ref.dtype)


# --------------------------------------------------------------------------
# Wrapper
# --------------------------------------------------------------------------
def prepare_fcae_params(params, *, compute_dtype=jnp.bfloat16, lane_target=None):
    """Pad every layer width to a lane-dense multiple and cast once (hoisted
    out of the per-call hot path).  Zero rows/cols/biases keep the math exact
    (padded activation columns stay exactly 0 through ReLU / identity)."""
    if lane_target is None:
        lane_target = _internal_lane_target()

    D, I0 = params["we1"].shape
    I1 = params["we2"].shape[1]
    I2 = params["we3"].shape[1]
    H = params["wmu"].shape[1]

    Dp = _round_up(D, _LANES)
    I0p = _pad_internal(I0, lane_target)
    I1p = _pad_internal(I1, lane_target)
    I2p = _pad_internal(I2, lane_target)
    Hp = _pad_internal(H, lane_target)

    def w(name, r, c):
        return _pad2d(params[name], r, c).astype(compute_dtype)

    def b(name, c):
        return _pad2d(params[name], 1, c).astype(jnp.float32)

    tensors = (
        w("we1", Dp, I0p), b("be1", I0p),
        w("we2", I0p, I1p), b("be2", I1p),
        w("we3", I1p, I2p), b("be3", I2p),
        w("wmu", I2p, Hp), b("bmu", Hp),
        w("wd1", Hp, I2p), b("bd1", I2p),
        w("wd2", I2p, I1p), b("bd2", I1p),
        w("wd3", I1p, I0p), b("bd3", I0p),
        w("wd4", I0p, Dp), b("bd4", Dp),
    )
    return {
        "tensors": tensors,
        "input_dim": D,
        "d_pad": Dp,
        "max_dim_pad": max(Dp, I0p, I1p, I2p, Hp),
        "compute_dtype": jnp.dtype(compute_dtype),
    }


def fcae_forward(x, params=None, *, prepared=None, batch_tile=1024,
                 compute_dtype=jnp.bfloat16):
    """x: (B, input_dim) float32.  Pass `prepared=prepare_fcae_params(params)`
    to keep weight padding/casting out of the per-call hot path."""
    if prepared is None:
        prepared = prepare_fcae_params(params, compute_dtype=compute_dtype)

    tensors = prepared["tensors"]
    D = prepared["input_dim"]
    D_pad = prepared["d_pad"]
    cdt = prepared["compute_dtype"]

    B = x.shape[0]
    assert x.shape[1] == D, "feature dim mismatch with prepared params"

    # --- batch tile: large (amortizes ~0.35us/step overhead + 8 weight pushes),
    # 16-aligned for bf16 sublane packing, 128-aligned when big enough, and on
    # multi-TC chips kept small enough that the parallel grid has >= num_tc steps.
    bt = max(_BF16_SUBLANES, min(int(batch_tile), _round_up(B, _BF16_SUBLANES)))
    bt = _round_up(bt, _LANES) if bt >= _LANES else _round_up(bt, _BF16_SUBLANES)
    num_tc = _num_tensorcores()
    if num_tc > 1:
        while bt > _BF16_SUBLANES and _round_up(B, bt) // bt < num_tc:
            half = _round_up(max(bt // 2, _BF16_SUBLANES), _BF16_SUBLANES)
            if half >= bt:
                break
            bt = half
    B_pad = _round_up(B, bt)

    # --- lane-dense input: pad batch rows and feature columns with zeros.
    x_p = x
    if B_pad != B or D_pad != D:
        x_p = jnp.pad(x, ((0, B_pad - B), (0, D_pad - D)))
    x_p = x_p.astype(cdt)

    x_spec = pl.BlockSpec((bt, D_pad), lambda i: (i, 0))
    out_spec = pl.BlockSpec((bt, D_pad), lambda i: (i, 0))

    # --- generation-aware VMEM budget: resident weights + double-buffered
    # x (bf16) / out (f32) tiles + a few live f32 intermediates, with headroom.
    itemsize = cdt.itemsize
    weight_bytes = sum(int(t.size) * t.dtype.itemsize for t in tensors)
    io_bytes = 2 * bt * D_pad * itemsize + 2 * bt * D_pad * 4
    act_bytes = 4 * bt * prepared["max_dim_pad"] * 4
    needed = weight_bytes + io_bytes + act_bytes
    vmem_cap = _vmem_capacity_bytes()
    vmem_limit = int(max(32 << 20, min(int(0.7 * vmem_cap), 2 * needed)))
    vmem_limit = min(vmem_limit, int(0.75 * vmem_cap))

    # Advisory cost hint for the XLA scheduler.
    layer_dims = [t.shape for i, t in enumerate(tensors) if i % 2 == 0]
    flops = int(2 * B_pad * sum(k * n for (k, n) in layer_dims))
    bytes_accessed = int(x_p.size) * itemsize + B_pad * D_pad * 4 + weight_bytes
    cost = pl.CostEstimate(flops=flops, transcendentals=0,
                           bytes_accessed=int(bytes_accessed))

    def run(single_buffer_weights):
        if single_buffer_weights:
            # Weights/biases never change across the grid: whole-array blocks,
            # constant index_map, single-buffered (stay resident in VMEM).
            w_specs = [pl.BlockSpec(t.shape, lambda i: (0, 0),
                                    pipeline_mode=pl.Buffered(1))
                       for t in tensors]
        else:
            w_specs = [pl.BlockSpec(t.shape, lambda i: (0, 0)) for t in tensors]

        return pl.pallas_call(
            _fcae_kernel,
            out_shape=jax.ShapeDtypeStruct((B_pad, D_pad), jnp.float32),
            grid_spec=pltpu.PrefetchScalarGridSpec(
                num_scalar_prefetch=0,
                grid=(B_pad // bt,),
                in_specs=[x_spec] + w_specs,
                out_specs=out_spec,
            ),
            compiler_params=pltpu.CompilerParams(
                dimension_semantics=("parallel",),
                vmem_limit_bytes=vmem_limit,
            ),
            cost_estimate=cost,
        )(x_p, *tensors)

    try:
        out = run(single_buffer_weights=True)
    except pltpu.LoweringException:
        # Single-buffering grid-invariant weights is an optional VMEM win;
        # fall back to default double-buffering if this build rejects it.
        out = run(single_buffer_weights=False)

    return out[:B, :D]


# --------------------------------------------------------------------------
# Parameter init (torch-Linear-like) and pure-JAX reference
# --------------------------------------------------------------------------
def init_fcae_params(key, input_dim, inter_dims, hid_dim):
    dims_enc = [input_dim, inter_dims[0], inter_dims[1], inter_dims[2]]
    dims_dec = [hid_dim, inter_dims[2], inter_dims[1], inter_dims[0], input_dim]

    params = {}

    def make_linear(key, fan_in, fan_out):
        kw, kb = jax.random.split(key)
        bound = 1.0 / (fan_in ** 0.5)
        w = jax.random.uniform(kw, (fan_in, fan_out), jnp.float32, -bound, bound)
        b = jax.random.uniform(kb, (1, fan_out), jnp.float32, -bound, bound)
        return w, b

    keys = jax.random.split(key, 8)
    params["we1"], params["be1"] = make_linear(keys[0], dims_enc[0], dims_enc[1])
    params["we2"], params["be2"] = make_linear(keys[1], dims_enc[1], dims_enc[2])
    params["we3"], params["be3"] = make_linear(keys[2], dims_enc[2], dims_enc[3])
    params["wmu"], params["bmu"] = make_linear(keys[3], dims_enc[3], hid_dim)
    params["wd1"], params["bd1"] = make_linear(keys[4], dims_dec[0], dims_dec[1])
    params["wd2"], params["bd2"] = make_linear(keys[5], dims_dec[1], dims_dec[2])
    params["wd3"], params["bd3"] = make_linear(keys[6], dims_dec[2], dims_dec[3])
    params["wd4"], params["bd4"] = make_linear(keys[7], dims_dec[3], dims_dec[4])
    return params


def fcae_reference(x, params, compute_dtype=jnp.float32):
    """Pure-JAX reference. With compute_dtype=bf16 it mirrors the kernel's
    bf16-operand / f32-accumulation math for tight correctness checks."""
    def lin(h, w, b, relu):
        y = jnp.dot(h.astype(compute_dtype), w.astype(compute_dtype),
                    preferred_element_type=jnp.float32) + b
        return jnp.maximum(y, 0.0) if relu else y

    h = lin(x, params["we1"], params["be1"], True)
    h = lin(h, params["we2"], params["be2"], True)
    h = lin(h, params["we3"], params["be3"], True)
    mu = lin(h, params["wmu"], params["bmu"], False)
    h = lin(mu, params["wd1"], params["bd1"], True)
    h = lin(h, params["wd2"], params["bd2"], True)
    h = lin(h, params["wd3"], params["bd3"], True)
    return lin(h, params["wd4"], params["bd4"], False)


if __name__ == "__main__":
    # Small, TPU-friendly shapes consistent with the module's structure.
    input_dim = 32
    inter_dims = [64, 64, 128]
    hid_dim = 16
    batch = 512

    key = jax.random.PRNGKey(0)
    kx, kp = jax.random.split(key)
    x = jax.random.normal(kx, (batch, input_dim), jnp.float32)
    params = init_fcae_params(kp, input_dim, inter_dims, hid_dim)

    # Padding / bf16 cast of weights done once, outside the per-call hot path.
    prepared = prepare_fcae_params(params)

    out = jax.block_until_ready(fcae_forward(x, prepared=prepared))

    # Reference with the same bf16-operand / f32-accumulation arithmetic.
    ref = fcae_reference(x, params, compute_dtype=jnp.bfloat16)
    assert out.shape == (batch, input_dim)
    assert jnp.allclose(out, ref, atol=1e-2, rtol=1e-2), "mismatch vs reference"

    print("KERNEL_OK")
</pallas_src>

<mosaic_0001>
module attributes {stable_mosaic.version = 11 : i64} {
  func.func @_fcae_kernel(%arg0: i32, %arg1: memref<512x128xbf16, #tpu.memory_space<vmem>>, %arg2: memref<128x128xbf16, #tpu.memory_space<vmem>>, %arg3: memref<1x128xf32, #tpu.memory_space<vmem>>, %arg4: memref<128x128xbf16, #tpu.memory_space<vmem>>, %arg5: memref<1x128xf32, #tpu.memory_space<vmem>>, %arg6: memref<128x128xbf16, #tpu.memory_space<vmem>>, %arg7: memref<1x128xf32, #tpu.memory_space<vmem>>, %arg8: memref<128x128xbf16, #tpu.memory_space<vmem>>, %arg9: memref<1x128xf32, #tpu.memory_space<vmem>>, %arg10: memref<128x128xbf16, #tpu.memory_space<vmem>>, %arg11: memref<1x128xf32, #tpu.memory_space<vmem>>, %arg12: memref<128x128xbf16, #tpu.memory_space<vmem>>, %arg13: memref<1x128xf32, #tpu.memory_space<vmem>>, %arg14: memref<128x128xbf16, #tpu.memory_space<vmem>>, %arg15: memref<1x128xf32, #tpu.memory_space<vmem>>, %arg16: memref<128x128xbf16, #tpu.memory_space<vmem>>, %arg17: memref<1x128xf32, #tpu.memory_space<vmem>>, %arg18: memref<512x128xf32, #tpu.memory_space<vmem>>) attributes {dimension_semantics = [#tpu.dimension_semantics<parallel>], iteration_bounds = array<i64: 1>, scalar_prefetch = 0 : i64, scratch_operands = 0 : i64, tpu.core_type = #tpu.core_type<tc>, window_params = [{transform_indices = @transform_0, window_bounds = array<i64: 512, 128>}, {pipeline_mode = #tpu.pipeline_mode<synchronous>, transform_indices = @transform_1, window_bounds = array<i64: 128, 128>}, {pipeline_mode = #tpu.pipeline_mode<synchronous>, transform_indices = @transform_2, window_bounds = array<i64: 1, 128>}, {pipeline_mode = #tpu.pipeline_mode<synchronous>, transform_indices = @transform_3, window_bounds = array<i64: 128, 128>}, {pipeline_mode = #tpu.pipeline_mode<synchronous>, transform_indices = @transform_4, window_bounds = array<i64: 1, 128>}, {pipeline_mode = #tpu.pipeline_mode<synchronous>, transform_indices = @transform_5, window_bounds = array<i64: 128, 128>}, {pipeline_mode = #tpu.pipeline_mode<synchronous>, transform_indices = @transform_6, window_bounds = array<i64: 1, 128>}, {pipeline_mode = #tpu.pipeline_mode<synchronous>, transform_indices = @transform_7, window_bounds = array<i64: 128, 128>}, {pipeline_mode = #tpu.pipeline_mode<synchronous>, transform_indices = @transform_8, window_bounds = array<i64: 1, 128>}, {pipeline_mode = #tpu.pipeline_mode<synchronous>, transform_indices = @transform_9, window_bounds = array<i64: 128, 128>}, {pipeline_mode = #tpu.pipeline_mode<synchronous>, transform_indices = @transform_10, window_bounds = array<i64: 1, 128>}, {pipeline_mode = #tpu.pipeline_mode<synchronous>, transform_indices = @transform_11, window_bounds = array<i64: 128, 128>}, {pipeline_mode = #tpu.pipeline_mode<synchronous>, transform_indices = @transform_12, window_bounds = array<i64: 1, 128>}, {pipeline_mode = #tpu.pipeline_mode<synchronous>, transform_indices = @transform_13, window_bounds = array<i64: 128, 128>}, {pipeline_mode = #tpu.pipeline_mode<synchronous>, transform_indices = @transform_14, window_bounds = array<i64: 1, 128>}, {pipeline_mode = #tpu.pipeline_mode<synchronous>, transform_indices = @transform_15, window_bounds = array<i64: 128, 128>}, {pipeline_mode = #tpu.pipeline_mode<synchronous>, transform_indices = @transform_16, window_bounds = array<i64: 1, 128>}, {transform_indices = @transform_17, window_bounds = array<i64: 512, 128>}]} {
    %c0 = arith.constant 0 : index
    %c0_0 = arith.constant 0 : index
    %0 = vector.load %arg1[%c0, %c0_0] : memref<512x128xbf16, #tpu.memory_space<vmem>>, vector<512x128xbf16>
    %c0_1 = arith.constant 0 : index
    %c0_2 = arith.constant 0 : index
    %1 = vector.load %arg2[%c0_1, %c0_2] : memref<128x128xbf16, #tpu.memory_space<vmem>>, vector<128x128xbf16>
    %cst = arith.constant dense<0.000000e+00> : vector<512x128xf32>
    %2 = tpu.matmul %0, %1, %cst {dimension_numbers = #tpu.dot_dimension_numbers<[1], [0], [0], [1], [0, 0, 1, 1], [], []>} : vector<512x128xbf16>, vector<128x128xbf16>, vector<512x128xf32> -> vector<512x128xf32>
    %c0_3 = arith.constant 0 : index
    %c0_4 = arith.constant 0 : index
    %3 = vector.load %arg3[%c0_3, %c0_4] : memref<1x128xf32, #tpu.memory_space<vmem>>, vector<1x128xf32>
    %4 = vector.broadcast %3 : vector<1x128xf32> to vector<512x128xf32>
    %5 = arith.addf %2, %4 : vector<512x128xf32>
    %6 = arith.truncf %5 : vector<512x128xf32> to vector<512x128xbf16>
    %cst_5 = arith.constant 0.000000e+00 : bf16
    %7 = vector.broadcast %cst_5 : bf16 to vector<512x128xbf16>
    %8 = arith.maximumf %6, %7 : vector<512x128xbf16>
    %c0_6 = arith.constant 0 : index
    %c0_7 = arith.constant 0 : index
    %9 = vector.load %arg4[%c0_6, %c0_7] : memref<128x128xbf16, #tpu.memory_space<vmem>>, vector<128x128xbf16>
    %cst_8 = arith.constant dense<0.000000e+00> : vector<512x128xf32>
    %10 = tpu.matmul %8, %9, %cst_8 {dimension_numbers = #tpu.dot_dimension_numbers<[1], [0], [0], [1], [0, 0, 1, 1], [], []>} : vector<512x128xbf16>, vector<128x128xbf16>, vector<512x128xf32> -> vector<512x128xf32>
    %c0_9 = arith.constant 0 : index
    %c0_10 = arith.constant 0 : index
    %11 = vector.load %arg5[%c0_9, %c0_10] : memref<1x128xf32, #tpu.memory_space<vmem>>, vector<1x128xf32>
    %12 = vector.broadcast %11 : vector<1x128xf32> to vector<512x128xf32>
    %13 = arith.addf %10, %12 : vector<512x128xf32>
    %14 = arith.truncf %13 : vector<512x128xf32> to vector<512x128xbf16>
    %cst_11 = arith.constant 0.000000e+00 : bf16
    %15 = vector.broadcast %cst_11 : bf16 to vector<512x128xbf16>
    %16 = arith.maximumf %14, %15 : vector<512x128xbf16>
    %c0_12 = arith.constant 0 : index
    %c0_13 = arith.constant 0 : index
    %17 = vector.load %arg6[%c0_12, %c0_13] : memref<128x128xbf16, #tpu.memory_space<vmem>>, vector<128x128xbf16>
    %cst_14 = arith.constant dense<0.000000e+00> : vector<512x128xf32>
    %18 = tpu.matmul %16, %17, %cst_14 {dimension_numbers = #tpu.dot_dimension_numbers<[1], [0], [0], [1], [0, 0, 1, 1], [], []>} : vector<512x128xbf16>, vector<128x128xbf16>, vector<512x128xf32> -> vector<512x128xf32>
    %c0_15 = arith.constant 0 : index
    %c0_16 = arith.constant 0 : index
    %19 = vector.load %arg7[%c0_15, %c0_16] : memref<1x128xf32, #tpu.memory_space<vmem>>, vector<1x128xf32>
    %20 = vector.broadcast %19 : vector<1x128xf32> to vector<512x128xf32>
    %21 = arith.addf %18, %20 : vector<512x128xf32>
    %22 = arith.truncf %21 : vector<512x128xf32> to vector<512x128xbf16>
    %cst_17 = arith.constant 0.000000e+00 : bf16
    %23 = vector.broadcast %cst_17 : bf16 to vector<512x128xbf16>
    %24 = arith.maximumf %22, %23 : vector<512x128xbf16>
    %c0_18 = arith.constant 0 : index
    %c0_19 = arith.constant 0 : index
    %25 = vector.load %arg8[%c0_18, %c0_19] : memref<128x128xbf16, #tpu.memory_space<vmem>>, vector<128x128xbf16>
    %cst_20 = arith.constant dense<0.000000e+00> : vector<512x128xf32>
    %26 = tpu.matmul %24, %25, %cst_20 {dimension_numbers = #tpu.dot_dimension_numbers<[1], [0], [0], [1], [0, 0, 1, 1], [], []>} : vector<512x128xbf16>, vector<128x128xbf16>, vector<512x128xf32> -> vector<512x128xf32>
    %c0_21 = arith.constant 0 : index
    %c0_22 = arith.constant 0 : index
    %27 = vector.load %arg9[%c0_21, %c0_22] : memref<1x128xf32, #tpu.memory_space<vmem>>, vector<1x128xf32>
    %28 = vector.broadcast %27 : vector<1x128xf32> to vector<512x128xf32>
    %29 = arith.addf %26, %28 : vector<512x128xf32>
    %30 = arith.truncf %29 : vector<512x128xf32> to vector<512x128xbf16>
    %c0_23 = arith.constant 0 : index
    %c0_24 = arith.constant 0 : index
    %31 = vector.load %arg10[%c0_23, %c0_24] : memref<128x128xbf16, #tpu.memory_space<vmem>>, vector<128x128xbf16>
    %cst_25 = arith.constant dense<0.000000e+00> : vector<512x128xf32>
    %32 = tpu.matmul %30, %31, %cst_25 {dimension_numbers = #tpu.dot_dimension_numbers<[1], [0], [0], [1], [0, 0, 1, 1], [], []>} : vector<512x128xbf16>, vector<128x128xbf16>, vector<512x128xf32> -> vector<512x128xf32>
    %c0_26 = arith.constant 0 : index
    %c0_27 = arith.constant 0 : index
    %33 = vector.load %arg11[%c0_26, %c0_27] : memref<1x128xf32, #tpu.memory_space<vmem>>, vector<1x128xf32>
    %34 = vector.broadcast %33 : vector<1x128xf32> to vector<512x128xf32>
    %35 = arith.addf %32, %34 : vector<512x128xf32>
    %36 = arith.truncf %35 : vector<512x128xf32> to vector<512x128xbf16>
    %cst_28 = arith.constant 0.000000e+00 : bf16
    %37 = vector.broadcast %cst_28 : bf16 to vector<512x128xbf16>
    %38 = arith.maximumf %36, %37 : vector<512x128xbf16>
    %c0_29 = arith.constant 0 : index
    %c0_30 = arith.constant 0 : index
    %39 = vector.load %arg12[%c0_29, %c0_30] : memref<128x128xbf16, #tpu.memory_space<vmem>>, vector<128x128xbf16>
    %cst_31 = arith.constant dense<0.000000e+00> : vector<512x128xf32>
    %40 = tpu.matmul %38, %39, %cst_31 {dimension_numbers = #tpu.dot_dimension_numbers<[1], [0], [0], [1], [0, 0, 1, 1], [], []>} : vector<512x128xbf16>, vector<128x128xbf16>, vector<512x128xf32> -> vector<512x128xf32>
    %c0_32 = arith.constant 0 : index
    %c0_33 = arith.constant 0 : index
    %41 = vector.load %arg13[%c0_32, %c0_33] : memref<1x128xf32, #tpu.memory_space<vmem>>, vector<1x128xf32>
    %42 = vector.broadcast %41 : vector<1x128xf32> to vector<512x128xf32>
    %43 = arith.addf %40, %42 : vector<512x128xf32>
    %44 = arith.truncf %43 : vector<512x128xf32> to vector<512x128xbf16>
    %cst_34 = arith.constant 0.000000e+00 : bf16
    %45 = vector.broadcast %cst_34 : bf16 to vector<512x128xbf16>
    %46 = arith.maximumf %44, %45 : vector<512x128xbf16>
    %c0_35 = arith.constant 0 : index
    %c0_36 = arith.constant 0 : index
    %47 = vector.load %arg14[%c0_35, %c0_36] : memref<128x128xbf16, #tpu.memory_space<vmem>>, vector<128x128xbf16>
    %cst_37 = arith.constant dense<0.000000e+00> : vector<512x128xf32>
    %48 = tpu.matmul %46, %47, %cst_37 {dimension_numbers = #tpu.dot_dimension_numbers<[1], [0], [0], [1], [0, 0, 1, 1], [], []>} : vector<512x128xbf16>, vector<128x128xbf16>, vector<512x128xf32> -> vector<512x128xf32>
    %c0_38 = arith.constant 0 : index
    %c0_39 = arith.constant 0 : index
    %49 = vector.load %arg15[%c0_38, %c0_39] : memref<1x128xf32, #tpu.memory_space<vmem>>, vector<1x128xf32>
    %50 = vector.broadcast %49 : vector<1x128xf32> to vector<512x128xf32>
    %51 = arith.addf %48, %50 : vector<512x128xf32>
    %52 = arith.truncf %51 : vector<512x128xf32> to vector<512x128xbf16>
    %cst_40 = arith.constant 0.000000e+00 : bf16
    %53 = vector.broadcast %cst_40 : bf16 to vector<512x128xbf16>
    %54 = arith.maximumf %52, %53 : vector<512x128xbf16>
    %c0_41 = arith.constant 0 : index
    %c0_42 = arith.constant 0 : index
    %55 = vector.load %arg16[%c0_41, %c0_42] : memref<128x128xbf16, #tpu.memory_space<vmem>>, vector<128x128xbf16>
    %cst_43 = arith.constant dense<0.000000e+00> : vector<512x128xf32>
    %56 = tpu.matmul %54, %55, %cst_43 {dimension_numbers = #tpu.dot_dimension_numbers<[1], [0], [0], [1], [0, 0, 1, 1], [], []>} : vector<512x128xbf16>, vector<128x128xbf16>, vector<512x128xf32> -> vector<512x128xf32>
    %c0_44 = arith.constant 0 : index
    %c0_45 = arith.constant 0 : index
    %57 = vector.load %arg17[%c0_44, %c0_45] : memref<1x128xf32, #tpu.memory_space<vmem>>, vector<1x128xf32>
    %58 = vector.broadcast %57 : vector<1x128xf32> to vector<512x128xf32>
    %59 = arith.addf %56, %58 : vector<512x128xf32>
    %c0_46 = arith.constant 0 : index
    %c0_47 = arith.constant 0 : index
    %60 = vector.load %arg18[%c0_46, %c0_47] : memref<512x128xf32, #tpu.memory_space<vmem>>, vector<512x128xf32>
    tpu.vector_store %arg18[%c0_46, %c0_47], %59 {strides = array<i32>} : memref<512x128xf32, #tpu.memory_space<vmem>>, vector<512x128xf32>,
    return
  }
  func.func @transform_0(%arg0: i32) -> (i32, i32) {
    %c0_i32 = arith.constant 0 : i32
    %c0_i32_0 = arith.constant 0 : i32
    return %arg0, %c0_i32 : i32, i32
  }
  func.func @transform_1(%arg0: i32) -> (i32, i32) {
    %c0_i32 = arith.constant 0 : i32
    %c0_i32_0 = arith.constant 0 : i32
    %c0_i32_1 = arith.constant 0 : i32
    return %c0_i32, %c0_i32_0 : i32, i32
  }
  func.func @transform_2(%arg0: i32) -> (i32, i32) {
    %c0_i32 = arith.constant 0 : i32
    %c0_i32_0 = arith.constant 0 : i32
    %c0_i32_1 = arith.constant 0 : i32
    return %c0_i32, %c0_i32_0 : i32, i32
  }
  func.func @transform_3(%arg0: i32) -> (i32, i32) {
    %c0_i32 = arith.constant 0 : i32
    %c0_i32_0 = arith.constant 0 : i32
    %c0_i32_1 = arith.constant 0 : i32
    return %c0_i32, %c0_i32_0 : i32, i32
  }
  func.func @transform_4(%arg0: i32) -> (i32, i32) {
    %c0_i32 = arith.constant 0 : i32
    %c0_i32_0 = arith.constant 0 : i32
    %c0_i32_1 = arith.constant 0 : i32
    return %c0_i32, %c0_i32_0 : i32, i32
  }
  func.func @transform_5(%arg0: i32) -> (i32, i32) {
    %c0_i32 = arith.constant 0 : i32
    %c0_i32_0 = arith.constant 0 : i32
    %c0_i32_1 = arith.constant 0 : i32
    return %c0_i32, %c0_i32_0 : i32, i32
  }
  func.func @transform_6(%arg0: i32) -> (i32, i32) {
    %c0_i32 = arith.constant 0 : i32
    %c0_i32_0 = arith.constant 0 : i32
    %c0_i32_1 = arith.constant 0 : i32
    return %c0_i32, %c0_i32_0 : i32, i32
  }
  func.func @transform_7(%arg0: i32) -> (i32, i32) {
    %c0_i32 = arith.constant 0 : i32
    %c0_i32_0 = arith.constant 0 : i32
    %c0_i32_1 = arith.constant 0 : i32
    return %c0_i32, %c0_i32_0 : i32, i32
  }
  func.func @transform_8(%arg0: i32) -> (i32, i32) {
    %c0_i32 = arith.constant 0 : i32
    %c0_i32_0 = arith.constant 0 : i32
    %c0_i32_1 = arith.constant 0 : i32
    return %c0_i32, %c0_i32_0 : i32, i32
  }
  func.func @transform_9(%arg0: i32) -> (i32, i32) {
    %c0_i32 = arith.constant 0 : i32
    %c0_i32_0 = arith.constant 0 : i32
    %c0_i32_1 = arith.constant 0 : i32
    return %c0_i32, %c0_i32_0 : i32, i32
  }
  func.func @transform_10(%arg0: i32) -> (i32, i32) {
    %c0_i32 = arith.constant 0 : i32
    %c0_i32_0 = arith.constant 0 : i32
    %c0_i32_1 = arith.constant 0 : i32
    return %c0_i32, %c0_i32_0 : i32, i32
  }
  func.func @transform_11(%arg0: i32) -> (i32, i32) {
    %c0_i32 = arith.constant 0 : i32
    %c0_i32_0 = arith.constant 0 : i32
    %c0_i32_1 = arith.constant 0 : i32
    return %c0_i32, %c0_i32_0 : i32, i32
  }
  func.func @transform_12(%arg0: i32) -> (i32, i32) {
    %c0_i32 = arith.constant 0 : i32
    %c0_i32_0 = arith.constant 0 : i32
    %c0_i32_1 = arith.constant 0 : i32
    return %c0_i32, %c0_i32_0 : i32, i32
  }
  func.func @transform_13(%arg0: i32) -> (i32, i32) {
    %c0_i32 = arith.constant 0 : i32
    %c0_i32_0 = arith.constant 0 : i32
    %c0_i32_1 = arith.constant 0 : i32
    return %c0_i32, %c0_i32_0 : i32, i32
  }
  func.func @transform_14(%arg0: i32) -> (i32, i32) {
    %c0_i32 = arith.constant 0 : i32
    %c0_i32_0 = arith.constant 0 : i32
    %c0_i32_1 = arith.constant 0 : i32
    return %c0_i32, %c0_i32_0 : i32, i32
  }
  func.func @transform_15(%arg0: i32) -> (i32, i32) {
    %c0_i32 = arith.constant 0 : i32
    %c0_i32_0 = arith.constant 0 : i32
    %c0_i32_1 = arith.constant 0 : i32
    return %c0_i32, %c0_i32_0 : i32, i32
  }
  func.func @transform_16(%arg0: i32) -> (i32, i32) {
    %c0_i32 = arith.constant 0 : i32
    %c0_i32_0 = arith.constant 0 : i32
    %c0_i32_1 = arith.constant 0 : i32
    return %c0_i32, %c0_i32_0 : i32, i32
  }
  func.func @transform_17(%arg0: i32) -> (i32, i32) {
    %c0_i32 = arith.constant 0 : i32
    %c0_i32_0 = arith.constant 0 : i32
    return %arg0, %c0_i32 : i32, i32
  }
}

</mosaic_0001>

<llo_original>
// kernel: tpu_custom_call.1
$region0: #{tpu_custom_call.1}
  #allocation0 [shape = 'u32[]', space=smem, size = 0x4, offset = 0x4, fixed_abs, tag = 'smem constant byte address 0x4 - core index']
  #allocation1 [shape = 'u32[144,128]{1,0:T(1,128)}', space=vmem, size = 0x12000, scoped, tag = 'internal scratch']
  %s0 = inlined_call_operand.hbm [shape: bf16[512,128], index: 0, kind: input, shape index: {}]
  %s1 = inlined_call_operand.hbm [shape: bf16[128,128], index: 1, kind: input, shape index: {}]
  %s2 = inlined_call_operand.vmem [shape: f32[1,128], index: 2, kind: input, shape index: {}]
  %s3 = inlined_call_operand.hbm [shape: bf16[128,128], index: 3, kind: input, shape index: {}]
  %s4 = inlined_call_operand.vmem [shape: f32[1,128], index: 4, kind: input, shape index: {}]
  %s5 = inlined_call_operand.hbm [shape: bf16[128,128], index: 5, kind: input, shape index: {}]
  %s6 = inlined_call_operand.vmem [shape: f32[1,128], index: 6, kind: input, shape index: {}]
  %s7 = inlined_call_operand.hbm [shape: bf16[128,128], index: 7, kind: input, shape index: {}]
  %s8 = inlined_call_operand.vmem [shape: f32[1,128], index: 8, kind: input, shape index: {}]
  %s9 = inlined_call_operand.hbm [shape: bf16[128,128], index: 9, kind: input, shape index: {}]
  %s10 = inlined_call_operand.vmem [shape: f32[1,128], index: 10, kind: input, shape index: {}]
  %s11 = inlined_call_operand.hbm [shape: bf16[128,128], index: 11, kind: input, shape index: {}]
  %s12 = inlined_call_operand.vmem [shape: f32[1,128], index: 12, kind: input, shape index: {}]
  %s13 = inlined_call_operand.hbm [shape: bf16[128,128], index: 13, kind: input, shape index: {}]
  %s14 = inlined_call_operand.vmem [shape: f32[1,128], index: 14, kind: input, shape index: {}]
  %s15 = inlined_call_operand.hbm [shape: bf16[128,128], index: 15, kind: input, shape index: {}]
  %s16 = inlined_call_operand.vmem [shape: f32[1,128], index: 16, kind: input, shape index: {}]
  %s17 = inlined_call_operand.hbm [shape: f32[512,128], index: 17, kind: output, shape index: {}]
  %s18 = sld [smem:[#allocation0]]
  $region114: #{tpu_custom_call.1} parent=0
    _
  %s20 = ssub.s32 1, %s18
  %s21 = scalar_select 0, %s20, %s18
  $region1: #{tpu_custom_call.1} parent=0
    #allocation2 [shape = 'u8[131072]{0}', space=vmem, size = 0x20000, scoped, tag = 'input window, operand 0, single buffered']
    #allocation3 [shape = 's32[1]{0}', space=sflag, size = 0x4, scoped, tag = 'scoped memory for tpu_custom_call.1']
    #allocation4 [shape = 's32[1]{0}', space=sflag, size = 0x4, scoped, tag = 'scoped memory for tpu_custom_call.1']
    #allocation5 [shape = 'u8[32768]{0}', space=vmem, size = 0x8000, scoped, tag = 'input window, operand 1, single buffered']
    #allocation6 [shape = 's32[1]{0}', space=sflag, size = 0x4, scoped, tag = 'scoped memory for tpu_custom_call.1']
    #allocation7 [shape = 'u8[32768]{0}', space=vmem, size = 0x8000, scoped, tag = 'input window, operand 3, single buffered']
    #allocation8 [shape = 'u8[32768]{0}', space=vmem, size = 0x8000, scoped, tag = 'input window, operand 5, single buffered']
    #allocation9 [shape = 's32[1]{0}', space=sflag, size = 0x4, scoped, tag = 'scoped memory for tpu_custom_call.1']
    #allocation10 [shape = 'u8[32768]{0}', space=vmem, size = 0x8000, scoped, tag = 'input window, operand 7, single buffered']
    #allocation11 [shape = 'u8[32768]{0}', space=vmem, size = 0x8000, scoped, tag = 'input window, operand 9, single buffered']
    #allocation12 [shape = 's32[1]{0}', space=sflag, size = 0x4, scoped, tag = 'scoped memory for tpu_custom_call.1']
    #allocation13 [shape = 'u8[32768]{0}', space=vmem, size = 0x8000, scoped, tag = 'input window, operand 11, single buffered']
    #allocation14 [shape = 'u8[32768]{0}', space=vmem, size = 0x8000, scoped, tag = 'input window, operand 13, single buffered']
    #allocation15 [shape = 's32[1]{0}', space=sflag, size = 0x4, scoped, tag = 'scoped memory for tpu_custom_call.1']
    #allocation16 [shape = 'u8[32768]{0}', space=vmem, size = 0x8000, scoped, tag = 'input window, operand 15, single buffered']
    #allocation17 [shape = 'u8[262144]{0}', space=vmem, size = 0x40000, scoped, tag = 'output window, operand 0, single buffered']
    %22 = vsyncpa [#allocation3], 0
    %23 = vsyncpa [#allocation6], 0
    %24 = vsyncpa [#allocation9], 0
    %25 = vsyncpa [#allocation12], 0
    %26 = vsyncpa [#allocation15], 0
    %27 = vsyncpa [#allocation4], 0
    // Predicated region
    $region2: #{tpu_custom_call.1} parent=1 // pred_check
      _
    $region3: #{tpu_custom_call.1} parent=1 // pred_check_branch
      %29 = sbr.rel (0) target = $region5
    $region4: #{tpu_custom_call.1} parent=1 // pred_region
      %s31 = ssub.s32 4096, 4096
      %32 = vsyncadd [#allocation3], %s31
      %s33 = sshll.u32 [#allocation2], 4
      %s34 = int_to_ptr.vmem [resolvable:$true] %s33
      %39 = dma.hbm_to_vmem [thread:$0]  %s0, 4096, %s34, [#allocation3], 64, 64, 4
    $region5: #{tpu_custom_call.1} parent=1 // pred_fallthru
      _
    // Predicated region
    $region6: #{tpu_custom_call.1} parent=1 // pred_check
      _
    $region7: #{tpu_custom_call.1} parent=1 // pred_check_branch
      %41 = sbr.rel (0) target = $region9
    $region8: #{tpu_custom_call.1} parent=1 // pred_region
      %s43 = ssub.s32 1024, 1024
      %44 = vsyncadd [#allocation6], %s43
      %s45 = sshll.u32 [#allocation5], 4
      %s46 = int_to_ptr.vmem [resolvable:$true] %s45
      %51 = dma.hbm_to_vmem [thread:$0]  %s1, 1024, %s46, [#allocation6], 64, 64, 4
    $region9: #{tpu_custom_call.1} parent=1 // pred_fallthru
      _
    // Predicated region
    $region10: #{tpu_custom_call.1} parent=1 // pred_check
      _
    $region11: #{tpu_custom_call.1} parent=1 // pred_check_branch
      %53 = sbr.rel (0) target = $region13
    $region12: #{tpu_custom_call.1} parent=1 // pred_region
      _
    $region13: #{tpu_custom_call.1} parent=1 // pred_fallthru
      _
    // Predicated region
    $region14: #{tpu_custom_call.1} parent=1 // pred_check
      _
    $region15: #{tpu_custom_call.1} parent=1 // pred_check_branch
      %55 = sbr.rel (0) target = $region17
    $region16: #{tpu_custom_call.1} parent=1 // pred_region
      %s57 = ssub.s32 1024, 1024
      %58 = vsyncadd [#allocation6], %s57
      %s59 = sshll.u32 [#allocation7], 4
      %s60 = int_to_ptr.vmem [resolvable:$true] %s59
      %65 = dma.hbm_to_vmem [thread:$0]  %s3, 1024, %s60, [#allocation6], 64, 64, 4
    $region17: #{tpu_custom_call.1} parent=1 // pred_fallthru
      _
    // Predicated region
    $region18: #{tpu_custom_call.1} parent=1 // pred_check
      _
    $region19: #{tpu_custom_call.1} parent=1 // pred_check_branch
      %67 = sbr.rel (0) target = $region21
    $region20: #{tpu_custom_call.1} parent=1 // pred_region
      _
    $region21: #{tpu_custom_call.1} parent=1 // pred_fallthru
      _
    // Predicated region
    $region22: #{tpu_custom_call.1} parent=1 // pred_check
      _
    $region23: #{tpu_custom_call.1} parent=1 // pred_check_branch
      %69 = sbr.rel (0) target = $region25
    $region24: #{tpu_custom_call.1} parent=1 // pred_region
      %s71 = ssub.s32 1024, 1024
      %72 = vsyncadd [#allocation9], %s71
      %s73 = sshll.u32 [#allocation8], 4
      %s74 = int_to_ptr.vmem [resolvable:$true] %s73
      %79 = dma.hbm_to_vmem [thread:$0]  %s5, 1024, %s74, [#allocation9], 64, 64, 4
    $region25: #{tpu_custom_call.1} parent=1 // pred_fallthru
      _
    // Predicated region
    $region26: #{tpu_custom_call.1} parent=1 // pred_check
      _
    $region27: #{tpu_custom_call.1} parent=1 // pred_check_branch
      %81 = sbr.rel (0) target = $region29
    $region28: #{tpu_custom_call.1} parent=1 // pred_region
      _
    $region29: #{tpu_custom_call.1} parent=1 // pred_fallthru
      _
    // Predicated region
    $region30: #{tpu_custom_call.1} parent=1 // pred_check
      _
    $region31: #{tpu_custom_call.1} parent=1 // pred_check_branch
      %83 = sbr.rel (0) target = $region33
    $region32: #{tpu_custom_call.1} parent=1 // pred_region
      %s85 = ssub.s32 1024, 1024
      %86 = vsyncadd [#allocation9], %s85
      %s87 = sshll.u32 [#allocation10], 4
      %s88 = int_to_ptr.vmem [resolvable:$true] %s87
      %93 = dma.hbm_to_vmem [thread:$0]  %s7, 1024, %s88, [#allocation9], 64, 64, 4
    $region33: #{tpu_custom_call.1} parent=1 // pred_fallthru
      _
    // Predicated region
    $region34: #{tpu_custom_call.1} parent=1 // pred_check
      _
    $region35: #{tpu_custom_call.1} parent=1 // pred_check_branch
      %95 = sbr.rel (0) target = $region37
    $region36: #{tpu_custom_call.1} parent=1 // pred_region
      _
    $region37: #{tpu_custom_call.1} parent=1 // pred_fallthru
      _
    // Predicated region
    $region38: #{tpu_custom_call.1} parent=1 // pred_check
      _
    $region39: #{tpu_custom_call.1} parent=1 // pred_check_branch
      %97 = sbr.rel (0) target = $region41
    $region40: #{tpu_custom_call.1} parent=1 // pred_region
      %s99 = ssub.s32 1024, 1024
      %100 = vsyncadd [#allocation12], %s99
      %s101 = sshll.u32 [#allocation11], 4
      %s102 = int_to_ptr.vmem [resolvable:$true] %s101
      %107 = dma.hbm_to_vmem [thread:$0]  %s9, 1024, %s102, [#allocation12], 64, 64, 4
    $region41: #{tpu_custom_call.1} parent=1 // pred_fallthru
      _
    // Predicated region
    $region42: #{tpu_custom_call.1} parent=1 // pred_check
      _
    $region43: #{tpu_custom_call.1} parent=1 // pred_check_branch
      %109 = sbr.rel (0) target = $region45
    $region44: #{tpu_custom_call.1} parent=1 // pred_region
      _
    $region45: #{tpu_custom_call.1} parent=1 // pred_fallthru
      _
    // Predicated region
    $region46: #{tpu_custom_call.1} parent=1 // pred_check
      _
    $region47: #{tpu_custom_call.1} parent=1 // pred_check_branch
      %111 = sbr.rel (0) target = $region49
    $region48: #{tpu_custom_call.1} parent=1 // pred_region
      %s113 = ssub.s32 1024, 1024
      %114 = vsyncadd [#allocation12], %s113
      %s115 = sshll.u32 [#allocation13], 4
      %s116 = int_to_ptr.vmem [resolvable:$true] %s115
      %121 = dma.hbm_to_vmem [thread:$0]  %s11, 1024, %s116, [#allocation12], 64, 64, 4
    $region49: #{tpu_custom_call.1} parent=1 // pred_fallthru
      _
    // Predicated region
    $region50: #{tpu_custom_call.1} parent=1 // pred_check
      _
    $region51: #{tpu_custom_call.1} parent=1 // pred_check_branch
      %123 = sbr.rel (0) target = $region53
    $region52: #{tpu_custom_call.1} parent=1 // pred_region
      _
    $region53: #{tpu_custom_call.1} parent=1 // pred_fallthru
      _
    // Predicated region
    $region54: #{tpu_custom_call.1} parent=1 // pred_check
      _
    $region55: #{tpu_custom_call.1} parent=1 // pred_check_branch
      %125 = sbr.rel (0) target = $region57
    $region56: #{tpu_custom_call.1} parent=1 // pred_region
      %s127 = ssub.s32 1024, 1024
      %128 = vsyncadd [#allocation15], %s127
      %s129 = sshll.u32 [#allocation14], 4
      %s130 = int_to_ptr.vmem [resolvable:$true] %s129
      %135 = dma.hbm_to_vmem [thread:$0]  %s13, 1024, %s130, [#allocation15], 64, 64, 4
    $region57: #{tpu_custom_call.1} parent=1 // pred_fallthru
      _
    // Predicated region
    $region58: #{tpu_custom_call.1} parent=1 // pred_check
      _
    $region59: #{tpu_custom_call.1} parent=1 // pred_check_branch
      %137 = sbr.rel (0) target = $region61
    $region60: #{tpu_custom_call.1} parent=1 // pred_region
      _
    $region61: #{tpu_custom_call.1} parent=1 // pred_fallthru
      _
    // Predicated region
    $region62: #{tpu_custom_call.1} parent=1 // pred_check
      _
    $region63: #{tpu_custom_call.1} parent=1 // pred_check_branch
      %139 = sbr.rel (0) target = $region65
    $region64: #{tpu_custom_call.1} parent=1 // pred_region
      %s141 = ssub.s32 1024, 1024
      %142 = vsyncadd [#allocation15], %s141
      %s143 = sshll.u32 [#allocation16], 4
      %s144 = int_to_ptr.vmem [resolvable:$true] %s143
      %149 = dma.hbm_to_vmem [thread:$0]  %s15, 1024, %s144, [#allocation15], 64, 64, 4
    $region65: #{tpu_custom_call.1} parent=1 // pred_fallthru
      _
    // Predicated region
    $region66: #{tpu_custom_call.1} parent=1 // pred_check
      _
    $region67: #{tpu_custom_call.1} parent=1 // pred_check_branch
      %151 = sbr.rel (0) target = $region69
    $region68: #{tpu_custom_call.1} parent=1 // pred_region
      _
    $region69: #{tpu_custom_call.1} parent=1 // pred_fallthru
      _
    // Predicated region
    $region70: #{tpu_custom_call.1} parent=1 // pred_check
      _
    $region71: #{tpu_custom_call.1} parent=1 // pred_check_branch
      %153 = sbr.rel (0) target = $region73
    $region72: #{tpu_custom_call.1} parent=1 // pred_region
      %154 = dma.done [#allocation3], 4096
    $region73: #{tpu_custom_call.1} parent=1 // pred_fallthru
      _
    // Predicated region
    $region74: #{tpu_custom_call.1} parent=1 // pred_check
      _
    $region75: #{tpu_custom_call.1} parent=1 // pred_check_branch
      %156 = sbr.rel (0) target = $region77
    $region76: #{tpu_custom_call.1} parent=1 // pred_region
      %157 = dma.done [#allocation6], 1024
    $region77: #{tpu_custom_call.1} parent=1 // pred_fallthru
      _
    // Predicated region
    $region78: #{tpu_custom_call.1} parent=1 // pred_check
      _
    $region79: #{tpu_custom_call.1} parent=1 // pred_check_branch
      %159 = sbr.rel (0) target = $region81
    $region80: #{tpu_custom_call.1} parent=1 // pred_region
      %160 = dma.done [#allocation6], 1024
    $region81: #{tpu_custom_call.1} parent=1 // pred_fallthru
      _
    // Predicated region
    $region82: #{tpu_custom_call.1} parent=1 // pred_check
      _
    $region83: #{tpu_custom_call.1} parent=1 // pred_check_branch
      %162 = sbr.rel (0) target = $region85
    $region84: #{tpu_custom_call.1} parent=1 // pred_region
      %163 = dma.done [#allocation9], 1024
    $region85: #{tpu_custom_call.1} parent=1 // pred_fallthru
      _
    // Predicated region
    $region86: #{tpu_custom_call.1} parent=1 // pred_check
      _
    $region87: #{tpu_custom_call.1} parent=1 // pred_check_branch
      %165 = sbr.rel (0) target = $region89
    $region88: #{tpu_custom_call.1} parent=1 // pred_region
      %166 = dma.done [#allocation9], 1024
    $region89: #{tpu_custom_call.1} parent=1 // pred_fallthru
      _
    // Predicated region
    $region90: #{tpu_custom_call.1} parent=1 // pred_check
      _
    $region91: #{tpu_custom_call.1} parent=1 // pred_check_branch
      %168 = sbr.rel (0) target = $region93
    $region92: #{tpu_custom_call.1} parent=1 // pred_region
      %169 = dma.done [#allocation12], 1024
    $region93: #{tpu_custom_call.1} parent=1 // pred_fallthru
      _
    // Predicated region
    $region94: #{tpu_custom_call.1} parent=1 // pred_check
      _
    $region95: #{tpu_custom_call.1} parent=1 // pred_check_branch
      %171 = sbr.rel (0) target = $region97
    $region96: #{tpu_custom_call.1} parent=1 // pred_region
      %172 = dma.done [#allocation12], 1024
    $region97: #{tpu_custom_call.1} parent=1 // pred_fallthru
      _
    // Predicated region
    $region98: #{tpu_custom_call.1} parent=1 // pred_check
      _
    $region99: #{tpu_custom_call.1} parent=1 // pred_check_branch
      %174 = sbr.rel (0) target = $region101
    $region100: #{tpu_custom_call.1} parent=1 // pred_region
      %175 = dma.done [#allocation15], 1024
    $region101: #{tpu_custom_call.1} parent=1 // pred_fallthru
      _
    // Predicated region
    $region102: #{tpu_custom_call.1} parent=1 // pred_check
      _
    $region103: #{tpu_custom_call.1} parent=1 // pred_check_branch
      %177 = sbr.rel (0) target = $region105
    $region104: #{tpu_custom_call.1} parent=1 // pred_region
      %178 = dma.done [#allocation15], 1024
    $region105: #{tpu_custom_call.1} parent=1 // pred_fallthru
      _
    %v180 = vld [vmem:[#allocation2] sm:$0xf]
    %v181 = vld [vmem:[#allocation2 + $0x4] sm:$0xf]
    %v182 = vld [vmem:[#allocation2 + $0x8] sm:$0xf]
    %v183 = vld [vmem:[#allocation2 + $0xc] sm:$0xf]
    %v184 = vld [vmem:[#allocation2 + $0x10] sm:$0xf]
    %v185 = vld [vmem:[#allocation2 + $0x14] sm:$0xf]
    %v186 = vld [vmem:[#allocation2 + $0x18] sm:$0xf]
    %v187 = vld [vmem:[#allocation2 + $0x1c] sm:$0xf]
    %v188 = vld [vmem:[#allocation2 + $0x20] sm:$0xf]
    %v189 = vld [vmem:[#allocation2 + $0x24] sm:$0xf]
    %v190 = vld [vmem:[#allocation2 + $0x28] sm:$0xf]
    %v191 = vld [vmem:[#allocation2 + $0x2c] sm:$0xf]
    %v192 = vld [vmem:[#allocation2 + $0x30] sm:$0xf]
    %v193 = vld [vmem:[#allocation2 + $0x34] sm:$0xf]
    %v194 = vld [vmem:[#allocation2 + $0x38] sm:$0xf]
    %v195 = vld [vmem:[#allocation2 + $0x3c] sm:$0xf]
    %v196 = vld [vmem:[#allocation2 + $0x40] sm:$0xf]
    %v197 = vld [vmem:[#allocation2 + $0x44] sm:$0xf]
    %v198 = vld [vmem:[#allocation2 + $0x48] sm:$0xf]
    %v199 = vld [vmem:[#allocation2 + $0x4c] sm:$0xf]
    %v200 = vld [vmem:[#allocation2 + $0x50] sm:$0xf]
    %v201 = vld [vmem:[#allocation2 + $0x54] sm:$0xf]
    %v202 = vld [vmem:[#allocation2 + $0x58] sm:$0xf]
    %v203 = vld [vmem:[#allocation2 + $0x5c] sm:$0xf]
    %v204 = vld [vmem:[#allocation2 + $0x60] sm:$0xf]
    %v205 = vld [vmem:[#allocation2 + $0x64] sm:$0xf]
    %v206 = vld [vmem:[#allocation2 + $0x68] sm:$0xf]
    %v207 = vld [vmem:[#allocation2 + $0x6c] sm:$0xf]
    %v208 = vld [vmem:[#allocation2 + $0x70] sm:$0xf]
    %v209 = vld [vmem:[#allocation2 + $0x74] sm:$0xf]
    %v210 = vld [vmem:[#allocation2 + $0x78] sm:$0xf]
    %v211 = vld [vmem:[#allocation2 + $0x7c] sm:$0xf]
    %v212 = vld [vmem:[#allocation2 + $0x80] sm:$0xf]
    %v213 = vld [vmem:[#allocation2 + $0x84] sm:$0xf]
    %v214 = vld [vmem:[#allocation2 + $0x88] sm:$0xf]
    %v215 = vld [vmem:[#allocation2 + $0x8c] sm:$0xf]
    %v216 = vld [vmem:[#allocation2 + $0x90] sm:$0xf]
    %v217 = vld [vmem:[#allocation2 + $0x94] sm:$0xf]
    %v218 = vld [vmem:[#allocation2 + $0x98] sm:$0xf]
    %v219 = vld [vmem:[#allocation2 + $0x9c] sm:$0xf]
    %v220 = vld [vmem:[#allocation2 + $0xa0] sm:$0xf]
    %v221 = vld [vmem:[#allocation2 + $0xa4] sm:$0xf]
    %v222 = vld [vmem:[#allocation2 + $0xa8] sm:$0xf]
    %v223 = vld [vmem:[#allocation2 + $0xac] sm:$0xf]
    %v224 = vld [vmem:[#allocation2 + $0xb0] sm:$0xf]
    %v225 = vld [vmem:[#allocation2 + $0xb4] sm:$0xf]
    %v226 = vld [vmem:[#allocation2 + $0xb8] sm:$0xf]
    %v227 = vld [vmem:[#allocation2 + $0xbc] sm:$0xf]
    %v228 = vld [vmem:[#allocation2 + $0xc0] sm:$0xf]
    %v229 = vld [vmem:[#allocation2 + $0xc4] sm:$0xf]
    %v230 = vld [vmem:[#allocation2 + $0xc8] sm:$0xf]
    %v231 = vld [vmem:[#allocation2 + $0xcc] sm:$0xf]
    %v232 = vld [vmem:[#allocation2 + $0xd0] sm:$0xf]
    %v233 = vld [vmem:[#allocation2 + $0xd4] sm:$0xf]
    %v234 = vld [vmem:[#allocation2 + $0xd8] sm:$0xf]
    %v235 = vld [vmem:[#allocation2 + $0xdc] sm:$0xf]
    %v236 = vld [vmem:[#allocation2 + $0xe0] sm:$0xf]
    %v237 = vld [vmem:[#allocation2 + $0xe4] sm:$0xf]
    %v238 = vld [vmem:[#allocation2 + $0xe8] sm:$0xf]
    %v239 = vld [vmem:[#allocation2 + $0xec] sm:$0xf]
    %v240 = vld [vmem:[#allocation2 + $0xf0] sm:$0xf]
    %v241 = vld [vmem:[#allocation2 + $0xf4] sm:$0xf]
    %v242 = vld [vmem:[#allocation2 + $0xf8] sm:$0xf]
    %v243 = vld [vmem:[#allocation2 + $0xfc] sm:$0xf]
    %v244 = vld [vmem:[#allocation5] sm:$0xf]
    %v245 = vld [vmem:[#allocation5 + $0x4] sm:$0xf]
    %v246 = vld [vmem:[#allocation5 + $0x8] sm:$0xf]
    %v247 = vld [vmem:[#allocation5 + $0xc] sm:$0xf]
    %v248 = vld [vmem:[#allocation5 + $0x10] sm:$0xf]
    %v249 = vld [vmem:[#allocation5 + $0x14] sm:$0xf]
    %v250 = vld [vmem:[#allocation5 + $0x18] sm:$0xf]
    %v251 = vld [vmem:[#allocation5 + $0x1c] sm:$0xf]
    %v252 = vld [vmem:[#allocation5 + $0x20] sm:$0xf]
    %v253 = vld [vmem:[#allocation5 + $0x24] sm:$0xf]
    %v254 = vld [vmem:[#allocation5 + $0x28] sm:$0xf]
    %v255 = vld [vmem:[#allocation5 + $0x2c] sm:$0xf]
    %v256 = vld [vmem:[#allocation5 + $0x30] sm:$0xf]
    %v257 = vld [vmem:[#allocation5 + $0x34] sm:$0xf]
    %v258 = vld [vmem:[#allocation5 + $0x38] sm:$0xf]
    %v259 = vld [vmem:[#allocation5 + $0x3c] sm:$0xf]
    %v260 = vld [vmem:[%s2] sm:$0x1]
    %v262 = vlaneseq
    %v263 = vshrl.u32 %v262, 7
    %v264 = vsub.s32 0, %v263
    %v265 = vrot.slane %v260, %v264
    %v331 = vunpack.c.l.b16 %v180
    %v332 = vunpack.c.l.b16 %v181
    %v333 = vunpack.c.l.b16 %v182
    %v334 = vunpack.c.l.b16 %v183
    %v335 = vunpack.c.l.b16 %v184
    %v336 = vunpack.c.l.b16 %v185
    %v337 = vunpack.c.l.b16 %v186
    %v338 = vunpack.c.l.b16 %v187
    %v339 = vunpack.c.l.b16 %v188
    %v340 = vunpack.c.l.b16 %v189
    %v341 = vunpack.c.l.b16 %v190
    %v342 = vunpack.c.l.b16 %v191
    %v343 = vunpack.c.l.b16 %v192
    %v344 = vunpack.c.l.b16 %v193
    %v345 = vunpack.c.l.b16 %v194
    %v346 = vunpack.c.l.b16 %v195
    %v347 = vunpack.c.l.b16 %v196
    %v348 = vunpack.c.l.b16 %v197
    %v349 = vunpack.c.l.b16 %v198
    %v350 = vunpack.c.l.b16 %v199
    %v351 = vunpack.c.l.b16 %v200
    %v352 = vunpack.c.l.b16 %v201
    %v353 = vunpack.c.l.b16 %v202
    %v354 = vunpack.c.l.b16 %v203
    %v355 = vunpack.c.l.b16 %v204
    %v356 = vunpack.c.l.b16 %v205
    %v357 = vunpack.c.l.b16 %v206
    %v358 = vunpack.c.l.b16 %v207
    %v359 = vunpack.c.l.b16 %v208
    %v360 = vunpack.c.l.b16 %v209
    %v361 = vunpack.c.l.b16 %v210
    %v362 = vunpack.c.l.b16 %v211
    %v363 = vunpack.c.l.b16 %v212
    %v364 = vunpack.c.l.b16 %v213
    %v365 = vunpack.c.l.b16 %v214
    %v366 = vunpack.c.l.b16 %v215
    %v367 = vunpack.c.l.b16 %v216
    %v368 = vunpack.c.l.b16 %v217
    %v369 = vunpack.c.l.b16 %v218
    %v370 = vunpack.c.l.b16 %v219
    %v371 = vunpack.c.l.b16 %v220
    %v372 = vunpack.c.l.b16 %v221
    %v373 = vunpack.c.l.b16 %v222
    %v374 = vunpack.c.l.b16 %v223
    %v375 = vunpack.c.l.b16 %v224
    %v376 = vunpack.c.l.b16 %v225
    %v377 = vunpack.c.l.b16 %v226
    %v378 = vunpack.c.l.b16 %v227
    %v379 = vunpack.c.l.b16 %v228
    %v380 = vunpack.c.l.b16 %v229
    %v381 = vunpack.c.l.b16 %v230
    %v382 = vunpack.c.l.b16 %v231
    %v383 = vunpack.c.l.b16 %v232
    %v384 = vunpack.c.l.b16 %v233
    %v385 = vunpack.c.l.b16 %v234
    %v386 = vunpack.c.l.b16 %v235
    %v387 = vunpack.c.l.b16 %v236
    %v388 = vunpack.c.l.b16 %v237
    %v389 = vunpack.c.l.b16 %v238
    %v390 = vunpack.c.l.b16 %v239
    %v391 = vunpack.c.l.b16 %v240
    %v392 = vunpack.c.l.b16 %v241
    %v393 = vunpack.c.l.b16 %v242
    %v394 = vunpack.c.l.b16 %v243
    %v395 = vpack.c.b16 %v332, %v331
    %v396 = vpack.c.b16 %v334, %v333
    %v397 = vpack.c.b16 %v336, %v335
    %v398 = vpack.c.b16 %v338, %v337
    %v399 = vpack.c.b16 %v340, %v339
    %v400 = vpack.c.b16 %v342, %v341
    %v401 = vpack.c.b16 %v344, %v343
    %v402 = vpack.c.b16 %v346, %v345
    %v403 = vpack.c.b16 %v348, %v347
    %v404 = vpack.c.b16 %v350, %v349
    %v405 = vpack.c.b16 %v352, %v351
    %v406 = vpack.c.b16 %v354, %v353
    %v407 = vpack.c.b16 %v356, %v355
    %v408 = vpack.c.b16 %v358, %v357
    %v409 = vpack.c.b16 %v360, %v359
    %v410 = vpack.c.b16 %v362, %v361
    %v411 = vpack.c.b16 %v364, %v363
    %v412 = vpack.c.b16 %v366, %v365
    %v413 = vpack.c.b16 %v368, %v367
    %v414 = vpack.c.b16 %v370, %v369
    %v415 = vpack.c.b16 %v372, %v371
    %v416 = vpack.c.b16 %v374, %v373
    %v417 = vpack.c.b16 %v376, %v375
    %v418 = vpack.c.b16 %v378, %v377
    %v419 = vpack.c.b16 %v380, %v379
    %v420 = vpack.c.b16 %v382, %v381
    %v421 = vpack.c.b16 %v384, %v383
    %v422 = vpack.c.b16 %v386, %v385
    %v423 = vpack.c.b16 %v388, %v387
    %v424 = vpack.c.b16 %v390, %v389
    %v425 = vpack.c.b16 %v392, %v391
    %v426 = vpack.c.b16 %v394, %v393
    %v475 = vunpack.c.l.b16 %v244
    %v476 = vunpack.c.l.b16 %v245
    %v477 = vunpack.c.l.b16 %v246
    %v478 = vunpack.c.l.b16 %v247
    %v479 = vunpack.c.l.b16 %v248
    %v480 = vunpack.c.l.b16 %v249
    %v481 = vunpack.c.l.b16 %v250
    %v482 = vunpack.c.l.b16 %v251
    %v483 = vunpack.c.l.b16 %v252
    %v484 = vunpack.c.l.b16 %v253
    %v485 = vunpack.c.l.b16 %v254
    %v486 = vunpack.c.l.b16 %v255
    %v487 = vunpack.c.l.b16 %v256
    %v488 = vunpack.c.l.b16 %v257
    %v489 = vunpack.c.l.b16 %v258
    %v490 = vunpack.c.l.b16 %v259
    %v491 = vpack.c.b16 %v476, %v475
    %v492 = vpack.c.b16 %v478, %v477
    %v493 = vpack.c.b16 %v480, %v479
    %v494 = vpack.c.b16 %v482, %v481
    %v495 = vpack.c.b16 %v484, %v483
    %v496 = vpack.c.b16 %v486, %v485
    %v497 = vpack.c.b16 %v488, %v487
    %v498 = vpack.c.b16 %v490, %v489
    %507 = vmatprep.subr.bf16.mxu0 0
    %508 = vmatpush1.bf16.msra.mxu0 %v498
    %509 = vmatprep.subr.bf16.mxu0 0
    %510 = vmatpush1.bf16.msra.mxu0 %v497
    %511 = vmatprep.subr.bf16.mxu0 0
    %512 = vmatpush1.bf16.msra.mxu0 %v496
    %513 = vmatprep.subr.bf16.mxu0 0
    %514 = vmatpush1.bf16.msra.mxu0 %v495
    %515 = vmatprep.subr.bf16.mxu0 0
    %516 = vmatpush1.bf16.msra.mxu0 %v494
    %517 = vmatprep.subr.bf16.mxu0 0
    %518 = vmatpush1.bf16.msra.mxu0 %v493
    %519 = vmatprep.subr.bf16.mxu0 0
    %520 = vmatpush1.bf16.msra.mxu0 %v492
    %521 = vmatprep.subr.bf16.mxu0 0
    %522 = vmatpush1.bf16.msra.mxu0 %v491
    %523 = vmatprep.subr.bf16.mxu0 0
    %524 = vmatpush2.bf16.msra.mxu0 0
    %525 = vmatprep.subr.bf16.mxu0 0
    %526 = vmatpush2.bf16.msra.mxu0 0
    %527 = vmatprep.subr.bf16.mxu0 0
    %528 = vmatpush2.bf16.msra.mxu0 0
    %529 = vmatprep.subr.bf16.mxu0 0
    %530 = vmatpush2.bf16.msra.mxu0 0
    %531 = vmatprep.subr.bf16.mxu0 0
    %532 = vmatpush2.bf16.msra.mxu0 0
    %533 = vmatprep.subr.bf16.mxu0 0
    %534 = vmatpush2.bf16.msra.mxu0 0
    %535 = vmatprep.subr.bf16.mxu0 0
    %536 = vmatpush2.bf16.msra.mxu0 0
    %537 = vmatprep.subr.bf16.mxu0 0
    %538 = vmatpush2.bf16.msra.mxu0 0
    %539 = vmatprep.mubr.bf16.mxu0 0
    %540 = vmatmul.mubr.bf16.gmra.mxu0 %v395
    %v541 = vpop.f32.mrf.mxu0
    %v542 = vadd.f32 %v265, %v541
    %v543 = vpop.f32.mrf.mxu0
    %v544 = vpop.f32.mrf.mxu0
    %v545 = vadd.f32 %v265, %v544
    %v546 = vpop.f32.mrf.mxu0
    %547 = vmatprep.mubr.bf16.mxu0 0
    %548 = vmatmul.mubr.bf16.gmra.mxu0 %v396
    %v549 = vpop.f32.mrf.mxu0
    %v550 = vadd.f32 %v265, %v549
    %v551 = vpop.f32.mrf.mxu0
    %v552 = vpop.f32.mrf.mxu0
    %v553 = vadd.f32 %v265, %v552
    %v554 = vpop.f32.mrf.mxu0
    %555 = vmatprep.mubr.bf16.mxu0 0
    %556 = vmatmul.mubr.bf16.gmra.mxu0 %v397
    %v557 = vpop.f32.mrf.mxu0
    %v558 = vadd.f32 %v265, %v557
    %v559 = vpop.f32.mrf.mxu0
    %v560 = vpop.f32.mrf.mxu0
    %v561 = vadd.f32 %v265, %v560
    %v562 = vpop.f32.mrf.mxu0
    %563 = vmatprep.mubr.bf16.mxu0 0
    %564 = vmatmul.mubr.bf16.gmra.mxu0 %v398
    %v565 = vpop.f32.mrf.mxu0
    %v566 = vadd.f32 %v265, %v565
    %v567 = vpop.f32.mrf.mxu0
    %v568 = vpop.f32.mrf.mxu0
    %v569 = vadd.f32 %v265, %v568
    %v570 = vpop.f32.mrf.mxu0
    %571 = vmatprep.mubr.bf16.mxu0 0
    %572 = vmatmul.mubr.bf16.gmra.mxu0 %v399
    %v573 = vpop.f32.mrf.mxu0
    %v574 = vadd.f32 %v265, %v573
    %v575 = vpop.f32.mrf.mxu0
    %v576 = vpop.f32.mrf.mxu0
    %v577 = vadd.f32 %v265, %v576
    %v578 = vpop.f32.mrf.mxu0
    %579 = vmatprep.mubr.bf16.mxu0 0
    %580 = vmatmul.mubr.bf16.gmra.mxu0 %v400
    %v581 = vpop.f32.mrf.mxu0
    %v582 = vadd.f32 %v265, %v581
    %v583 = vpop.f32.mrf.mxu0
    %v584 = vpop.f32.mrf.mxu0
    %v585 = vadd.f32 %v265, %v584
    %v586 = vpop.f32.mrf.mxu0
    %587 = vmatprep.mubr.bf16.mxu0 0
    %588 = vmatmul.mubr.bf16.gmra.mxu0 %v401
    %v589 = vpop.f32.mrf.mxu0
    %v590 = vadd.f32 %v265, %v589
    %v591 = vpop.f32.mrf.mxu0
    %v592 = vpop.f32.mrf.mxu0
    %v593 = vadd.f32 %v265, %v592
    %v594 = vpop.f32.mrf.mxu0
    %595 = vmatprep.mubr.bf16.mxu0 0
    %596 = vmatmul.mubr.bf16.gmra.mxu0 %v402
    %v597 = vpop.f32.mrf.mxu0
    %v598 = vadd.f32 %v265, %v597
    %v599 = vpop.f32.mrf.mxu0
    %v600 = vpop.f32.mrf.mxu0
    %v601 = vadd.f32 %v265, %v600
    %v602 = vpop.f32.mrf.mxu0
    %603 = vmatprep.mubr.bf16.mxu0 0
    %604 = vmatmul.mubr.bf16.gmra.mxu0 %v403
    %v605 = vpop.f32.mrf.mxu0
    %v606 = vadd.f32 %v265, %v605
    %v607 = vpop.f32.mrf.mxu0
    %v608 = vpop.f32.mrf.mxu0
    %v609 = vadd.f32 %v265, %v608
    %v610 = vpop.f32.mrf.mxu0
    %611 = vmatprep.mubr.bf16.mxu0 0
    %612 = vmatmul.mubr.bf16.gmra.mxu0 %v404
    %v613 = vpop.f32.mrf.mxu0
    %v614 = vadd.f32 %v265, %v613
    %v615 = vpop.f32.mrf.mxu0
    %v616 = vpop.f32.mrf.mxu0
    %v617 = vadd.f32 %v265, %v616
    %v618 = vpop.f32.mrf.mxu0
    %619 = vmatprep.mubr.bf16.mxu0 0
    %620 = vmatmul.mubr.bf16.gmra.mxu0 %v405
    %v621 = vpop.f32.mrf.mxu0
    %v622 = vadd.f32 %v265, %v621
    %v623 = vpop.f32.mrf.mxu0
    %v624 = vpop.f32.mrf.mxu0
    %v625 = vadd.f32 %v265, %v624
    %v626 = vpop.f32.mrf.mxu0
    %627 = vmatprep.mubr.bf16.mxu0 0
    %628 = vmatmul.mubr.bf16.gmra.mxu0 %v406
    %v629 = vpop.f32.mrf.mxu0
    %v630 = vadd.f32 %v265, %v629
    %v631 = vpop.f32.mrf.mxu0
    %v632 = vpop.f32.mrf.mxu0
    %v633 = vadd.f32 %v265, %v632
    %v634 = vpop.f32.mrf.mxu0
    %635 = vmatprep.mubr.bf16.mxu0 0
    %636 = vmatmul.mubr.bf16.gmra.mxu0 %v407
    %v637 = vpop.f32.mrf.mxu0
    %v638 = vadd.f32 %v265, %v637
    %v639 = vpop.f32.mrf.mxu0
    %v640 = vpop.f32.mrf.mxu0
    %v641 = vadd.f32 %v265, %v640
    %v642 = vpop.f32.mrf.mxu0
    %643 = vmatprep.mubr.bf16.mxu0 0
    %644 = vmatmul.mubr.bf16.gmra.mxu0 %v408
    %v645 = vpop.f32.mrf.mxu0
    %v646 = vadd.f32 %v265, %v645
    %v647 = vpop.f32.mrf.mxu0
    %v648 = vpop.f32.mrf.mxu0
    %v649 = vadd.f32 %v265, %v648
    %v650 = vpop.f32.mrf.mxu0
    %651 = vmatprep.mubr.bf16.mxu0 0
    %652 = vmatmul.mubr.bf16.gmra.mxu0 %v409
    %v653 = vpop.f32.mrf.mxu0
    %v654 = vadd.f32 %v265, %v653
    %v655 = vpop.f32.mrf.mxu0
    %v656 = vpop.f32.mrf.mxu0
    %v657 = vadd.f32 %v265, %v656
    %v658 = vpop.f32.mrf.mxu0
    %659 = vmatprep.mubr.bf16.mxu0 0
    %660 = vmatmul.mubr.bf16.gmra.mxu0 %v410
    %v661 = vpop.f32.mrf.mxu0
    %v662 = vadd.f32 %v265, %v661
    %v663 = vpop.f32.mrf.mxu0
    %v664 = vpop.f32.mrf.mxu0
    %v665 = vadd.f32 %v265, %v664
    %v666 = vpop.f32.mrf.mxu0
    %667 = vmatprep.mubr.bf16.mxu0 0
    %668 = vmatmul.mubr.bf16.gmra.mxu0 %v411
    %v669 = vpop.f32.mrf.mxu0
    %v670 = vadd.f32 %v265, %v669
    %v671 = vpop.f32.mrf.mxu0
    %v672 = vpop.f32.mrf.mxu0
    %v673 = vadd.f32 %v265, %v672
    %v674 = vpop.f32.mrf.mxu0
    %675 = vmatprep.mubr.bf16.mxu0 0
    %676 = vmatmul.mubr.bf16.gmra.mxu0 %v412
    %v677 = vpop.f32.mrf.mxu0
    %v678 = vadd.f32 %v265, %v677
    %v679 = vpop.f32.mrf.mxu0
    %v680 = vpop.f32.mrf.mxu0
    %v681 = vadd.f32 %v265, %v680
    %v682 = vpop.f32.mrf.mxu0
    %683 = vmatprep.mubr.bf16.mxu0 0
    %684 = vmatmul.mubr.bf16.gmra.mxu0 %v413
    %v685 = vpop.f32.mrf.mxu0
    %v686 = vadd.f32 %v265, %v685
    %v687 = vpop.f32.mrf.mxu0
    %v688 = vpop.f32.mrf.mxu0
    %v689 = vadd.f32 %v265, %v688
    %v690 = vpop.f32.mrf.mxu0
    %691 = vmatprep.mubr.bf16.mxu0 0
    %692 = vmatmul.mubr.bf16.gmra.mxu0 %v414
    %v693 = vpop.f32.mrf.mxu0
    %v694 = vadd.f32 %v265, %v693
    %v695 = vpop.f32.mrf.mxu0
    %v696 = vpop.f32.mrf.mxu0
    %v697 = vadd.f32 %v265, %v696
    %v698 = vpop.f32.mrf.mxu0
    %699 = vmatprep.mubr.bf16.mxu0 0
    %700 = vmatmul.mubr.bf16.gmra.mxu0 %v415
    %v701 = vpop.f32.mrf.mxu0
    %v702 = vadd.f32 %v265, %v701
    %v703 = vpop.f32.mrf.mxu0
    %v704 = vpop.f32.mrf.mxu0
    %v705 = vadd.f32 %v265, %v704
    %v706 = vpop.f32.mrf.mxu0
    %707 = vmatprep.mubr.bf16.mxu0 0
    %708 = vmatmul.mubr.bf16.gmra.mxu0 %v416
    %v709 = vpop.f32.mrf.mxu0
    %v710 = vadd.f32 %v265, %v709
    %v711 = vpop.f32.mrf.mxu0
    %v712 = vpop.f32.mrf.mxu0
    %v713 = vadd.f32 %v265, %v712
    %v714 = vpop.f32.mrf.mxu0
    %715 = vmatprep.mubr.bf16.mxu0 0
    %716 = vmatmul.mubr.bf16.gmra.mxu0 %v417
    %v717 = vpop.f32.mrf.mxu0
    %v718 = vadd.f32 %v265, %v717
    %v719 = vpop.f32.mrf.mxu0
    %v720 = vpop.f32.mrf.mxu0
    %v721 = vadd.f32 %v265, %v720
    %v722 = vpop.f32.mrf.mxu0
    %723 = vmatprep.mubr.bf16.mxu0 0
    %724 = vmatmul.mubr.bf16.gmra.mxu0 %v418
    %v725 = vpop.f32.mrf.mxu0
    %v726 = vadd.f32 %v265, %v725
    %v727 = vpop.f32.mrf.mxu0
    %v728 = vpop.f32.mrf.mxu0
    %v729 = vadd.f32 %v265, %v728
    %v730 = vpop.f32.mrf.mxu0
    %731 = vmatprep.mubr.bf16.mxu0 0
    %732 = vmatmul.mubr.bf16.gmra.mxu0 %v419
    %v733 = vpop.f32.mrf.mxu0
    %v734 = vadd.f32 %v265, %v733
    %v735 = vpop.f32.mrf.mxu0
    %v736 = vpop.f32.mrf.mxu0
    %v737 = vadd.f32 %v265, %v736
    %v738 = vpop.f32.mrf.mxu0
    %739 = vmatprep.mubr.bf16.mxu0 0
    %740 = vmatmul.mubr.bf16.gmra.mxu0 %v420
    %v741 = vpop.f32.mrf.mxu0
    %v742 = vadd.f32 %v265, %v741
    %v743 = vpop.f32.mrf.mxu0
    %v744 = vpop.f32.mrf.mxu0
    %v745 = vadd.f32 %v265, %v744
    %v746 = vpop.f32.mrf.mxu0
    %747 = vmatprep.mubr.bf16.mxu0 0
    %748 = vmatmul.mubr.bf16.gmra.mxu0 %v421
    %v749 = vpop.f32.mrf.mxu0
    %v750 = vadd.f32 %v265, %v749
    %v751 = vpop.f32.mrf.mxu0
    %v752 = vpop.f32.mrf.mxu0
    %v753 = vadd.f32 %v265, %v752
    %v754 = vpop.f32.mrf.mxu0
    %755 = vmatprep.mubr.bf16.mxu0 0
    %756 = vmatmul.mubr.bf16.gmra.mxu0 %v422
    %v757 = vpop.f32.mrf.mxu0
    %v758 = vadd.f32 %v265, %v757
    %v759 = vpop.f32.mrf.mxu0
    %v760 = vpop.f32.mrf.mxu0
    %v761 = vadd.f32 %v265, %v760
    %v762 = vpop.f32.mrf.mxu0
    %763 = vmatprep.mubr.bf16.mxu0 0
    %764 = vmatmul.mubr.bf16.gmra.mxu0 %v423
    %v765 = vpop.f32.mrf.mxu0
    %v766 = vadd.f32 %v265, %v765
    %v767 = vpop.f32.mrf.mxu0
    %v768 = vpop.f32.mrf.mxu0
    %v769 = vadd.f32 %v265, %v768
    %v770 = vpop.f32.mrf.mxu0
    %771 = vmatprep.mubr.bf16.mxu0 0
    %772 = vmatmul.mubr.bf16.gmra.mxu0 %v424
    %v773 = vpop.f32.mrf.mxu0
    %v774 = vadd.f32 %v265, %v773
    %v775 = vpop.f32.mrf.mxu0
    %v776 = vpop.f32.mrf.mxu0
    %v777 = vadd.f32 %v265, %v776
    %v778 = vpop.f32.mrf.mxu0
    %779 = vmatprep.mubr.bf16.mxu0 0
    %780 = vmatmul.mubr.bf16.gmra.mxu0 %v425
    %v781 = vpop.f32.mrf.mxu0
    %v782 = vadd.f32 %v265, %v781
    %v783 = vpop.f32.mrf.mxu0
    %v784 = vpop.f32.mrf.mxu0
    %v785 = vadd.f32 %v265, %v784
    %v786 = vpop.f32.mrf.mxu0
    %787 = vmatprep.mubr.bf16.mxu0 0
    %788 = vmatmul.mubr.bf16.gmra.mxu0 %v426
    %v789 = vpop.f32.mrf.mxu0
    %v790 = vadd.f32 %v265, %v789
    %v791 = vpop.f32.mrf.mxu0
    %v792 = vpop.f32.mrf.mxu0
    %v793 = vadd.f32 %v265, %v792
    %v794 = vpop.f32.mrf.mxu0
    %795 = vdwg.mxu0
    %v796 = vpack.c.bf16 %v545, %v542
    %v797 = vpack.c.bf16 %v553, %v550
    %v798 = vpack.c.bf16 %v561, %v558
    %v799 = vpack.c.bf16 %v569, %v566
    %v800 = vpack.c.bf16 %v577, %v574
    %v801 = vpack.c.bf16 %v585, %v582
    %v802 = vpack.c.bf16 %v593, %v590
    %v803 = vpack.c.bf16 %v601, %v598
    %v804 = vpack.c.bf16 %v609, %v606
    %v805 = vpack.c.bf16 %v617, %v614
    %v806 = vpack.c.bf16 %v625, %v622
    %v807 = vpack.c.bf16 %v633, %v630
    %v808 = vpack.c.bf16 %v641, %v638
    %v809 = vpack.c.bf16 %v649, %v646
    %v810 = vpack.c.bf16 %v657, %v654
    %v811 = vpack.c.bf16 %v665, %v662
    %v812 = vpack.c.bf16 %v673, %v670
    %v813 = vpack.c.bf16 %v681, %v678
    %v814 = vpack.c.bf16 %v689, %v686
    %v815 = vpack.c.bf16 %v697, %v694
    %v816 = vpack.c.bf16 %v705, %v702
    %v817 = vpack.c.bf16 %v713, %v710
    %v818 = vpack.c.bf16 %v721, %v718
    %v819 = vpack.c.bf16 %v729, %v726
    %v820 = vpack.c.bf16 %v737, %v734
    %v821 = vpack.c.bf16 %v745, %v742
    %v822 = vpack.c.bf16 %v753, %v750
    %v823 = vpack.c.bf16 %v761, %v758
    %v824 = vpack.c.bf16 %v769, %v766
    %v825 = vpack.c.bf16 %v777, %v774
    %v826 = vpack.c.bf16 %v785, %v782
    %v827 = vpack.c.bf16 %v793, %v790
    %v828 = vmax.bf16 %v796, 0
    %v829 = vmax.bf16 %v797, 0
    %v830 = vmax.bf16 %v798, 0
    %v831 = vmax.bf16 %v799, 0
    %v832 = vmax.bf16 %v800, 0
    %v833 = vmax.bf16 %v801, 0
    %v834 = vmax.bf16 %v802, 0
    %v835 = vmax.bf16 %v803, 0
    %v836 = vmax.bf16 %v804, 0
    %v837 = vmax.bf16 %v805, 0
    %v838 = vmax.bf16 %v806, 0
    %v839 = vmax.bf16 %v807, 0
    %v840 = vmax.bf16 %v808, 0
    %v841 = vmax.bf16 %v809, 0
    %v842 = vmax.bf16 %v810, 0
    %v843 = vmax.bf16 %v811, 0
    %v844 = vmax.bf16 %v812, 0
    %v845 = vmax.bf16 %v813, 0
    %v846 = vmax.bf16 %v814, 0
    %v847 = vmax.bf16 %v815, 0
    %v848 = vmax.bf16 %v816, 0
    %v849 = vmax.bf16 %v817, 0
    %v850 = vmax.bf16 %v818, 0
    %v851 = vmax.bf16 %v819, 0
    %v852 = vmax.bf16 %v820, 0
    %v853 = vmax.bf16 %v821, 0
    %v854 = vmax.bf16 %v822, 0
    %v855 = vmax.bf16 %v823, 0
    %v856 = vmax.bf16 %v824, 0
    %v857 = vmax.bf16 %v825, 0
    %v858 = vmax.bf16 %v826, 0
    %v859 = vmax.bf16 %v827, 0
    %v860 = vld [vmem:[#allocation7] sm:$0xf]
    %v861 = vld [vmem:[#allocation7 + $0x4] sm:$0xf]
    %v862 = vld [vmem:[#allocation7 + $0x8] sm:$0xf]
    %v863 = vld [vmem:[#allocation7 + $0xc] sm:$0xf]
    %v864 = vld [vmem:[#allocation7 + $0x10] sm:$0xf]
    %v865 = vld [vmem:[#allocation7 + $0x14] sm:$0xf]
    %v866 = vld [vmem:[#allocation7 + $0x18] sm:$0xf]
    %v867 = vld [vmem:[#allocation7 + $0x1c] sm:$0xf]
    %v868 = vld [vmem:[#allocation7 + $0x20] sm:$0xf]
    %v869 = vld [vmem:[#allocation7 + $0x24] sm:$0xf]
    %v870 = vld [vmem:[#allocation7 + $0x28] sm:$0xf]
    %v871 = vld [vmem:[#allocation7 + $0x2c] sm:$0xf]
    %v872 = vld [vmem:[#allocation7 + $0x30] sm:$0xf]
    %v873 = vld [vmem:[#allocation7 + $0x34] sm:$0xf]
    %v874 = vld [vmem:[#allocation7 + $0x38] sm:$0xf]
    %v875 = vld [vmem:[#allocation7 + $0x3c] sm:$0xf]
    %v876 = vld [vmem:[%s4] sm:$0x1]
    %v878 = vlaneseq
    %v879 = vshrl.u32 %v878, 7
    %v880 = vsub.s32 0, %v879
    %v881 = vrot.slane %v876, %v880
    %v899 = vunpack.c.l.b16 %v860
    %v900 = vunpack.c.l.b16 %v861
    %v901 = vunpack.c.l.b16 %v862
    %v902 = vunpack.c.l.b16 %v863
    %v903 = vunpack.c.l.b16 %v864
    %v904 = vunpack.c.l.b16 %v865
    %v905 = vunpack.c.l.b16 %v866
    %v906 = vunpack.c.l.b16 %v867
    %v907 = vunpack.c.l.b16 %v868
    %v908 = vunpack.c.l.b16 %v869
    %v909 = vunpack.c.l.b16 %v870
    %v910 = vunpack.c.l.b16 %v871
    %v911 = vunpack.c.l.b16 %v872
    %v912 = vunpack.c.l.b16 %v873
    %v913 = vunpack.c.l.b16 %v874
    %v914 = vunpack.c.l.b16 %v875
    %v915 = vpack.c.b16 %v900, %v899
    %v916 = vpack.c.b16 %v902, %v901
    %v917 = vpack.c.b16 %v904, %v903
    %v918 = vpack.c.b16 %v906, %v905
    %v919 = vpack.c.b16 %v908, %v907
    %v920 = vpack.c.b16 %v910, %v909
    %v921 = vpack.c.b16 %v912, %v911
    %v922 = vpack.c.b16 %v914, %v913
    %931 = vmatprep.subr.bf16.mxu0 0
    %932 = vmatpush1.bf16.msra.mxu0 %v922
    %933 = vmatprep.subr.bf16.mxu0 0
    %934 = vmatpush1.bf16.msra.mxu0 %v921
    %935 = vmatprep.subr.bf16.mxu0 0
    %936 = vmatpush1.bf16.msra.mxu0 %v920
    %937 = vmatprep.subr.bf16.mxu0 0
    %938 = vmatpush1.bf16.msra.mxu0 %v919
    %939 = vmatprep.subr.bf16.mxu0 0
    %940 = vmatpush1.bf16.msra.mxu0 %v918
    %941 = vmatprep.subr.bf16.mxu0 0
    %942 = vmatpush1.bf16.msra.mxu0 %v917
    %943 = vmatprep.subr.bf16.mxu0 0
    %944 = vmatpush1.bf16.msra.mxu0 %v916
    %945 = vmatprep.subr.bf16.mxu0 0
    %946 = vmatpush1.bf16.msra.mxu0 %v915
    %947 = vmatprep.subr.bf16.mxu0 0
    %948 = vmatpush2.bf16.msra.mxu0 0
    %949 = vmatprep.subr.bf16.mxu0 0
    %950 = vmatpush2.bf16.msra.mxu0 0
    %951 = vmatprep.subr.bf16.mxu0 0
    %952 = vmatpush2.bf16.msra.mxu0 0
    %953 = vmatprep.subr.bf16.mxu0 0
    %954 = vmatpush2.bf16.msra.mxu0 0
    %955 = vmatprep.subr.bf16.mxu0 0
    %956 = vmatpush2.bf16.msra.mxu0 0
    %957 = vmatprep.subr.bf16.mxu0 0
    %958 = vmatpush2.bf16.msra.mxu0 0
    %959 = vmatprep.subr.bf16.mxu0 0
    %960 = vmatpush2.bf16.msra.mxu0 0
    %961 = vmatprep.subr.bf16.mxu0 0
    %962 = vmatpush2.bf16.msra.mxu0 0
    %963 = vmatprep.mubr.bf16.mxu0 0
    %964 = vmatmul.mubr.bf16.gmra.mxu0 %v828
    %v965 = vpop.f32.mrf.mxu0
    %v966 = vadd.f32 %v881, %v965
    %v967 = vpop.f32.mrf.mxu0
    %v968 = vpop.f32.mrf.mxu0
    %v969 = vadd.f32 %v881, %v968
    %v970 = vpop.f32.mrf.mxu0
    %971 = vmatprep.mubr.bf16.mxu0 0
    %972 = vmatmul.mubr.bf16.gmra.mxu0 %v829
    %v973 = vpop.f32.mrf.mxu0
    %v974 = vadd.f32 %v881, %v973
    %v975 = vpop.f32.mrf.mxu0
    %v976 = vpop.f32.mrf.mxu0
    %v977 = vadd.f32 %v881, %v976
    %v978 = vpop.f32.mrf.mxu0
    %979 = vmatprep.mubr.bf16.mxu0 0
    %980 = vmatmul.mubr.bf16.gmra.mxu0 %v830
    %v981 = vpop.f32.mrf.mxu0
    %v982 = vadd.f32 %v881, %v981
    %v983 = vpop.f32.mrf.mxu0
    %v984 = vpop.f32.mrf.mxu0
    %v985 = vadd.f32 %v881, %v984
    %v986 = vpop.f32.mrf.mxu0
    %987 = vmatprep.mubr.bf16.mxu0 0
    %988 = vmatmul.mubr.bf16.gmra.mxu0 %v831
    %v989 = vpop.f32.mrf.mxu0
    %v990 = vadd.f32 %v881, %v989
    %v991 = vpop.f32.mrf.mxu0
    %v992 = vpop.f32.mrf.mxu0
    %v993 = vadd.f32 %v881, %v992
    %v994 = vpop.f32.mrf.mxu0
    %995 = vmatprep.mubr.bf16.mxu0 0
    %996 = vmatmul.mubr.bf16.gmra.mxu0 %v832
    %v997 = vpop.f32.mrf.mxu0
    %v998 = vadd.f32 %v881, %v997
    %v999 = vpop.f32.mrf.mxu0
    %v1000 = vpop.f32.mrf.mxu0
    %v1001 = vadd.f32 %v881, %v1000
    %v1002 = vpop.f32.mrf.mxu0
    %1003 = vmatprep.mubr.bf16.mxu0 0
    %1004 = vmatmul.mubr.bf16.gmra.mxu0 %v833
    %v1005 = vpop.f32.mrf.mxu0
    %v1006 = vadd.f32 %v881, %v1005
    %v1007 = vpop.f32.mrf.mxu0
    %v1008 = vpop.f32.mrf.mxu0
    %v1009 = vadd.f32 %v881, %v1008
    %v1010 = vpop.f32.mrf.mxu0
    %1011 = vmatprep.mubr.bf16.mxu0 0
    %1012 = vmatmul.mubr.bf16.gmra.mxu0 %v834
    %v1013 = vpop.f32.mrf.mxu0
    %v1014 = vadd.f32 %v881, %v1013
    %v1015 = vpop.f32.mrf.mxu0
    %v1016 = vpop.f32.mrf.mxu0
    %v1017 = vadd.f32 %v881, %v1016
    %v1018 = vpop.f32.mrf.mxu0
    %1019 = vmatprep.mubr.bf16.mxu0 0
    %1020 = vmatmul.mubr.bf16.gmra.mxu0 %v835
    %v1021 = vpop.f32.mrf.mxu0
    %v1022 = vadd.f32 %v881, %v1021
    %v1023 = vpop.f32.mrf.mxu0
    %v1024 = vpop.f32.mrf.mxu0
    %v1025 = vadd.f32 %v881, %v1024
    %v1026 = vpop.f32.mrf.mxu0
    %1027 = vmatprep.mubr.bf16.mxu0 0
    %1028 = vmatmul.mubr.bf16.gmra.mxu0 %v836
    %v1029 = vpop.f32.mrf.mxu0
    %v1030 = vadd.f32 %v881, %v1029
    %v1031 = vpop.f32.mrf.mxu0
    %v1032 = vpop.f32.mrf.mxu0
    %v1033 = vadd.f32 %v881, %v1032
    %v1034 = vpop.f32.mrf.mxu0
    %1035 = vmatprep.mubr.bf16.mxu0 0
    %1036 = vmatmul.mubr.bf16.gmra.mxu0 %v837
    %v1037 = vpop.f32.mrf.mxu0
    %v1038 = vadd.f32 %v881, %v1037
    %v1039 = vpop.f32.mrf.mxu0
    %v1040 = vpop.f32.mrf.mxu0
    %v1041 = vadd.f32 %v881, %v1040
    %v1042 = vpop.f32.mrf.mxu0
    %1043 = vmatprep.mubr.bf16.mxu0 0
    %1044 = vmatmul.mubr.bf16.gmra.mxu0 %v838
    %v1045 = vpop.f32.mrf.mxu0
    %v1046 = vadd.f32 %v881, %v1045
    %v1047 = vpop.f32.mrf.mxu0
    %v1048 = vpop.f32.mrf.mxu0
    %v1049 = vadd.f32 %v881, %v1048
    %v1050 = vpop.f32.mrf.mxu0
    %1051 = vmatprep.mubr.bf16.mxu0 0
    %1052 = vmatmul.mubr.bf16.gmra.mxu0 %v839
    %v1053 = vpop.f32.mrf.mxu0
    %v1054 = vadd.f32 %v881, %v1053
    %v1055 = vpop.f32.mrf.mxu0
    %v1056 = vpop.f32.mrf.mxu0
    %v1057 = vadd.f32 %v881, %v1056
    %v1058 = vpop.f32.mrf.mxu0
    %1059 = vmatprep.mubr.bf16.mxu0 0
    %1060 = vmatmul.mubr.bf16.gmra.mxu0 %v840
    %v1061 = vpop.f32.mrf.mxu0
    %v1062 = vadd.f32 %v881, %v1061
    %v1063 = vpop.f32.mrf.mxu0
    %v1064 = vpop.f32.mrf.mxu0
    %v1065 = vadd.f32 %v881, %v1064
    %v1066 = vpop.f32.mrf.mxu0
    %1067 = vmatprep.mubr.bf16.mxu0 0
    %1068 = vmatmul.mubr.bf16.gmra.mxu0 %v841
    %v1069 = vpop.f32.mrf.mxu0
    %v1070 = vadd.f32 %v881, %v1069
    %v1071 = vpop.f32.mrf.mxu0
    %v1072 = vpop.f32.mrf.mxu0
    %v1073 = vadd.f32 %v881, %v1072
    %v1074 = vpop.f32.mrf.mxu0
    %1075 = vmatprep.mubr.bf16.mxu0 0
    %1076 = vmatmul.mubr.bf16.gmra.mxu0 %v842
    %v1077 = vpop.f32.mrf.mxu0
    %v1078 = vadd.f32 %v881, %v1077
    %v1079 = vpop.f32.mrf.mxu0
    %v1080 = vpop.f32.mrf.mxu0
    %v1081 = vadd.f32 %v881, %v1080
    %v1082 = vpop.f32.mrf.mxu0
    %1083 = vmatprep.mubr.bf16.mxu0 0
    %1084 = vmatmul.mubr.bf16.gmra.mxu0 %v843
    %v1085 = vpop.f32.mrf.mxu0
    %v1086 = vadd.f32 %v881, %v1085
    %v1087 = vpop.f32.mrf.mxu0
    %v1088 = vpop.f32.mrf.mxu0
    %v1089 = vadd.f32 %v881, %v1088
    %v1090 = vpop.f32.mrf.mxu0
    %1091 = vmatprep.mubr.bf16.mxu0 0
    %1092 = vmatmul.mubr.bf16.gmra.mxu0 %v844
    %v1093 = vpop.f32.mrf.mxu0
    %v1094 = vadd.f32 %v881, %v1093
    %v1095 = vpop.f32.mrf.mxu0
    %v1096 = vpop.f32.mrf.mxu0
    %v1097 = vadd.f32 %v881, %v1096
    %v1098 = vpop.f32.mrf.mxu0
    %1099 = vmatprep.mubr.bf16.mxu0 0
    %1100 = vmatmul.mubr.bf16.gmra.mxu0 %v845
    %v1101 = vpop.f32.mrf.mxu0
    %v1102 = vadd.f32 %v881, %v1101
    %v1103 = vpop.f32.mrf.mxu0
    %v1104 = vpop.f32.mrf.mxu0
    %v1105 = vadd.f32 %v881, %v1104
    %v1106 = vpop.f32.mrf.mxu0
    %1107 = vmatprep.mubr.bf16.mxu0 0
    %1108 = vmatmul.mubr.bf16.gmra.mxu0 %v846
    %v1109 = vpop.f32.mrf.mxu0
    %v1110 = vadd.f32 %v881, %v1109
    %v1111 = vpop.f32.mrf.mxu0
    %v1112 = vpop.f32.mrf.mxu0
    %v1113 = vadd.f32 %v881, %v1112
    %v1114 = vpop.f32.mrf.mxu0
    %1115 = vmatprep.mubr.bf16.mxu0 0
    %1116 = vmatmul.mubr.bf16.gmra.mxu0 %v847
    %v1117 = vpop.f32.mrf.mxu0
    %v1118 = vadd.f32 %v881, %v1117
    %v1119 = vpop.f32.mrf.mxu0
    %v1120 = vpop.f32.mrf.mxu0
    %v1121 = vadd.f32 %v881, %v1120
    %v1122 = vpop.f32.mrf.mxu0
    %1123 = vmatprep.mubr.bf16.mxu0 0
    %1124 = vmatmul.mubr.bf16.gmra.mxu0 %v848
    %v1125 = vpop.f32.mrf.mxu0
    %v1126 = vadd.f32 %v881, %v1125
    %v1127 = vpop.f32.mrf.mxu0
    %v1128 = vpop.f32.mrf.mxu0
    %v1129 = vadd.f32 %v881, %v1128
    %v1130 = vpop.f32.mrf.mxu0
    %1131 = vmatprep.mubr.bf16.mxu0 0
    %1132 = vmatmul.mubr.bf16.gmra.mxu0 %v849
    %v1133 = vpop.f32.mrf.mxu0
    %v1134 = vadd.f32 %v881, %v1133
    %v1135 = vpop.f32.mrf.mxu0
    %v1136 = vpop.f32.mrf.mxu0
    %v1137 = vadd.f32 %v881, %v1136
    %v1138 = vpop.f32.mrf.mxu0
    %1139 = vmatprep.mubr.bf16.mxu0 0
    %1140 = vmatmul.mubr.bf16.gmra.mxu0 %v850
    %v1141 = vpop.f32.mrf.mxu0
    %v1142 = vadd.f32 %v881, %v1141
    %v1143 = vpop.f32.mrf.mxu0
    %v1144 = vpop.f32.mrf.mxu0
    %v1145 = vadd.f32 %v881, %v1144
    %v1146 = vpop.f32.mrf.mxu0
    %1147 = vmatprep.mubr.bf16.mxu0 0
    %1148 = vmatmul.mubr.bf16.gmra.mxu0 %v851
    %v1149 = vpop.f32.mrf.mxu0
    %v1150 = vadd.f32 %v881, %v1149
    %v1151 = vpop.f32.mrf.mxu0
    %v1152 = vpop.f32.mrf.mxu0
    %v1153 = vadd.f32 %v881, %v1152
    %v1154 = vpop.f32.mrf.mxu0
    %1155 = vmatprep.mubr.bf16.mxu0 0
    %1156 = vmatmul.mubr.bf16.gmra.mxu0 %v852
    %v1157 = vpop.f32.mrf.mxu0
    %v1158 = vadd.f32 %v881, %v1157
    %v1159 = vpop.f32.mrf.mxu0
    %v1160 = vpop.f32.mrf.mxu0
    %v1161 = vadd.f32 %v881, %v1160
    %v1162 = vpop.f32.mrf.mxu0
    %1163 = vmatprep.mubr.bf16.mxu0 0
    %1164 = vmatmul.mubr.bf16.gmra.mxu0 %v853
    %v1165 = vpop.f32.mrf.mxu0
    %v1166 = vadd.f32 %v881, %v1165
    %v1167 = vpop.f32.mrf.mxu0
    %v1168 = vpop.f32.mrf.mxu0
    %v1169 = vadd.f32 %v881, %v1168
    %v1170 = vpop.f32.mrf.mxu0
    %1171 = vmatprep.mubr.bf16.mxu0 0
    %1172 = vmatmul.mubr.bf16.gmra.mxu0 %v854
    %v1173 = vpop.f32.mrf.mxu0
    %v1174 = vadd.f32 %v881, %v1173
    %v1175 = vpop.f32.mrf.mxu0
    %v1176 = vpop.f32.mrf.mxu0
    %v1177 = vadd.f32 %v881, %v1176
    %v1178 = vpop.f32.mrf.mxu0
    %1179 = vmatprep.mubr.bf16.mxu0 0
    %1180 = vmatmul.mubr.bf16.gmra.mxu0 %v855
    %v1181 = vpop.f32.mrf.mxu0
    %v1182 = vadd.f32 %v881, %v1181
    %v1183 = vpop.f32.mrf.mxu0
    %v1184 = vpop.f32.mrf.mxu0
    %v1185 = vadd.f32 %v881, %v1184
    %v1186 = vpop.f32.mrf.mxu0
    %1187 = vmatprep.mubr.bf16.mxu0 0
    %1188 = vmatmul.mubr.bf16.gmra.mxu0 %v856
    %v1189 = vpop.f32.mrf.mxu0
    %v1190 = vadd.f32 %v881, %v1189
    %v1191 = vpop.f32.mrf.mxu0
    %v1192 = vpop.f32.mrf.mxu0
    %v1193 = vadd.f32 %v881, %v1192
    %v1194 = vpop.f32.mrf.mxu0
    %1195 = vmatprep.mubr.bf16.mxu0 0
    %1196 = vmatmul.mubr.bf16.gmra.mxu0 %v857
    %v1197 = vpop.f32.mrf.mxu0
    %v1198 = vadd.f32 %v881, %v1197
    %v1199 = vpop.f32.mrf.mxu0
    %v1200 = vpop.f32.mrf.mxu0
    %v1201 = vadd.f32 %v881, %v1200
    %v1202 = vpop.f32.mrf.mxu0
    %1203 = vmatprep.mubr.bf16.mxu0 0
    %1204 = vmatmul.mubr.bf16.gmra.mxu0 %v858
    %v1205 = vpop.f32.mrf.mxu0
    %v1206 = vadd.f32 %v881, %v1205
    %v1207 = vpop.f32.mrf.mxu0
    %v1208 = vpop.f32.mrf.mxu0
    %v1209 = vadd.f32 %v881, %v1208
    %v1210 = vpop.f32.mrf.mxu0
    %1211 = vmatprep.mubr.bf16.mxu0 0
    %1212 = vmatmul.mubr.bf16.gmra.mxu0 %v859
    %v1213 = vpop.f32.mrf.mxu0
    %v1214 = vadd.f32 %v881, %v1213
    %v1215 = vpop.f32.mrf.mxu0
    %v1216 = vpop.f32.mrf.mxu0
    %v1217 = vadd.f32 %v881, %v1216
    %v1218 = vpop.f32.mrf.mxu0
    %1219 = vdwg.mxu0
    %v1220 = vpack.c.bf16 %v969, %v966
    %v1221 = vpack.c.bf16 %v977, %v974
    %v1222 = vpack.c.bf16 %v985, %v982
    %v1223 = vpack.c.bf16 %v993, %v990
    %v1224 = vpack.c.bf16 %v1001, %v998
    %v1225 = vpack.c.bf16 %v1009, %v1006
    %v1226 = vpack.c.bf16 %v1017, %v1014
    %v1227 = vpack.c.bf16 %v1025, %v1022
    %v1228 = vpack.c.bf16 %v1033, %v1030
    %v1229 = vpack.c.bf16 %v1041, %v1038
    %v1230 = vpack.c.bf16 %v1049, %v1046
    %v1231 = vpack.c.bf16 %v1057, %v1054
    %v1232 = vpack.c.bf16 %v1065, %v1062
    %v1233 = vpack.c.bf16 %v1073, %v1070
    %v1234 = vpack.c.bf16 %v1081, %v1078
    %v1235 = vpack.c.bf16 %v1089, %v1086
    %v1236 = vpack.c.bf16 %v1097, %v1094
    %v1237 = vpack.c.bf16 %v1105, %v1102
    %v1238 = vpack.c.bf16 %v1113, %v1110
    %v1239 = vpack.c.bf16 %v1121, %v1118
    %v1240 = vpack.c.bf16 %v1129, %v1126
    %v1241 = vpack.c.bf16 %v1137, %v1134
    %v1242 = vpack.c.bf16 %v1145, %v1142
    %v1243 = vpack.c.bf16 %v1153, %v1150
    %v1244 = vpack.c.bf16 %v1161, %v1158
    %v1245 = vpack.c.bf16 %v1169, %v1166
    %v1246 = vpack.c.bf16 %v1177, %v1174
    %v1247 = vpack.c.bf16 %v1185, %v1182
    %v1248 = vpack.c.bf16 %v1193, %v1190
    %v1249 = vpack.c.bf16 %v1201, %v1198
    %v1250 = vpack.c.bf16 %v1209, %v1206
    %v1251 = vpack.c.bf16 %v1217, %v1214
    %v1252 = vmax.bf16 %v1220, 0
    %v1253 = vmax.bf16 %v1221, 0
    %v1254 = vmax.bf16 %v1222, 0
    %v1255 = vmax.bf16 %v1223, 0
    %v1256 = vmax.bf16 %v1224, 0
    %v1257 = vmax.bf16 %v1225, 0
    %v1258 = vmax.bf16 %v1226, 0
    %v1259 = vmax.bf16 %v1227, 0
    %v1260 = vmax.bf16 %v1228, 0
    %v1261 = vmax.bf16 %v1229, 0
    %v1262 = vmax.bf16 %v1230, 0
    %v1263 = vmax.bf16 %v1231, 0
    %v1264 = vmax.bf16 %v1232, 0
    %v1265 = vmax.bf16 %v1233, 0
    %v1266 = vmax.bf16 %v1234, 0
    %v1267 = vmax.bf16 %v1235, 0
    %v1268 = vmax.bf16 %v1236, 0
    %v1269 = vmax.bf16 %v1237, 0
    %v1270 = vmax.bf16 %v1238, 0
    %v1271 = vmax.bf16 %v1239, 0
    %v1272 = vmax.bf16 %v1240, 0
    %v1273 = vmax.bf16 %v1241, 0
    %v1274 = vmax.bf16 %v1242, 0
    %v1275 = vmax.bf16 %v1243, 0
    %v1276 = vmax.bf16 %v1244, 0
    %v1277 = vmax.bf16 %v1245, 0
    %v1278 = vmax.bf16 %v1246, 0
    %v1279 = vmax.bf16 %v1247, 0
    %v1280 = vmax.bf16 %v1248, 0
    %v1281 = vmax.bf16 %v1249, 0
    %v1282 = vmax.bf16 %v1250, 0
    %v1283 = vmax.bf16 %v1251, 0
    %v1284 = vld [vmem:[#allocation8] sm:$0xf]
    %v1285 = vld [vmem:[#allocation8 + $0x4] sm:$0xf]
    %v1286 = vld [vmem:[#allocation8 + $0x8] sm:$0xf]
    %v1287 = vld [vmem:[#allocation8 + $0xc] sm:$0xf]
    %v1288 = vld [vmem:[#allocation8 + $0x10] sm:$0xf]
    %v1289 = vld [vmem:[#allocation8 + $0x14] sm:$0xf]
    %v1290 = vld [vmem:[#allocation8 + $0x18] sm:$0xf]
    %v1291 = vld [vmem:[#allocation8 + $0x1c] sm:$0xf]
    %v1292 = vld [vmem:[#allocation8 + $0x20] sm:$0xf]
    %v1293 = vld [vmem:[#allocation8 + $0x24] sm:$0xf]
    %v1294 = vld [vmem:[#allocation8 + $0x28] sm:$0xf]
    %v1295 = vld [vmem:[#allocation8 + $0x2c] sm:$0xf]
    %v1296 = vld [vmem:[#allocation8 + $0x30] sm:$0xf]
    %v1297 = vld [vmem:[#allocation8 + $0x34] sm:$0xf]
    %v1298 = vld [vmem:[#allocation8 + $0x38] sm:$0xf]
    %v1299 = vld [vmem:[#allocation8 + $0x3c] sm:$0xf]
    %v1300 = vld [vmem:[%s6] sm:$0x1]
    %v1302 = vlaneseq
    %v1303 = vshrl.u32 %v1302, 7
    %v1304 = vsub.s32 0, %v1303
    %v1305 = vrot.slane %v1300, %v1304
    %v1323 = vunpack.c.l.b16 %v1284
    %v1324 = vunpack.c.l.b16 %v1285
    %v1325 = vunpack.c.l.b16 %v1286
    %v1326 = vunpack.c.l.b16 %v1287
    %v1327 = vunpack.c.l.b16 %v1288
    %v1328 = vunpack.c.l.b16 %v1289
    %v1329 = vunpack.c.l.b16 %v1290
    %v1330 = vunpack.c.l.b16 %v1291
    %v1331 = vunpack.c.l.b16 %v1292
    %v1332 = vunpack.c.l.b16 %v1293
    %v1333 = vunpack.c.l.b16 %v1294
    %v1334 = vunpack.c.l.b16 %v1295
    %v1335 = vunpack.c.l.b16 %v1296
    %v1336 = vunpack.c.l.b16 %v1297
    %v1337 = vunpack.c.l.b16 %v1298
    %v1338 = vunpack.c.l.b16 %v1299
    %v1339 = vpack.c.b16 %v1324, %v1323
    %v1340 = vpack.c.b16 %v1326, %v1325
    %v1341 = vpack.c.b16 %v1328, %v1327
    %v1342 = vpack.c.b16 %v1330, %v1329
    %v1343 = vpack.c.b16 %v1332, %v1331
    %v1344 = vpack.c.b16 %v1334, %v1333
    %v1345 = vpack.c.b16 %v1336, %v1335
    %v1346 = vpack.c.b16 %v1338, %v1337
    %1355 = vmatprep.subr.bf16.mxu0 0
    %1356 = vmatpush1.bf16.msra.mxu0 %v1346
    %1357 = vmatprep.subr.bf16.mxu0 0
    %1358 = vmatpush1.bf16.msra.mxu0 %v1345
    %1359 = vmatprep.subr.bf16.mxu0 0
    %1360 = vmatpush1.bf16.msra.mxu0 %v1344
    %1361 = vmatprep.subr.bf16.mxu0 0
    %1362 = vmatpush1.bf16.msra.mxu0 %v1343
    %1363 = vmatprep.subr.bf16.mxu0 0
    %1364 = vmatpush1.bf16.msra.mxu0 %v1342
    %1365 = vmatprep.subr.bf16.mxu0 0
    %1366 = vmatpush1.bf16.msra.mxu0 %v1341
    %1367 = vmatprep.subr.bf16.mxu0 0
    %1368 = vmatpush1.bf16.msra.mxu0 %v1340
    %1369 = vmatprep.subr.bf16.mxu0 0
    %1370 = vmatpush1.bf16.msra.mxu0 %v1339
    %1371 = vmatprep.subr.bf16.mxu0 0
    %1372 = vmatpush2.bf16.msra.mxu0 0
    %1373 = vmatprep.subr.bf16.mxu0 0
    %1374 = vmatpush2.bf16.msra.mxu0 0
    %1375 = vmatprep.subr.bf16.mxu0 0
    %1376 = vmatpush2.bf16.msra.mxu0 0
    %1377 = vmatprep.subr.bf16.mxu0 0
    %1378 = vmatpush2.bf16.msra.mxu0 0
    %1379 = vmatprep.subr.bf16.mxu0 0
    %1380 = vmatpush2.bf16.msra.mxu0 0
    %1381 = vmatprep.subr.bf16.mxu0 0
    %1382 = vmatpush2.bf16.msra.mxu0 0
    %1383 = vmatprep.subr.bf16.mxu0 0
    %1384 = vmatpush2.bf16.msra.mxu0 0
    %1385 = vmatprep.subr.bf16.mxu0 0
    %1386 = vmatpush2.bf16.msra.mxu0 0
    %1387 = vmatprep.mubr.bf16.mxu0 0
    %1388 = vmatmul.mubr.bf16.gmra.mxu0 %v1252
    %v1389 = vpop.f32.mrf.mxu0
    %v1390 = vadd.f32 %v1305, %v1389
    %v1391 = vpop.f32.mrf.mxu0
    %v1392 = vpop.f32.mrf.mxu0
    %v1393 = vadd.f32 %v1305, %v1392
    %v1394 = vpop.f32.mrf.mxu0
    %1395 = vmatprep.mubr.bf16.mxu0 0
    %1396 = vmatmul.mubr.bf16.gmra.mxu0 %v1253
    %v1397 = vpop.f32.mrf.mxu0
    %v1398 = vadd.f32 %v1305, %v1397
    %v1399 = vpop.f32.mrf.mxu0
    %v1400 = vpop.f32.mrf.mxu0
    %v1401 = vadd.f32 %v1305, %v1400
    %v1402 = vpop.f32.mrf.mxu0
    %1403 = vmatprep.mubr.bf16.mxu0 0
    %1404 = vmatmul.mubr.bf16.gmra.mxu0 %v1254
    %v1405 = vpop.f32.mrf.mxu0
    %v1406 = vadd.f32 %v1305, %v1405
    %v1407 = vpop.f32.mrf.mxu0
    %v1408 = vpop.f32.mrf.mxu0
    %v1409 = vadd.f32 %v1305, %v1408
    %v1410 = vpop.f32.mrf.mxu0
    %1411 = vmatprep.mubr.bf16.mxu0 0
    %1412 = vmatmul.mubr.bf16.gmra.mxu0 %v1255
    %v1413 = vpop.f32.mrf.mxu0
    %v1414 = vadd.f32 %v1305, %v1413
    %v1415 = vpop.f32.mrf.mxu0
    %v1416 = vpop.f32.mrf.mxu0
    %v1417 = vadd.f32 %v1305, %v1416
    %v1418 = vpop.f32.mrf.mxu0
    %1419 = vmatprep.mubr.bf16.mxu0 0
    %1420 = vmatmul.mubr.bf16.gmra.mxu0 %v1256
    %v1421 = vpop.f32.mrf.mxu0
    %v1422 = vadd.f32 %v1305, %v1421
    %v1423 = vpop.f32.mrf.mxu0
    %v1424 = vpop.f32.mrf.mxu0
    %v1425 = vadd.f32 %v1305, %v1424
    %v1426 = vpop.f32.mrf.mxu0
    %1427 = vmatprep.mubr.bf16.mxu0 0
    %1428 = vmatmul.mubr.bf16.gmra.mxu0 %v1257
    %v1429 = vpop.f32.mrf.mxu0
    %v1430 = vadd.f32 %v1305, %v1429
    %v1431 = vpop.f32.mrf.mxu0
    %v1432 = vpop.f32.mrf.mxu0
    %v1433 = vadd.f32 %v1305, %v1432
    %v1434 = vpop.f32.mrf.mxu0
    %1435 = vmatprep.mubr.bf16.mxu0 0
    %1436 = vmatmul.mubr.bf16.gmra.mxu0 %v1258
    %v1437 = vpop.f32.mrf.mxu0
    %v1438 = vadd.f32 %v1305, %v1437
    %v1439 = vpop.f32.mrf.mxu0
    %v1440 = vpop.f32.mrf.mxu0
    %v1441 = vadd.f32 %v1305, %v1440
    %v1442 = vpop.f32.mrf.mxu0
    %1443 = vmatprep.mubr.bf16.mxu0 0
    %1444 = vmatmul.mubr.bf16.gmra.mxu0 %v1259
    %v1445 = vpop.f32.mrf.mxu0
    %v1446 = vadd.f32 %v1305, %v1445
    %v1447 = vpop.f32.mrf.mxu0
    %v1448 = vpop.f32.mrf.mxu0
    %v1449 = vadd.f32 %v1305, %v1448
    %v1450 = vpop.f32.mrf.mxu0
    %1451 = vmatprep.mubr.bf16.mxu0 0
    %1452 = vmatmul.mubr.bf16.gmra.mxu0 %v1260
    %v1453 = vpop.f32.mrf.mxu0
    %v1454 = vadd.f32 %v1305, %v1453
    %v1455 = vpop.f32.mrf.mxu0
    %v1456 = vpop.f32.mrf.mxu0
    %v1457 = vadd.f32 %v1305, %v1456
    %v1458 = vpop.f32.mrf.mxu0
    %1459 = vmatprep.mubr.bf16.mxu0 0
    %1460 = vmatmul.mubr.bf16.gmra.mxu0 %v1261
    %v1461 = vpop.f32.mrf.mxu0
    %v1462 = vadd.f32 %v1305, %v1461
    %v1463 = vpop.f32.mrf.mxu0
    %v1464 = vpop.f32.mrf.mxu0
    %v1465 = vadd.f32 %v1305, %v1464
    %v1466 = vpop.f32.mrf.mxu0
    %1467 = vmatprep.mubr.bf16.mxu0 0
    %1468 = vmatmul.mubr.bf16.gmra.mxu0 %v1262
    %v1469 = vpop.f32.mrf.mxu0
    %v1470 = vadd.f32 %v1305, %v1469
    %v1471 = vpop.f32.mrf.mxu0
    %v1472 = vpop.f32.mrf.mxu0
    %v1473 = vadd.f32 %v1305, %v1472
    %v1474 = vpop.f32.mrf.mxu0
    %1475 = vmatprep.mubr.bf16.mxu0 0
    %1476 = vmatmul.mubr.bf16.gmra.mxu0 %v1263
    %v1477 = vpop.f32.mrf.mxu0
    %v1478 = vadd.f32 %v1305, %v1477
    %v1479 = vpop.f32.mrf.mxu0
    %v1480 = vpop.f32.mrf.mxu0
    %v1481 = vadd.f32 %v1305, %v1480
    %v1482 = vpop.f32.mrf.mxu0
    %1483 = vmatprep.mubr.bf16.mxu0 0
    %1484 = vmatmul.mubr.bf16.gmra.mxu0 %v1264
    %v1485 = vpop.f32.mrf.mxu0
    %v1486 = vadd.f32 %v1305, %v1485
    %v1487 = vpop.f32.mrf.mxu0
    %v1488 = vpop.f32.mrf.mxu0
    %v1489 = vadd.f32 %v1305, %v1488
    %v1490 = vpop.f32.mrf.mxu0
    %1491 = vmatprep.mubr.bf16.mxu0 0
    %1492 = vmatmul.mubr.bf16.gmra.mxu0 %v1265
    %v1493 = vpop.f32.mrf.mxu0
    %v1494 = vadd.f32 %v1305, %v1493
    %v1495 = vpop.f32.mrf.mxu0
    %v1496 = vpop.f32.mrf.mxu0
    %v1497 = vadd.f32 %v1305, %v1496
    %v1498 = vpop.f32.mrf.mxu0
    %1499 = vmatprep.mubr.bf16.mxu0 0
    %1500 = vmatmul.mubr.bf16.gmra.mxu0 %v1266
    %v1501 = vpop.f32.mrf.mxu0
    %v1502 = vadd.f32 %v1305, %v1501
    %v1503 = vpop.f32.mrf.mxu0
    %v1504 = vpop.f32.mrf.mxu0
    %v1505 = vadd.f32 %v1305, %v1504
    %v1506 = vpop.f32.mrf.mxu0
    %1507 = vmatprep.mubr.bf16.mxu0 0
    %1508 = vmatmul.mubr.bf16.gmra.mxu0 %v1267
    %v1509 = vpop.f32.mrf.mxu0
    %v1510 = vadd.f32 %v1305, %v1509
    %v1511 = vpop.f32.mrf.mxu0
    %v1512 = vpop.f32.mrf.mxu0
    %v1513 = vadd.f32 %v1305, %v1512
    %v1514 = vpop.f32.mrf.mxu0
    %1515 = vmatprep.mubr.bf16.mxu0 0
    %1516 = vmatmul.mubr.bf16.gmra.mxu0 %v1268
    %v1517 = vpop.f32.mrf.mxu0
    %v1518 = vadd.f32 %v1305, %v1517
    %v1519 = vpop.f32.mrf.mxu0
    %v1520 = vpop.f32.mrf.mxu0
    %v1521 = vadd.f32 %v1305, %v1520
    %v1522 = vpop.f32.mrf.mxu0
    %1523 = vmatprep.mubr.bf16.mxu0 0
    %1524 = vmatmul.mubr.bf16.gmra.mxu0 %v1269
    %v1525 = vpop.f32.mrf.mxu0
    %v1526 = vadd.f32 %v1305, %v1525
    %v1527 = vpop.f32.mrf.mxu0
    %v1528 = vpop.f32.mrf.mxu0
    %v1529 = vadd.f32 %v1305, %v1528
    %v1530 = vpop.f32.mrf.mxu0
    %1531 = vmatprep.mubr.bf16.mxu0 0
    %1532 = vmatmul.mubr.bf16.gmra.mxu0 %v1270
    %v1533 = vpop.f32.mrf.mxu0
    %v1534 = vadd.f32 %v1305, %v1533
    %v1535 = vpop.f32.mrf.mxu0
    %v1536 = vpop.f32.mrf.mxu0
    %v1537 = vadd.f32 %v1305, %v1536
    %v1538 = vpop.f32.mrf.mxu0
    %1539 = vmatprep.mubr.bf16.mxu0 0
    %1540 = vmatmul.mubr.bf16.gmra.mxu0 %v1271
    %v1541 = vpop.f32.mrf.mxu0
    %v1542 = vadd.f32 %v1305, %v1541
    %v1543 = vpop.f32.mrf.mxu0
    %v1544 = vpop.f32.mrf.mxu0
    %v1545 = vadd.f32 %v1305, %v1544
    %v1546 = vpop.f32.mrf.mxu0
    %1547 = vmatprep.mubr.bf16.mxu0 0
    %1548 = vmatmul.mubr.bf16.gmra.mxu0 %v1272
    %v1549 = vpop.f32.mrf.mxu0
    %v1550 = vadd.f32 %v1305, %v1549
    %v1551 = vpop.f32.mrf.mxu0
    %v1552 = vpop.f32.mrf.mxu0
    %v1553 = vadd.f32 %v1305, %v1552
    %v1554 = vpop.f32.mrf.mxu0
    %1555 = vmatprep.mubr.bf16.mxu0 0
    %1556 = vmatmul.mubr.bf16.gmra.mxu0 %v1273
    %v1557 = vpop.f32.mrf.mxu0
    %v1558 = vadd.f32 %v1305, %v1557
    %v1559 = vpop.f32.mrf.mxu0
    %v1560 = vpop.f32.mrf.mxu0
    %v1561 = vadd.f32 %v1305, %v1560
    %v1562 = vpop.f32.mrf.mxu0
    %1563 = vmatprep.mubr.bf16.mxu0 0
    %1564 = vmatmul.mubr.bf16.gmra.mxu0 %v1274
    %v1565 = vpop.f32.mrf.mxu0
    %v1566 = vadd.f32 %v1305, %v1565
    %v1567 = vpop.f32.mrf.mxu0
    %v1568 = vpop.f32.mrf.mxu0
    %v1569 = vadd.f32 %v1305, %v1568
    %v1570 = vpop.f32.mrf.mxu0
    %1571 = vmatprep.mubr.bf16.mxu0 0
    %1572 = vmatmul.mubr.bf16.gmra.mxu0 %v1275
    %v1573 = vpop.f32.mrf.mxu0
    %v1574 = vadd.f32 %v1305, %v1573
    %v1575 = vpop.f32.mrf.mxu0
    %v1576 = vpop.f32.mrf.mxu0
    %v1577 = vadd.f32 %v1305, %v1576
    %v1578 = vpop.f32.mrf.mxu0
    %1579 = vmatprep.mubr.bf16.mxu0 0
    %1580 = vmatmul.mubr.bf16.gmra.mxu0 %v1276
    %v1581 = vpop.f32.mrf.mxu0
    %v1582 = vadd.f32 %v1305, %v1581
    %v1583 = vpop.f32.mrf.mxu0
    %v1584 = vpop.f32.mrf.mxu0
    %v1585 = vadd.f32 %v1305, %v1584
    %v1586 = vpop.f32.mrf.mxu0
    %1587 = vmatprep.mubr.bf16.mxu0 0
    %1588 = vmatmul.mubr.bf16.gmra.mxu0 %v1277
    %v1589 = vpop.f32.mrf.mxu0
    %v1590 = vadd.f32 %v1305, %v1589
    %v1591 = vpop.f32.mrf.mxu0
    %v1592 = vpop.f32.mrf.mxu0
    %v1593 = vadd.f32 %v1305, %v1592
    %v1594 = vpop.f32.mrf.mxu0
    %1595 = vmatprep.mubr.bf16.mxu0 0
    %1596 = vmatmul.mubr.bf16.gmra.mxu0 %v1278
    %v1597 = vpop.f32.mrf.mxu0
    %v1598 = vadd.f32 %v1305, %v1597
    %v1599 = vpop.f32.mrf.mxu0
    %v1600 = vpop.f32.mrf.mxu0
    %v1601 = vadd.f32 %v1305, %v1600
    %v1602 = vpop.f32.mrf.mxu0
    %1603 = vmatprep.mubr.bf16.mxu0 0
    %1604 = vmatmul.mubr.bf16.gmra.mxu0 %v1279
    %v1605 = vpop.f32.mrf.mxu0
    %v1606 = vadd.f32 %v1305, %v1605
    %v1607 = vpop.f32.mrf.mxu0
    %v1608 = vpop.f32.mrf.mxu0
    %v1609 = vadd.f32 %v1305, %v1608
    %v1610 = vpop.f32.mrf.mxu0
    %1611 = vmatprep.mubr.bf16.mxu0 0
    %1612 = vmatmul.mubr.bf16.gmra.mxu0 %v1280
    %v1613 = vpop.f32.mrf.mxu0
    %v1614 = vadd.f32 %v1305, %v1613
    %v1615 = vpop.f32.mrf.mxu0
    %v1616 = vpop.f32.mrf.mxu0
    %v1617 = vadd.f32 %v1305, %v1616
    %v1618 = vpop.f32.mrf.mxu0
    %1619 = vmatprep.mubr.bf16.mxu0 0
    %1620 = vmatmul.mubr.bf16.gmra.mxu0 %v1281
    %v1621 = vpop.f32.mrf.mxu0
    %v1622 = vadd.f32 %v1305, %v1621
    %v1623 = vpop.f32.mrf.mxu0
    %v1624 = vpop.f32.mrf.mxu0
    %v1625 = vadd.f32 %v1305, %v1624
    %v1626 = vpop.f32.mrf.mxu0
    %1627 = vmatprep.mubr.bf16.mxu0 0
    %1628 = vmatmul.mubr.bf16.gmra.mxu0 %v1282
    %v1629 = vpop.f32.mrf.mxu0
    %v1630 = vadd.f32 %v1305, %v1629
    %v1631 = vpop.f32.mrf.mxu0
    %v1632 = vpop.f32.mrf.mxu0
    %v1633 = vadd.f32 %v1305, %v1632
    %v1634 = vpop.f32.mrf.mxu0
    %1635 = vmatprep.mubr.bf16.mxu0 0
    %1636 = vmatmul.mubr.bf16.gmra.mxu0 %v1283
    %v1637 = vpop.f32.mrf.mxu0
    %v1638 = vadd.f32 %v1305, %v1637
    %v1639 = vpop.f32.mrf.mxu0
    %v1640 = vpop.f32.mrf.mxu0
    %v1641 = vadd.f32 %v1305, %v1640
    %v1642 = vpop.f32.mrf.mxu0
    %1643 = vdwg.mxu0
    %v1644 = vpack.c.bf16 %v1393, %v1390
    %v1645 = vpack.c.bf16 %v1401, %v1398
    %v1646 = vpack.c.bf16 %v1409, %v1406
    %v1647 = vpack.c.bf16 %v1417, %v1414
    %v1648 = vpack.c.bf16 %v1425, %v1422
    %v1649 = vpack.c.bf16 %v1433, %v1430
    %v1650 = vpack.c.bf16 %v1441, %v1438
    %v1651 = vpack.c.bf16 %v1449, %v1446
    %v1652 = vpack.c.bf16 %v1457, %v1454
    %v1653 = vpack.c.bf16 %v1465, %v1462
    %v1654 = vpack.c.bf16 %v1473, %v1470
    %v1655 = vpack.c.bf16 %v1481, %v1478
    %v1656 = vpack.c.bf16 %v1489, %v1486
    %v1657 = vpack.c.bf16 %v1497, %v1494
    %v1658 = vpack.c.bf16 %v1505, %v1502
    %v1659 = vpack.c.bf16 %v1513, %v1510
    %v1660 = vpack.c.bf16 %v1521, %v1518
    %v1661 = vpack.c.bf16 %v1529, %v1526
    %v1662 = vpack.c.bf16 %v1537, %v1534
    %v1663 = vpack.c.bf16 %v1545, %v1542
    %v1664 = vpack.c.bf16 %v1553, %v1550
    %v1665 = vpack.c.bf16 %v1561, %v1558
    %v1666 = vpack.c.bf16 %v1569, %v1566
    %v1667 = vpack.c.bf16 %v1577, %v1574
    %v1668 = vpack.c.bf16 %v1585, %v1582
    %v1669 = vpack.c.bf16 %v1593, %v1590
    %v1670 = vpack.c.bf16 %v1601, %v1598
    %v1671 = vpack.c.bf16 %v1609, %v1606
    %v1672 = vpack.c.bf16 %v1617, %v1614
    %v1673 = vpack.c.bf16 %v1625, %v1622
    %v1674 = vpack.c.bf16 %v1633, %v1630
    %v1675 = vpack.c.bf16 %v1641, %v1638
    %v1676 = vmax.bf16 %v1644, 0
    %v1677 = vmax.bf16 %v1645, 0
    %v1678 = vmax.bf16 %v1646, 0
    %v1679 = vmax.bf16 %v1647, 0
    %v1680 = vmax.bf16 %v1648, 0
    %v1681 = vmax.bf16 %v1649, 0
    %v1682 = vmax.bf16 %v1650, 0
    %v1683 = vmax.bf16 %v1651, 0
    %v1684 = vmax.bf16 %v1652, 0
    %v1685 = vmax.bf16 %v1653, 0
    %v1686 = vmax.bf16 %v1654, 0
    %v1687 = vmax.bf16 %v1655, 0
    %v1688 = vmax.bf16 %v1656, 0
    %v1689 = vmax.bf16 %v1657, 0
    %v1690 = vmax.bf16 %v1658, 0
    %v1691 = vmax.bf16 %v1659, 0
    %v1692 = vmax.bf16 %v1660, 0
    %v1693 = vmax.bf16 %v1661, 0
    %v1694 = vmax.bf16 %v1662, 0
    %v1695 = vmax.bf16 %v1663, 0
    %v1696 = vmax.bf16 %v1664, 0
    %v1697 = vmax.bf16 %v1665, 0
    %v1698 = vmax.bf16 %v1666, 0
    %v1699 = vmax.bf16 %v1667, 0
    %v1700 = vmax.bf16 %v1668, 0
    %v1701 = vmax.bf16 %v1669, 0
    %v1702 = vmax.bf16 %v1670, 0
    %v1703 = vmax.bf16 %v1671, 0
    %v1704 = vmax.bf16 %v1672, 0
    %v1705 = vmax.bf16 %v1673, 0
    %v1706 = vmax.bf16 %v1674, 0
    %v1707 = vmax.bf16 %v1675, 0
    %v1708 = vld [vmem:[#allocation10] sm:$0xf]
    %v1709 = vld [vmem:[#allocation10 + $0x4] sm:$0xf]
    %v1710 = vld [vmem:[#allocation10 + $0x8] sm:$0xf]
    %v1711 = vld [vmem:[#allocation10 + $0xc] sm:$0xf]
    %v1712 = vld [vmem:[#allocation10 + $0x10] sm:$0xf]
    %v1713 = vld [vmem:[#allocation10 + $0x14] sm:$0xf]
    %v1714 = vld [vmem:[#allocation10 + $0x18] sm:$0xf]
    %v1715 = vld [vmem:[#allocation10 + $0x1c] sm:$0xf]
    %v1716 = vld [vmem:[#allocation10 + $0x20] sm:$0xf]
    %v1717 = vld [vmem:[#allocation10 + $0x24] sm:$0xf]
    %v1718 = vld [vmem:[#allocation10 + $0x28] sm:$0xf]
    %v1719 = vld [vmem:[#allocation10 + $0x2c] sm:$0xf]
    %v1720 = vld [vmem:[#allocation10 + $0x30] sm:$0xf]
    %v1721 = vld [vmem:[#allocation10 + $0x34] sm:$0xf]
    %v1722 = vld [vmem:[#allocation10 + $0x38] sm:$0xf]
    %v1723 = vld [vmem:[#allocation10 + $0x3c] sm:$0xf]
    %v1724 = vld [vmem:[%s8] sm:$0x1]
    %v1726 = vlaneseq
    %v1727 = vshrl.u32 %v1726, 7
    %v1728 = vsub.s32 0, %v1727
    %v1729 = vrot.slane %v1724, %v1728
    %v1747 = vunpack.c.l.b16 %v1708
    %v1748 = vunpack.c.l.b16 %v1709
    %v1749 = vunpack.c.l.b16 %v1710
    %v1750 = vunpack.c.l.b16 %v1711
    %v1751 = vunpack.c.l.b16 %v1712
    %v1752 = vunpack.c.l.b16 %v1713
    %v1753 = vunpack.c.l.b16 %v1714
    %v1754 = vunpack.c.l.b16 %v1715
    %v1755 = vunpack.c.l.b16 %v1716
    %v1756 = vunpack.c.l.b16 %v1717
    %v1757 = vunpack.c.l.b16 %v1718
    %v1758 = vunpack.c.l.b16 %v1719
    %v1759 = vunpack.c.l.b16 %v1720
    %v1760 = vunpack.c.l.b16 %v1721
    %v1761 = vunpack.c.l.b16 %v1722
    %v1762 = vunpack.c.l.b16 %v1723
    %v1763 = vpack.c.b16 %v1748, %v1747
    %v1764 = vpack.c.b16 %v1750, %v1749
    %v1765 = vpack.c.b16 %v1752, %v1751
    %v1766 = vpack.c.b16 %v1754, %v1753
    %v1767 = vpack.c.b16 %v1756, %v1755
    %v1768 = vpack.c.b16 %v1758, %v1757
    %v1769 = vpack.c.b16 %v1760, %v1759
    %v1770 = vpack.c.b16 %v1762, %v1761
    %1779 = vmatprep.subr.bf16.mxu0 0
    %1780 = vmatpush1.bf16.msra.mxu0 %v1770
    %1781 = vmatprep.subr.bf16.mxu0 0
    %1782 = vmatpush1.bf16.msra.mxu0 %v1769
    %1783 = vmatprep.subr.bf16.mxu0 0
    %1784 = vmatpush1.bf16.msra.mxu0 %v1768
    %1785 = vmatprep.subr.bf16.mxu0 0
    %1786 = vmatpush1.bf16.msra.mxu0 %v1767
    %1787 = vmatprep.subr.bf16.mxu0 0
    %1788 = vmatpush1.bf16.msra.mxu0 %v1766
    %1789 = vmatprep.subr.bf16.mxu0 0
    %1790 = vmatpush1.bf16.msra.mxu0 %v1765
    %1791 = vmatprep.subr.bf16.mxu0 0
    %1792 = vmatpush1.bf16.msra.mxu0 %v1764
    %1793 = vmatprep.subr.bf16.mxu0 0
    %1794 = vmatpush1.bf16.msra.mxu0 %v1763
    %1795 = vmatprep.subr.bf16.mxu0 0
    %1796 = vmatpush2.bf16.msra.mxu0 0
    %1797 = vmatprep.subr.bf16.mxu0 0
    %1798 = vmatpush2.bf16.msra.mxu0 0
    %1799 = vmatprep.subr.bf16.mxu0 0
    %1800 = vmatpush2.bf16.msra.mxu0 0
    %1801 = vmatprep.subr.bf16.mxu0 0
    %1802 = vmatpush2.bf16.msra.mxu0 0
    %1803 = vmatprep.subr.bf16.mxu0 0
    %1804 = vmatpush2.bf16.msra.mxu0 0
    %1805 = vmatprep.subr.bf16.mxu0 0
    %1806 = vmatpush2.bf16.msra.mxu0 0
    %1807 = vmatprep.subr.bf16.mxu0 0
    %1808 = vmatpush2.bf16.msra.mxu0 0
    %1809 = vmatprep.subr.bf16.mxu0 0
    %1810 = vmatpush2.bf16.msra.mxu0 0
    %1811 = vmatprep.mubr.bf16.mxu0 0
    %1812 = vmatmul.mubr.bf16.gmra.mxu0 %v1676
    %v1813 = vpop.f32.mrf.mxu0
    %v1814 = vadd.f32 %v1729, %v1813
    %v1815 = vpop.f32.mrf.mxu0
    %v1816 = vpop.f32.mrf.mxu0
    %v1817 = vadd.f32 %v1729, %v1816
    %v1818 = vpop.f32.mrf.mxu0
    %1819 = vmatprep.mubr.bf16.mxu0 0
    %1820 = vmatmul.mubr.bf16.gmra.mxu0 %v1677
    %v1821 = vpop.f32.mrf.mxu0
    %v1822 = vadd.f32 %v1729, %v1821
    %v1823 = vpop.f32.mrf.mxu0
    %v1824 = vpop.f32.mrf.mxu0
    %v1825 = vadd.f32 %v1729, %v1824
    %v1826 = vpop.f32.mrf.mxu0
    %1827 = vmatprep.mubr.bf16.mxu0 0
    %1828 = vmatmul.mubr.bf16.gmra.mxu0 %v1678
    %v1829 = vpop.f32.mrf.mxu0
    %v1830 = vadd.f32 %v1729, %v1829
    %v1831 = vpop.f32.mrf.mxu0
    %v1832 = vpop.f32.mrf.mxu0
    %v1833 = vadd.f32 %v1729, %v1832
    %v1834 = vpop.f32.mrf.mxu0
    %1835 = vmatprep.mubr.bf16.mxu0 0
    %1836 = vmatmul.mubr.bf16.gmra.mxu0 %v1679
    %v1837 = vpop.f32.mrf.mxu0
    %v1838 = vadd.f32 %v1729, %v1837
    %v1839 = vpop.f32.mrf.mxu0
    %v1840 = vpop.f32.mrf.mxu0
    %v1841 = vadd.f32 %v1729, %v1840
    %v1842 = vpop.f32.mrf.mxu0
    %1843 = vmatprep.mubr.bf16.mxu0 0
    %1844 = vmatmul.mubr.bf16.gmra.mxu0 %v1680
    %v1845 = vpop.f32.mrf.mxu0
    %v1846 = vadd.f32 %v1729, %v1845
    %v1847 = vpop.f32.mrf.mxu0
    %v1848 = vpop.f32.mrf.mxu0
    %v1849 = vadd.f32 %v1729, %v1848
    %v1850 = vpop.f32.mrf.mxu0
    %1851 = vmatprep.mubr.bf16.mxu0 0
    %1852 = vmatmul.mubr.bf16.gmra.mxu0 %v1681
    %v1853 = vpop.f32.mrf.mxu0
    %v1854 = vadd.f32 %v1729, %v1853
    %v1855 = vpop.f32.mrf.mxu0
    %v1856 = vpop.f32.mrf.mxu0
    %v1857 = vadd.f32 %v1729, %v1856
    %v1858 = vpop.f32.mrf.mxu0
    %1859 = vmatprep.mubr.bf16.mxu0 0
    %1860 = vmatmul.mubr.bf16.gmra.mxu0 %v1682
    %v1861 = vpop.f32.mrf.mxu0
    %v1862 = vadd.f32 %v1729, %v1861
    %v1863 = vpop.f32.mrf.mxu0
    %v1864 = vpop.f32.mrf.mxu0
    %v1865 = vadd.f32 %v1729, %v1864
    %v1866 = vpop.f32.mrf.mxu0
    %1867 = vmatprep.mubr.bf16.mxu0 0
    %1868 = vmatmul.mubr.bf16.gmra.mxu0 %v1683
    %v1869 = vpop.f32.mrf.mxu0
    %v1870 = vadd.f32 %v1729, %v1869
    %v1871 = vpop.f32.mrf.mxu0
    %v1872 = vpop.f32.mrf.mxu0
    %v1873 = vadd.f32 %v1729, %v1872
    %v1874 = vpop.f32.mrf.mxu0
    %1875 = vmatprep.mubr.bf16.mxu0 0
    %1876 = vmatmul.mubr.bf16.gmra.mxu0 %v1684
    %v1877 = vpop.f32.mrf.mxu0
    %v1878 = vadd.f32 %v1729, %v1877
    %v1879 = vpop.f32.mrf.mxu0
    %v1880 = vpop.f32.mrf.mxu0
    %v1881 = vadd.f32 %v1729, %v1880
    %v1882 = vpop.f32.mrf.mxu0
    %1883 = vmatprep.mubr.bf16.mxu0 0
    %1884 = vmatmul.mubr.bf16.gmra.mxu0 %v1685
    %v1885 = vpop.f32.mrf.mxu0
    %v1886 = vadd.f32 %v1729, %v1885
    %v1887 = vpop.f32.mrf.mxu0
    %v1888 = vpop.f32.mrf.mxu0
    %v1889 = vadd.f32 %v1729, %v1888
    %v1890 = vpop.f32.mrf.mxu0
    %1891 = vmatprep.mubr.bf16.mxu0 0
    %1892 = vmatmul.mubr.bf16.gmra.mxu0 %v1686
    %v1893 = vpop.f32.mrf.mxu0
    %v1894 = vadd.f32 %v1729, %v1893
    %v1895 = vpop.f32.mrf.mxu0
    %v1896 = vpop.f32.mrf.mxu0
    %v1897 = vadd.f32 %v1729, %v1896
    %v1898 = vpop.f32.mrf.mxu0
    %1899 = vmatprep.mubr.bf16.mxu0 0
    %1900 = vmatmul.mubr.bf16.gmra.mxu0 %v1687
    %v1901 = vpop.f32.mrf.mxu0
    %v1902 = vadd.f32 %v1729, %v1901
    %v1903 = vpop.f32.mrf.mxu0
    %v1904 = vpop.f32.mrf.mxu0
    %v1905 = vadd.f32 %v1729, %v1904
    %v1906 = vpop.f32.mrf.mxu0
    %1907 = vmatprep.mubr.bf16.mxu0 0
    %1908 = vmatmul.mubr.bf16.gmra.mxu0 %v1688
    %v1909 = vpop.f32.mrf.mxu0
    %v1910 = vadd.f32 %v1729, %v1909
    %v1911 = vpop.f32.mrf.mxu0
    %v1912 = vpop.f32.mrf.mxu0
    %v1913 = vadd.f32 %v1729, %v1912
    %v1914 = vpop.f32.mrf.mxu0
    %1915 = vmatprep.mubr.bf16.mxu0 0
    %1916 = vmatmul.mubr.bf16.gmra.mxu0 %v1689
    %v1917 = vpop.f32.mrf.mxu0
    %v1918 = vadd.f32 %v1729, %v1917
    %v1919 = vpop.f32.mrf.mxu0
    %v1920 = vpop.f32.mrf.mxu0
    %v1921 = vadd.f32 %v1729, %v1920
    %v1922 = vpop.f32.mrf.mxu0
    %1923 = vmatprep.mubr.bf16.mxu0 0
    %1924 = vmatmul.mubr.bf16.gmra.mxu0 %v1690
    %v1925 = vpop.f32.mrf.mxu0
    %v1926 = vadd.f32 %v1729, %v1925
    %v1927 = vpop.f32.mrf.mxu0
    %v1928 = vpop.f32.mrf.mxu0
    %v1929 = vadd.f32 %v1729, %v1928
    %v1930 = vpop.f32.mrf.mxu0
    %1931 = vmatprep.mubr.bf16.mxu0 0
    %1932 = vmatmul.mubr.bf16.gmra.mxu0 %v1691
    %v1933 = vpop.f32.mrf.mxu0
    %v1934 = vadd.f32 %v1729, %v1933
    %v1935 = vpop.f32.mrf.mxu0
    %v1936 = vpop.f32.mrf.mxu0
    %v1937 = vadd.f32 %v1729, %v1936
    %v1938 = vpop.f32.mrf.mxu0
    %1939 = vmatprep.mubr.bf16.mxu0 0
    %1940 = vmatmul.mubr.bf16.gmra.mxu0 %v1692
    %v1941 = vpop.f32.mrf.mxu0
    %v1942 = vadd.f32 %v1729, %v1941
    %v1943 = vpop.f32.mrf.mxu0
    %v1944 = vpop.f32.mrf.mxu0
    %v1945 = vadd.f32 %v1729, %v1944
    %v1946 = vpop.f32.mrf.mxu0
    %1947 = vmatprep.mubr.bf16.mxu0 0
    %1948 = vmatmul.mubr.bf16.gmra.mxu0 %v1693
    %v1949 = vpop.f32.mrf.mxu0
    %v1950 = vadd.f32 %v1729, %v1949
    %v1951 = vpop.f32.mrf.mxu0
    %v1952 = vpop.f32.mrf.mxu0
    %v1953 = vadd.f32 %v1729, %v1952
    %v1954 = vpop.f32.mrf.mxu0
    %1955 = vmatprep.mubr.bf16.mxu0 0
    %1956 = vmatmul.mubr.bf16.gmra.mxu0 %v1694
    %v1957 = vpop.f32.mrf.mxu0
    %v1958 = vadd.f32 %v1729, %v1957
    %v1959 = vpop.f32.mrf.mxu0
    %v1960 = vpop.f32.mrf.mxu0
    %v1961 = vadd.f32 %v1729, %v1960
    %v1962 = vpop.f32.mrf.mxu0
    %1963 = vmatprep.mubr.bf16.mxu0 0
    %1964 = vmatmul.mubr.bf16.gmra.mxu0 %v1695
    %v1965 = vpop.f32.mrf.mxu0
    %v1966 = vadd.f32 %v1729, %v1965
    %v1967 = vpop.f32.mrf.mxu0
    %v1968 = vpop.f32.mrf.mxu0
    %v1969 = vadd.f32 %v1729, %v1968
    %v1970 = vpop.f32.mrf.mxu0
    %1971 = vmatprep.mubr.bf16.mxu0 0
    %1972 = vmatmul.mubr.bf16.gmra.mxu0 %v1696
    %v1973 = vpop.f32.mrf.mxu0
    %v1974 = vadd.f32 %v1729, %v1973
    %v1975 = vpop.f32.mrf.mxu0
    %v1976 = vpop.f32.mrf.mxu0
    %v1977 = vadd.f32 %v1729, %v1976
    %v1978 = vpop.f32.mrf.mxu0
    %1979 = vmatprep.mubr.bf16.mxu0 0
    %1980 = vmatmul.mubr.bf16.gmra.mxu0 %v1697
    %v1981 = vpop.f32.mrf.mxu0
    %v1982 = vadd.f32 %v1729, %v1981
    %v1983 = vpop.f32.mrf.mxu0
    %v1984 = vpop.f32.mrf.mxu0
    %v1985 = vadd.f32 %v1729, %v1984
    %v1986 = vpop.f32.mrf.mxu0
    %1987 = vmatprep.mubr.bf16.mxu0 0
    %1988 = vmatmul.mubr.bf16.gmra.mxu0 %v1698
    %v1989 = vpop.f32.mrf.mxu0
    %v1990 = vadd.f32 %v1729, %v1989
    %v1991 = vpop.f32.mrf.mxu0
    %v1992 = vpop.f32.mrf.mxu0
    %v1993 = vadd.f32 %v1729, %v1992
    %v1994 = vpop.f32.mrf.mxu0
    %1995 = vmatprep.mubr.bf16.mxu0 0
    %1996 = vmatmul.mubr.bf16.gmra.mxu0 %v1699
    %v1997 = vpop.f32.mrf.mxu0
    %v1998 = vadd.f32 %v1729, %v1997
    %v1999 = vpop.f32.mrf.mxu0
    %v2000 = vpop.f32.mrf.mxu0
    %v2001 = vadd.f32 %v1729, %v2000
    %v2002 = vpop.f32.mrf.mxu0
    %2003 = vmatprep.mubr.bf16.mxu0 0
    %2004 = vmatmul.mubr.bf16.gmra.mxu0 %v1700
    %v2005 = vpop.f32.mrf.mxu0
    %v2006 = vadd.f32 %v1729, %v2005
    %v2007 = vpop.f32.mrf.mxu0
    %v2008 = vpop.f32.mrf.mxu0
    %v2009 = vadd.f32 %v1729, %v2008
    %v2010 = vpop.f32.mrf.mxu0
    %2011 = vmatprep.mubr.bf16.mxu0 0
    %2012 = vmatmul.mubr.bf16.gmra.mxu0 %v1701
    %v2013 = vpop.f32.mrf.mxu0
    %v2014 = vadd.f32 %v1729, %v2013
    %v2015 = vpop.f32.mrf.mxu0
    %v2016 = vpop.f32.mrf.mxu0
    %v2017 = vadd.f32 %v1729, %v2016
    %v2018 = vpop.f32.mrf.mxu0
    %2019 = vmatprep.mubr.bf16.mxu0 0
    %2020 = vmatmul.mubr.bf16.gmra.mxu0 %v1702
    %v2021 = vpop.f32.mrf.mxu0
    %v2022 = vadd.f32 %v1729, %v2021
    %v2023 = vpop.f32.mrf.mxu0
    %v2024 = vpop.f32.mrf.mxu0
    %v2025 = vadd.f32 %v1729, %v2024
    %v2026 = vpop.f32.mrf.mxu0
    %2027 = vmatprep.mubr.bf16.mxu0 0
    %2028 = vmatmul.mubr.bf16.gmra.mxu0 %v1703
    %v2029 = vpop.f32.mrf.mxu0
    %v2030 = vadd.f32 %v1729, %v2029
    %v2031 = vpop.f32.mrf.mxu0
    %v2032 = vpop.f32.mrf.mxu0
    %v2033 = vadd.f32 %v1729, %v2032
    %v2034 = vpop.f32.mrf.mxu0
    %2035 = vmatprep.mubr.bf16.mxu0 0
    %2036 = vmatmul.mubr.bf16.gmra.mxu0 %v1704
    %v2037 = vpop.f32.mrf.mxu0
    %v2038 = vadd.f32 %v1729, %v2037
    %v2039 = vpop.f32.mrf.mxu0
    %v2040 = vpop.f32.mrf.mxu0
    %v2041 = vadd.f32 %v1729, %v2040
    %v2042 = vpop.f32.mrf.mxu0
    %2043 = vmatprep.mubr.bf16.mxu0 0
    %2044 = vmatmul.mubr.bf16.gmra.mxu0 %v1705
    %v2045 = vpop.f32.mrf.mxu0
    %v2046 = vadd.f32 %v1729, %v2045
    %v2047 = vpop.f32.mrf.mxu0
    %v2048 = vpop.f32.mrf.mxu0
    %v2049 = vadd.f32 %v1729, %v2048
    %v2050 = vpop.f32.mrf.mxu0
    %2051 = vmatprep.mubr.bf16.mxu0 0
    %2052 = vmatmul.mubr.bf16.gmra.mxu0 %v1706
    %v2053 = vpop.f32.mrf.mxu0
    %v2054 = vadd.f32 %v1729, %v2053
    %v2055 = vpop.f32.mrf.mxu0
    %v2056 = vpop.f32.mrf.mxu0
    %v2057 = vadd.f32 %v1729, %v2056
    %v2058 = vpop.f32.mrf.mxu0
    %2059 = vmatprep.mubr.bf16.mxu0 0
    %2060 = vmatmul.mubr.bf16.gmra.mxu0 %v1707
    %v2061 = vpop.f32.mrf.mxu0
    %v2062 = vadd.f32 %v1729, %v2061
    %v2063 = vpop.f32.mrf.mxu0
    %v2064 = vpop.f32.mrf.mxu0
    %v2065 = vadd.f32 %v1729, %v2064
    %v2066 = vpop.f32.mrf.mxu0
    %2067 = vdwg.mxu0
    %v2068 = vpack.c.bf16 %v1817, %v1814
    %v2069 = vpack.c.bf16 %v1825, %v1822
    %v2070 = vpack.c.bf16 %v1833, %v1830
    %v2071 = vpack.c.bf16 %v1841, %v1838
    %v2072 = vpack.c.bf16 %v1849, %v1846
    %v2073 = vpack.c.bf16 %v1857, %v1854
    %v2074 = vpack.c.bf16 %v1865, %v1862
    %v2075 = vpack.c.bf16 %v1873, %v1870
    %v2076 = vpack.c.bf16 %v1881, %v1878
    %v2077 = vpack.c.bf16 %v1889, %v1886
    %v2078 = vpack.c.bf16 %v1897, %v1894
    %v2079 = vpack.c.bf16 %v1905, %v1902
    %v2080 = vpack.c.bf16 %v1913, %v1910
    %v2081 = vpack.c.bf16 %v1921, %v1918
    %v2082 = vpack.c.bf16 %v1929, %v1926
    %v2083 = vpack.c.bf16 %v1937, %v1934
    %v2084 = vpack.c.bf16 %v1945, %v1942
    %v2085 = vpack.c.bf16 %v1953, %v1950
    %v2086 = vpack.c.bf16 %v1961, %v1958
    %v2087 = vpack.c.bf16 %v1969, %v1966
    %v2088 = vpack.c.bf16 %v1977, %v1974
    %v2089 = vpack.c.bf16 %v1985, %v1982
    %v2090 = vpack.c.bf16 %v1993, %v1990
    %v2091 = vpack.c.bf16 %v2001, %v1998
    %v2092 = vpack.c.bf16 %v2009, %v2006
    %v2093 = vpack.c.bf16 %v2017, %v2014
    %v2094 = vpack.c.bf16 %v2025, %v2022
    %v2095 = vpack.c.bf16 %v2033, %v2030
    %v2096 = vpack.c.bf16 %v2041, %v2038
    %v2097 = vpack.c.bf16 %v2049, %v2046
    %v2098 = vpack.c.bf16 %v2057, %v2054
    %v2099 = vpack.c.bf16 %v2065, %v2062
    %v2100 = vld [vmem:[#allocation11] sm:$0xf]
    %v2101 = vld [vmem:[#allocation11 + $0x4] sm:$0xf]
    %v2102 = vld [vmem:[#allocation11 + $0x8] sm:$0xf]
    %v2103 = vld [vmem:[#allocation11 + $0xc] sm:$0xf]
    %v2104 = vld [vmem:[#allocation11 + $0x10] sm:$0xf]
    %v2105 = vld [vmem:[#allocation11 + $0x14] sm:$0xf]
    %v2106 = vld [vmem:[#allocation11 + $0x18] sm:$0xf]
    %v2107 = vld [vmem:[#allocation11 + $0x1c] sm:$0xf]
    %v2108 = vld [vmem:[#allocation11 + $0x20] sm:$0xf]
    %v2109 = vld [vmem:[#allocation11 + $0x24] sm:$0xf]
    %v2110 = vld [vmem:[#allocation11 + $0x28] sm:$0xf]
    %v2111 = vld [vmem:[#allocation11 + $0x2c] sm:$0xf]
    %v2112 = vld [vmem:[#allocation11 + $0x30] sm:$0xf]
    %v2113 = vld [vmem:[#allocation11 + $0x34] sm:$0xf]
    %v2114 = vld [vmem:[#allocation11 + $0x38] sm:$0xf]
    %v2115 = vld [vmem:[#allocation11 + $0x3c] sm:$0xf]
    %v2116 = vld [vmem:[%s10] sm:$0x1]
    %v2118 = vlaneseq
    %v2119 = vshrl.u32 %v2118, 7
    %v2120 = vsub.s32 0, %v2119
    %v2121 = vrot.slane %v2116, %v2120
    %v2139 = vunpack.c.l.b16 %v2100
    %v2140 = vunpack.c.l.b16 %v2101
    %v2141 = vunpack.c.l.b16 %v2102
    %v2142 = vunpack.c.l.b16 %v2103
    %v2143 = vunpack.c.l.b16 %v2104
    %v2144 = vunpack.c.l.b16 %v2105
    %v2145 = vunpack.c.l.b16 %v2106
    %v2146 = vunpack.c.l.b16 %v2107
    %v2147 = vunpack.c.l.b16 %v2108
    %v2148 = vunpack.c.l.b16 %v2109
    %v2149 = vunpack.c.l.b16 %v2110
    %v2150 = vunpack.c.l.b16 %v2111
    %v2151 = vunpack.c.l.b16 %v2112
    %v2152 = vunpack.c.l.b16 %v2113
    %v2153 = vunpack.c.l.b16 %v2114
    %v2154 = vunpack.c.l.b16 %v2115
    %v2155 = vpack.c.b16 %v2140, %v2139
    %v2156 = vpack.c.b16 %v2142, %v2141
    %v2157 = vpack.c.b16 %v2144, %v2143
    %v2158 = vpack.c.b16 %v2146, %v2145
    %v2159 = vpack.c.b16 %v2148, %v2147
    %v2160 = vpack.c.b16 %v2150, %v2149
    %v2161 = vpack.c.b16 %v2152, %v2151
    %v2162 = vpack.c.b16 %v2154, %v2153
    %2171 = vmatprep.subr.bf16.mxu0 0
    %2172 = vmatpush1.bf16.msra.mxu0 %v2162
    %2173 = vmatprep.subr.bf16.mxu0 0
    %2174 = vmatpush1.bf16.msra.mxu0 %v2161
    %2175 = vmatprep.subr.bf16.mxu0 0
    %2176 = vmatpush1.bf16.msra.mxu0 %v2160
    %2177 = vmatprep.subr.bf16.mxu0 0
    %2178 = vmatpush1.bf16.msra.mxu0 %v2159
    %2179 = vmatprep.subr.bf16.mxu0 0
    %2180 = vmatpush1.bf16.msra.mxu0 %v2158
    %2181 = vmatprep.subr.bf16.mxu0 0
    %2182 = vmatpush1.bf16.msra.mxu0 %v2157
    %2183 = vmatprep.subr.bf16.mxu0 0
    %2184 = vmatpush1.bf16.msra.mxu0 %v2156
    %2185 = vmatprep.subr.bf16.mxu0 0
    %2186 = vmatpush1.bf16.msra.mxu0 %v2155
    %2187 = vmatprep.subr.bf16.mxu0 0
    %2188 = vmatpush2.bf16.msra.mxu0 0
    %2189 = vmatprep.subr.bf16.mxu0 0
    %2190 = vmatpush2.bf16.msra.mxu0 0
    %2191 = vmatprep.subr.bf16.mxu0 0
    %2192 = vmatpush2.bf16.msra.mxu0 0
    %2193 = vmatprep.subr.bf16.mxu0 0
    %2194 = vmatpush2.bf16.msra.mxu0 0
    %2195 = vmatprep.subr.bf16.mxu0 0
    %2196 = vmatpush2.bf16.msra.mxu0 0
    %2197 = vmatprep.subr.bf16.mxu0 0
    %2198 = vmatpush2.bf16.msra.mxu0 0
    %2199 = vmatprep.subr.bf16.mxu0 0
    %2200 = vmatpush2.bf16.msra.mxu0 0
    %2201 = vmatprep.subr.bf16.mxu0 0
    %2202 = vmatpush2.bf16.msra.mxu0 0
    %2203 = vmatprep.mubr.bf16.mxu0 0
    %2204 = vmatmul.mubr.bf16.gmra.mxu0 %v2068
    %v2205 = vpop.f32.mrf.mxu0
    %v2206 = vadd.f32 %v2121, %v2205
    %v2207 = vpop.f32.mrf.mxu0
    %v2208 = vpop.f32.mrf.mxu0
    %v2209 = vadd.f32 %v2121, %v2208
    %v2210 = vpop.f32.mrf.mxu0
    %2211 = vmatprep.mubr.bf16.mxu0 0
    %2212 = vmatmul.mubr.bf16.gmra.mxu0 %v2069
    %v2213 = vpop.f32.mrf.mxu0
    %v2214 = vadd.f32 %v2121, %v2213
    %v2215 = vpop.f32.mrf.mxu0
    %v2216 = vpop.f32.mrf.mxu0
    %v2217 = vadd.f32 %v2121, %v2216
    %v2218 = vpop.f32.mrf.mxu0
    %2219 = vmatprep.mubr.bf16.mxu0 0
    %2220 = vmatmul.mubr.bf16.gmra.mxu0 %v2070
    %v2221 = vpop.f32.mrf.mxu0
    %v2222 = vadd.f32 %v2121, %v2221
    %v2223 = vpop.f32.mrf.mxu0
    %v2224 = vpop.f32.mrf.mxu0
    %v2225 = vadd.f32 %v2121, %v2224
    %v2226 = vpop.f32.mrf.mxu0
    %2227 = vmatprep.mubr.bf16.mxu0 0
    %2228 = vmatmul.mubr.bf16.gmra.mxu0 %v2071
    %v2229 = vpop.f32.mrf.mxu0
    %v2230 = vadd.f32 %v2121, %v2229
    %v2231 = vpop.f32.mrf.mxu0
    %v2232 = vpop.f32.mrf.mxu0
    %v2233 = vadd.f32 %v2121, %v2232
    %v2234 = vpop.f32.mrf.mxu0
    %2235 = vmatprep.mubr.bf16.mxu0 0
    %2236 = vmatmul.mubr.bf16.gmra.mxu0 %v2072
    %v2237 = vpop.f32.mrf.mxu0
    %v2238 = vadd.f32 %v2121, %v2237
    %v2239 = vpop.f32.mrf.mxu0
    %v2240 = vpop.f32.mrf.mxu0
    %v2241 = vadd.f32 %v2121, %v2240
    %v2242 = vpop.f32.mrf.mxu0
    %2243 = vmatprep.mubr.bf16.mxu0 0
    %2244 = vmatmul.mubr.bf16.gmra.mxu0 %v2073
    %v2245 = vpop.f32.mrf.mxu0
    %v2246 = vadd.f32 %v2121, %v2245
    %v2247 = vpop.f32.mrf.mxu0
    %v2248 = vpop.f32.mrf.mxu0
    %v2249 = vadd.f32 %v2121, %v2248
    %v2250 = vpop.f32.mrf.mxu0
    %2251 = vmatprep.mubr.bf16.mxu0 0
    %2252 = vmatmul.mubr.bf16.gmra.mxu0 %v2074
    %v2253 = vpop.f32.mrf.mxu0
    %v2254 = vadd.f32 %v2121, %v2253
    %v2255 = vpop.f32.mrf.mxu0
    %v2256 = vpop.f32.mrf.mxu0
    %v2257 = vadd.f32 %v2121, %v2256
    %v2258 = vpop.f32.mrf.mxu0
    %2259 = vmatprep.mubr.bf16.mxu0 0
    %2260 = vmatmul.mubr.bf16.gmra.mxu0 %v2075
    %v2261 = vpop.f32.mrf.mxu0
    %v2262 = vadd.f32 %v2121, %v2261
    %v2263 = vpop.f32.mrf.mxu0
    %v2264 = vpop.f32.mrf.mxu0
    %v2265 = vadd.f32 %v2121, %v2264
    %v2266 = vpop.f32.mrf.mxu0
    %2267 = vmatprep.mubr.bf16.mxu0 0
    %2268 = vmatmul.mubr.bf16.gmra.mxu0 %v2076
    %v2269 = vpop.f32.mrf.mxu0
    %v2270 = vadd.f32 %v2121, %v2269
    %v2271 = vpop.f32.mrf.mxu0
    %v2272 = vpop.f32.mrf.mxu0
    %v2273 = vadd.f32 %v2121, %v2272
    %v2274 = vpop.f32.mrf.mxu0
    %2275 = vmatprep.mubr.bf16.mxu0 0
    %2276 = vmatmul.mubr.bf16.gmra.mxu0 %v2077
    %v2277 = vpop.f32.mrf.mxu0
    %v2278 = vadd.f32 %v2121, %v2277
    %v2279 = vpop.f32.mrf.mxu0
    %v2280 = vpop.f32.mrf.mxu0
    %v2281 = vadd.f32 %v2121, %v2280
    %v2282 = vpop.f32.mrf.mxu0
    %2283 = vmatprep.mubr.bf16.mxu0 0
    %2284 = vmatmul.mubr.bf16.gmra.mxu0 %v2078
    %v2285 = vpop.f32.mrf.mxu0
    %v2286 = vadd.f32 %v2121, %v2285
    %v2287 = vpop.f32.mrf.mxu0
    %v2288 = vpop.f32.mrf.mxu0
    %v2289 = vadd.f32 %v2121, %v2288
    %v2290 = vpop.f32.mrf.mxu0
    %2291 = vmatprep.mubr.bf16.mxu0 0
    %2292 = vmatmul.mubr.bf16.gmra.mxu0 %v2079
    %v2293 = vpop.f32.mrf.mxu0
    %v2294 = vadd.f32 %v2121, %v2293
    %v2295 = vpop.f32.mrf.mxu0
    %v2296 = vpop.f32.mrf.mxu0
    %v2297 = vadd.f32 %v2121, %v2296
    %v2298 = vpop.f32.mrf.mxu0
    %2299 = vmatprep.mubr.bf16.mxu0 0
    %2300 = vmatmul.mubr.bf16.gmra.mxu0 %v2080
    %v2301 = vpop.f32.mrf.mxu0
    %v2302 = vadd.f32 %v2121, %v2301
    %v2303 = vpop.f32.mrf.mxu0
    %v2304 = vpop.f32.mrf.mxu0
    %v2305 = vadd.f32 %v2121, %v2304
    %v2306 = vpop.f32.mrf.mxu0
    %2307 = vmatprep.mubr.bf16.mxu0 0
    %2308 = vmatmul.mubr.bf16.gmra.mxu0 %v2081
    %v2309 = vpop.f32.mrf.mxu0
    %v2310 = vadd.f32 %v2121, %v2309
    %v2311 = vpop.f32.mrf.mxu0
    %v2312 = vpop.f32.mrf.mxu0
    %v2313 = vadd.f32 %v2121, %v2312
    %v2314 = vpop.f32.mrf.mxu0
    %2315 = vmatprep.mubr.bf16.mxu0 0
    %2316 = vmatmul.mubr.bf16.gmra.mxu0 %v2082
    %v2317 = vpop.f32.mrf.mxu0
    %v2318 = vadd.f32 %v2121, %v2317
    %v2319 = vpop.f32.mrf.mxu0
    %v2320 = vpop.f32.mrf.mxu0
    %v2321 = vadd.f32 %v2121, %v2320
    %v2322 = vpop.f32.mrf.mxu0
    %2323 = vmatprep.mubr.bf16.mxu0 0
    %2324 = vmatmul.mubr.bf16.gmra.mxu0 %v2083
    %v2325 = vpop.f32.mrf.mxu0
    %v2326 = vadd.f32 %v2121, %v2325
    %v2327 = vpop.f32.mrf.mxu0
    %v2328 = vpop.f32.mrf.mxu0
    %v2329 = vadd.f32 %v2121, %v2328
    %v2330 = vpop.f32.mrf.mxu0
    %2331 = vmatprep.mubr.bf16.mxu0 0
    %2332 = vmatmul.mubr.bf16.gmra.mxu0 %v2084
    %v2333 = vpop.f32.mrf.mxu0
    %v2334 = vadd.f32 %v2121, %v2333
    %v2335 = vpop.f32.mrf.mxu0
    %v2336 = vpop.f32.mrf.mxu0
    %v2337 = vadd.f32 %v2121, %v2336
    %v2338 = vpop.f32.mrf.mxu0
    %2339 = vmatprep.mubr.bf16.mxu0 0
    %2340 = vmatmul.mubr.bf16.gmra.mxu0 %v2085
    %v2341 = vpop.f32.mrf.mxu0
    %v2342 = vadd.f32 %v2121, %v2341
    %v2343 = vpop.f32.mrf.mxu0
    %v2344 = vpop.f32.mrf.mxu0
    %v2345 = vadd.f32 %v2121, %v2344
    %v2346 = vpop.f32.mrf.mxu0
    %2347 = vmatprep.mubr.bf16.mxu0 0
    %2348 = vmatmul.mubr.bf16.gmra.mxu0 %v2086
    %v2349 = vpop.f32.mrf.mxu0
    %v2350 = vadd.f32 %v2121, %v2349
    %v2351 = vpop.f32.mrf.mxu0
    %v2352 = vpop.f32.mrf.mxu0
    %v2353 = vadd.f32 %v2121, %v2352
    %v2354 = vpop.f32.mrf.mxu0
    %2355 = vmatprep.mubr.bf16.mxu0 0
    %2356 = vmatmul.mubr.bf16.gmra.mxu0 %v2087
    %v2357 = vpop.f32.mrf.mxu0
    %v2358 = vadd.f32 %v2121, %v2357
    %v2359 = vpop.f32.mrf.mxu0
    %v2360 = vpop.f32.mrf.mxu0
    %v2361 = vadd.f32 %v2121, %v2360
    %v2362 = vpop.f32.mrf.mxu0
    %2363 = vmatprep.mubr.bf16.mxu0 0
    %2364 = vmatmul.mubr.bf16.gmra.mxu0 %v2088
    %v2365 = vpop.f32.mrf.mxu0
    %v2366 = vadd.f32 %v2121, %v2365
    %v2367 = vpop.f32.mrf.mxu0
    %v2368 = vpop.f32.mrf.mxu0
    %v2369 = vadd.f32 %v2121, %v2368
    %v2370 = vpop.f32.mrf.mxu0
    %2371 = vmatprep.mubr.bf16.mxu0 0
    %2372 = vmatmul.mubr.bf16.gmra.mxu0 %v2089
    %v2373 = vpop.f32.mrf.mxu0
    %v2374 = vadd.f32 %v2121, %v2373
    %v2375 = vpop.f32.mrf.mxu0
    %v2376 = vpop.f32.mrf.mxu0
    %v2377 = vadd.f32 %v2121, %v2376
    %v2378 = vpop.f32.mrf.mxu0
    %2379 = vmatprep.mubr.bf16.mxu0 0
    %2380 = vmatmul.mubr.bf16.gmra.mxu0 %v2090
    %v2381 = vpop.f32.mrf.mxu0
    %v2382 = vadd.f32 %v2121, %v2381
    %v2383 = vpop.f32.mrf.mxu0
    %v2384 = vpop.f32.mrf.mxu0
    %v2385 = vadd.f32 %v2121, %v2384
    %v2386 = vpop.f32.mrf.mxu0
    %2387 = vmatprep.mubr.bf16.mxu0 0
    %2388 = vmatmul.mubr.bf16.gmra.mxu0 %v2091
    %v2389 = vpop.f32.mrf.mxu0
    %v2390 = vadd.f32 %v2121, %v2389
    %v2391 = vpop.f32.mrf.mxu0
    %v2392 = vpop.f32.mrf.mxu0
    %v2393 = vadd.f32 %v2121, %v2392
    %v2394 = vpop.f32.mrf.mxu0
    %2395 = vmatprep.mubr.bf16.mxu0 0
    %2396 = vmatmul.mubr.bf16.gmra.mxu0 %v2092
    %v2397 = vpop.f32.mrf.mxu0
    %v2398 = vadd.f32 %v2121, %v2397
    %v2399 = vpop.f32.mrf.mxu0
    %v2400 = vpop.f32.mrf.mxu0
    %v2401 = vadd.f32 %v2121, %v2400
    %v2402 = vpop.f32.mrf.mxu0
    %2403 = vmatprep.mubr.bf16.mxu0 0
    %2404 = vmatmul.mubr.bf16.gmra.mxu0 %v2093
    %v2405 = vpop.f32.mrf.mxu0
    %v2406 = vadd.f32 %v2121, %v2405
    %v2407 = vpop.f32.mrf.mxu0
    %v2408 = vpop.f32.mrf.mxu0
    %v2409 = vadd.f32 %v2121, %v2408
    %v2410 = vpop.f32.mrf.mxu0
    %2411 = vmatprep.mubr.bf16.mxu0 0
    %2412 = vmatmul.mubr.bf16.gmra.mxu0 %v2094
    %v2413 = vpop.f32.mrf.mxu0
    %v2414 = vadd.f32 %v2121, %v2413
    %v2415 = vpop.f32.mrf.mxu0
    %v2416 = vpop.f32.mrf.mxu0
    %v2417 = vadd.f32 %v2121, %v2416
    %v2418 = vpop.f32.mrf.mxu0
    %2419 = vmatprep.mubr.bf16.mxu0 0
    %2420 = vmatmul.mubr.bf16.gmra.mxu0 %v2095
    %v2421 = vpop.f32.mrf.mxu0
    %v2422 = vadd.f32 %v2121, %v2421
    %v2423 = vpop.f32.mrf.mxu0
    %v2424 = vpop.f32.mrf.mxu0
    %v2425 = vadd.f32 %v2121, %v2424
    %v2426 = vpop.f32.mrf.mxu0
    %2427 = vmatprep.mubr.bf16.mxu0 0
    %2428 = vmatmul.mubr.bf16.gmra.mxu0 %v2096
    %v2429 = vpop.f32.mrf.mxu0
    %v2430 = vadd.f32 %v2121, %v2429
    %v2431 = vpop.f32.mrf.mxu0
    %v2432 = vpop.f32.mrf.mxu0
    %v2433 = vadd.f32 %v2121, %v2432
    %v2434 = vpop.f32.mrf.mxu0
    %2435 = vmatprep.mubr.bf16.mxu0 0
    %2436 = vmatmul.mubr.bf16.gmra.mxu0 %v2097
    %v2437 = vpop.f32.mrf.mxu0
    %v2438 = vadd.f32 %v2121, %v2437
    %v2439 = vpop.f32.mrf.mxu0
    %v2440 = vpop.f32.mrf.mxu0
    %v2441 = vadd.f32 %v2121, %v2440
    %v2442 = vpop.f32.mrf.mxu0
    %2443 = vmatprep.mubr.bf16.mxu0 0
    %2444 = vmatmul.mubr.bf16.gmra.mxu0 %v2098
    %v2445 = vpop.f32.mrf.mxu0
    %v2446 = vadd.f32 %v2121, %v2445
    %v2447 = vpop.f32.mrf.mxu0
    %v2448 = vpop.f32.mrf.mxu0
    %v2449 = vadd.f32 %v2121, %v2448
    %v2450 = vpop.f32.mrf.mxu0
    %2451 = vmatprep.mubr.bf16.mxu0 0
    %2452 = vmatmul.mubr.bf16.gmra.mxu0 %v2099
    %v2453 = vpop.f32.mrf.mxu0
    %v2454 = vadd.f32 %v2121, %v2453
    %v2455 = vpop.f32.mrf.mxu0
    %v2456 = vpop.f32.mrf.mxu0
    %v2457 = vadd.f32 %v2121, %v2456
    %v2458 = vpop.f32.mrf.mxu0
    %2459 = vdwg.mxu0
    %v2460 = vpack.c.bf16 %v2209, %v2206
    %v2461 = vpack.c.bf16 %v2217, %v2214
    %v2462 = vpack.c.bf16 %v2225, %v2222
    %v2463 = vpack.c.bf16 %v2233, %v2230
    %v2464 = vpack.c.bf16 %v2241, %v2238
    %v2465 = vpack.c.bf16 %v2249, %v2246
    %v2466 = vpack.c.bf16 %v2257, %v2254
    %v2467 = vpack.c.bf16 %v2265, %v2262
    %v2468 = vpack.c.bf16 %v2273, %v2270
    %v2469 = vpack.c.bf16 %v2281, %v2278
    %v2470 = vpack.c.bf16 %v2289, %v2286
    %v2471 = vpack.c.bf16 %v2297, %v2294
    %v2472 = vpack.c.bf16 %v2305, %v2302
    %v2473 = vpack.c.bf16 %v2313, %v2310
    %v2474 = vpack.c.bf16 %v2321, %v2318
    %v2475 = vpack.c.bf16 %v2329, %v2326
    %v2476 = vpack.c.bf16 %v2337, %v2334
    %v2477 = vpack.c.bf16 %v2345, %v2342
    %v2478 = vpack.c.bf16 %v2353, %v2350
    %v2479 = vpack.c.bf16 %v2361, %v2358
    %v2480 = vpack.c.bf16 %v2369, %v2366
    %v2481 = vpack.c.bf16 %v2377, %v2374
    %v2482 = vpack.c.bf16 %v2385, %v2382
    %v2483 = vpack.c.bf16 %v2393, %v2390
    %v2484 = vpack.c.bf16 %v2401, %v2398
    %v2485 = vpack.c.bf16 %v2409, %v2406
    %v2486 = vpack.c.bf16 %v2417, %v2414
    %v2487 = vpack.c.bf16 %v2425, %v2422
    %v2488 = vpack.c.bf16 %v2433, %v2430
    %v2489 = vpack.c.bf16 %v2441, %v2438
    %v2490 = vpack.c.bf16 %v2449, %v2446
    %v2491 = vpack.c.bf16 %v2457, %v2454
    %v2492 = vmax.bf16 %v2460, 0
    %v2493 = vmax.bf16 %v2461, 0
    %v2494 = vmax.bf16 %v2462, 0
    %v2495 = vmax.bf16 %v2463, 0
    %v2496 = vmax.bf16 %v2464, 0
    %v2497 = vmax.bf16 %v2465, 0
    %v2498 = vmax.bf16 %v2466, 0
    %v2499 = vmax.bf16 %v2467, 0
    %v2500 = vmax.bf16 %v2468, 0
    %v2501 = vmax.bf16 %v2469, 0
    %v2502 = vmax.bf16 %v2470, 0
    %v2503 = vmax.bf16 %v2471, 0
    %v2504 = vmax.bf16 %v2472, 0
    %v2505 = vmax.bf16 %v2473, 0
    %v2506 = vmax.bf16 %v2474, 0
    %v2507 = vmax.bf16 %v2475, 0
    %v2508 = vmax.bf16 %v2476, 0
    %v2509 = vmax.bf16 %v2477, 0
    %v2510 = vmax.bf16 %v2478, 0
    %v2511 = vmax.bf16 %v2479, 0
    %v2512 = vmax.bf16 %v2480, 0
    %v2513 = vmax.bf16 %v2481, 0
    %v2514 = vmax.bf16 %v2482, 0
    %v2515 = vmax.bf16 %v2483, 0
    %v2516 = vmax.bf16 %v2484, 0
    %v2517 = vmax.bf16 %v2485, 0
    %v2518 = vmax.bf16 %v2486, 0
    %v2519 = vmax.bf16 %v2487, 0
    %v2520 = vmax.bf16 %v2488, 0
    %v2521 = vmax.bf16 %v2489, 0
    %v2522 = vmax.bf16 %v2490, 0
    %v2523 = vmax.bf16 %v2491, 0
    %v2524 = vld [vmem:[#allocation13] sm:$0xf]
    %v2525 = vld [vmem:[#allocation13 + $0x4] sm:$0xf]
    %v2526 = vld [vmem:[#allocation13 + $0x8] sm:$0xf]
    %v2527 = vld [vmem:[#allocation13 + $0xc] sm:$0xf]
    %v2528 = vld [vmem:[#allocation13 + $0x10] sm:$0xf]
    %v2529 = vld [vmem:[#allocation13 + $0x14] sm:$0xf]
    %v2530 = vld [vmem:[#allocation13 + $0x18] sm:$0xf]
    %v2531 = vld [vmem:[#allocation13 + $0x1c] sm:$0xf]
    %v2532 = vld [vmem:[#allocation13 + $0x20] sm:$0xf]
    %v2533 = vld [vmem:[#allocation13 + $0x24] sm:$0xf]
    %v2534 = vld [vmem:[#allocation13 + $0x28] sm:$0xf]
    %v2535 = vld [vmem:[#allocation13 + $0x2c] sm:$0xf]
    %v2536 = vld [vmem:[#allocation13 + $0x30] sm:$0xf]
    %v2537 = vld [vmem:[#allocation13 + $0x34] sm:$0xf]
    %v2538 = vld [vmem:[#allocation13 + $0x38] sm:$0xf]
    %v2539 = vld [vmem:[#allocation13 + $0x3c] sm:$0xf]
    %v2540 = vld [vmem:[%s12] sm:$0x1]
    %v2542 = vlaneseq
    %v2543 = vshrl.u32 %v2542, 7
    %v2544 = vsub.s32 0, %v2543
    %v2545 = vrot.slane %v2540, %v2544
    %v2563 = vunpack.c.l.b16 %v2524
    %v2564 = vunpack.c.l.b16 %v2525
    %v2565 = vunpack.c.l.b16 %v2526
    %v2566 = vunpack.c.l.b16 %v2527
    %v2567 = vunpack.c.l.b16 %v2528
    %v2568 = vunpack.c.l.b16 %v2529
    %v2569 = vunpack.c.l.b16 %v2530
    %v2570 = vunpack.c.l.b16 %v2531
    %v2571 = vunpack.c.l.b16 %v2532
    %v2572 = vunpack.c.l.b16 %v2533
    %v2573 = vunpack.c.l.b16 %v2534
    %v2574 = vunpack.c.l.b16 %v2535
    %v2575 = vunpack.c.l.b16 %v2536
    %v2576 = vunpack.c.l.b16 %v2537
    %v2577 = vunpack.c.l.b16 %v2538
    %v2578 = vunpack.c.l.b16 %v2539
    %v2579 = vpack.c.b16 %v2564, %v2563
    %v2580 = vpack.c.b16 %v2566, %v2565
    %v2581 = vpack.c.b16 %v2568, %v2567
    %v2582 = vpack.c.b16 %v2570, %v2569
    %v2583 = vpack.c.b16 %v2572, %v2571
    %v2584 = vpack.c.b16 %v2574, %v2573
    %v2585 = vpack.c.b16 %v2576, %v2575
    %v2586 = vpack.c.b16 %v2578, %v2577
    %2595 = vmatprep.subr.bf16.mxu0 0
    %2596 = vmatpush1.bf16.msra.mxu0 %v2586
    %2597 = vmatprep.subr.bf16.mxu0 0
    %2598 = vmatpush1.bf16.msra.mxu0 %v2585
    %2599 = vmatprep.subr.bf16.mxu0 0
    %2600 = vmatpush1.bf16.msra.mxu0 %v2584
    %2601 = vmatprep.subr.bf16.mxu0 0
    %2602 = vmatpush1.bf16.msra.mxu0 %v2583
    %2603 = vmatprep.subr.bf16.mxu0 0
    %2604 = vmatpush1.bf16.msra.mxu0 %v2582
    %2605 = vmatprep.subr.bf16.mxu0 0
    %2606 = vmatpush1.bf16.msra.mxu0 %v2581
    %2607 = vmatprep.subr.bf16.mxu0 0
    %2608 = vmatpush1.bf16.msra.mxu0 %v2580
    %2609 = vmatprep.subr.bf16.mxu0 0
    %2610 = vmatpush1.bf16.msra.mxu0 %v2579
    %2611 = vmatprep.subr.bf16.mxu0 0
    %2612 = vmatpush2.bf16.msra.mxu0 0
    %2613 = vmatprep.subr.bf16.mxu0 0
    %2614 = vmatpush2.bf16.msra.mxu0 0
    %2615 = vmatprep.subr.bf16.mxu0 0
    %2616 = vmatpush2.bf16.msra.mxu0 0
    %2617 = vmatprep.subr.bf16.mxu0 0
    %2618 = vmatpush2.bf16.msra.mxu0 0
    %2619 = vmatprep.subr.bf16.mxu0 0
    %2620 = vmatpush2.bf16.msra.mxu0 0
    %2621 = vmatprep.subr.bf16.mxu0 0
    %2622 = vmatpush2.bf16.msra.mxu0 0
    %2623 = vmatprep.subr.bf16.mxu0 0
    %2624 = vmatpush2.bf16.msra.mxu0 0
    %2625 = vmatprep.subr.bf16.mxu0 0
    %2626 = vmatpush2.bf16.msra.mxu0 0
    %2627 = vmatprep.mubr.bf16.mxu0 0
    %2628 = vmatmul.mubr.bf16.gmra.mxu0 %v2492
    %v2629 = vpop.f32.mrf.mxu0
    %v2630 = vadd.f32 %v2545, %v2629
    %v2631 = vpop.f32.mrf.mxu0
    %v2632 = vpop.f32.mrf.mxu0
    %v2633 = vadd.f32 %v2545, %v2632
    %v2634 = vpop.f32.mrf.mxu0
    %2635 = vmatprep.mubr.bf16.mxu0 0
    %2636 = vmatmul.mubr.bf16.gmra.mxu0 %v2493
    %v2637 = vpop.f32.mrf.mxu0
    %v2638 = vadd.f32 %v2545, %v2637
    %v2639 = vpop.f32.mrf.mxu0
    %v2640 = vpop.f32.mrf.mxu0
    %v2641 = vadd.f32 %v2545, %v2640
    %v2642 = vpop.f32.mrf.mxu0
    %2643 = vmatprep.mubr.bf16.mxu0 0
    %2644 = vmatmul.mubr.bf16.gmra.mxu0 %v2494
    %v2645 = vpop.f32.mrf.mxu0
    %v2646 = vadd.f32 %v2545, %v2645
    %v2647 = vpop.f32.mrf.mxu0
    %v2648 = vpop.f32.mrf.mxu0
    %v2649 = vadd.f32 %v2545, %v2648
    %v2650 = vpop.f32.mrf.mxu0
    %2651 = vmatprep.mubr.bf16.mxu0 0
    %2652 = vmatmul.mubr.bf16.gmra.mxu0 %v2495
    %v2653 = vpop.f32.mrf.mxu0
    %v2654 = vadd.f32 %v2545, %v2653
    %v2655 = vpop.f32.mrf.mxu0
    %v2656 = vpop.f32.mrf.mxu0
    %v2657 = vadd.f32 %v2545, %v2656
    %v2658 = vpop.f32.mrf.mxu0
    %2659 = vmatprep.mubr.bf16.mxu0 0
    %2660 = vmatmul.mubr.bf16.gmra.mxu0 %v2496
    %v2661 = vpop.f32.mrf.mxu0
    %v2662 = vadd.f32 %v2545, %v2661
    %v2663 = vpop.f32.mrf.mxu0
    %v2664 = vpop.f32.mrf.mxu0
    %v2665 = vadd.f32 %v2545, %v2664
    %v2666 = vpop.f32.mrf.mxu0
    %2667 = vmatprep.mubr.bf16.mxu0 0
    %2668 = vmatmul.mubr.bf16.gmra.mxu0 %v2497
    %v2669 = vpop.f32.mrf.mxu0
    %v2670 = vadd.f32 %v2545, %v2669
    %v2671 = vpop.f32.mrf.mxu0
    %v2672 = vpop.f32.mrf.mxu0
    %v2673 = vadd.f32 %v2545, %v2672
    %v2674 = vpop.f32.mrf.mxu0
    %2675 = vmatprep.mubr.bf16.mxu0 0
    %2676 = vmatmul.mubr.bf16.gmra.mxu0 %v2498
    %v2677 = vpop.f32.mrf.mxu0
    %v2678 = vadd.f32 %v2545, %v2677
    %v2679 = vpop.f32.mrf.mxu0
    %v2680 = vpop.f32.mrf.mxu0
    %v2681 = vadd.f32 %v2545, %v2680
    %v2682 = vpop.f32.mrf.mxu0
    %2683 = vmatprep.mubr.bf16.mxu0 0
    %2684 = vmatmul.mubr.bf16.gmra.mxu0 %v2499
    %v2685 = vpop.f32.mrf.mxu0
    %v2686 = vadd.f32 %v2545, %v2685
    %v2687 = vpop.f32.mrf.mxu0
    %v2688 = vpop.f32.mrf.mxu0
    %v2689 = vadd.f32 %v2545, %v2688
    %v2690 = vpop.f32.mrf.mxu0
    %2691 = vmatprep.mubr.bf16.mxu0 0
    %2692 = vmatmul.mubr.bf16.gmra.mxu0 %v2500
    %v2693 = vpop.f32.mrf.mxu0
    %v2694 = vadd.f32 %v2545, %v2693
    %v2695 = vpop.f32.mrf.mxu0
    %v2696 = vpop.f32.mrf.mxu0
    %v2697 = vadd.f32 %v2545, %v2696
    %v2698 = vpop.f32.mrf.mxu0
    %2699 = vmatprep.mubr.bf16.mxu0 0
    %2700 = vmatmul.mubr.bf16.gmra.mxu0 %v2501
    %v2701 = vpop.f32.mrf.mxu0
    %v2702 = vadd.f32 %v2545, %v2701
    %v2703 = vpop.f32.mrf.mxu0
    %v2704 = vpop.f32.mrf.mxu0
    %v2705 = vadd.f32 %v2545, %v2704
    %v2706 = vpop.f32.mrf.mxu0
    %2707 = vmatprep.mubr.bf16.mxu0 0
    %2708 = vmatmul.mubr.bf16.gmra.mxu0 %v2502
    %v2709 = vpop.f32.mrf.mxu0
    %v2710 = vadd.f32 %v2545, %v2709
    %v2711 = vpop.f32.mrf.mxu0
    %v2712 = vpop.f32.mrf.mxu0
    %v2713 = vadd.f32 %v2545, %v2712
    %v2714 = vpop.f32.mrf.mxu0
    %2715 = vmatprep.mubr.bf16.mxu0 0
    %2716 = vmatmul.mubr.bf16.gmra.mxu0 %v2503
    %v2717 = vpop.f32.mrf.mxu0
    %v2718 = vadd.f32 %v2545, %v2717
    %v2719 = vpop.f32.mrf.mxu0
    %v2720 = vpop.f32.mrf.mxu0
    %v2721 = vadd.f32 %v2545, %v2720
    %v2722 = vpop.f32.mrf.mxu0
    %2723 = vmatprep.mubr.bf16.mxu0 0
    %2724 = vmatmul.mubr.bf16.gmra.mxu0 %v2504
    %v2725 = vpop.f32.mrf.mxu0
    %v2726 = vadd.f32 %v2545, %v2725
    %v2727 = vpop.f32.mrf.mxu0
    %v2728 = vpop.f32.mrf.mxu0
    %v2729 = vadd.f32 %v2545, %v2728
    %v2730 = vpop.f32.mrf.mxu0
    %2731 = vmatprep.mubr.bf16.mxu0 0
    %2732 = vmatmul.mubr.bf16.gmra.mxu0 %v2505
    %v2733 = vpop.f32.mrf.mxu0
    %v2734 = vadd.f32 %v2545, %v2733
    %v2735 = vpop.f32.mrf.mxu0
    %v2736 = vpop.f32.mrf.mxu0
    %v2737 = vadd.f32 %v2545, %v2736
    %v2738 = vpop.f32.mrf.mxu0
    %2739 = vmatprep.mubr.bf16.mxu0 0
    %2740 = vmatmul.mubr.bf16.gmra.mxu0 %v2506
    %v2741 = vpop.f32.mrf.mxu0
    %v2742 = vadd.f32 %v2545, %v2741
    %v2743 = vpop.f32.mrf.mxu0
    %v2744 = vpop.f32.mrf.mxu0
    %v2745 = vadd.f32 %v2545, %v2744
    %v2746 = vpop.f32.mrf.mxu0
    %2747 = vmatprep.mubr.bf16.mxu0 0
    %2748 = vmatmul.mubr.bf16.gmra.mxu0 %v2507
    %v2749 = vpop.f32.mrf.mxu0
    %v2750 = vadd.f32 %v2545, %v2749
    %v2751 = vpop.f32.mrf.mxu0
    %v2752 = vpop.f32.mrf.mxu0
    %v2753 = vadd.f32 %v2545, %v2752
    %v2754 = vpop.f32.mrf.mxu0
    %2755 = vmatprep.mubr.bf16.mxu0 0
    %2756 = vmatmul.mubr.bf16.gmra.mxu0 %v2508
    %v2757 = vpop.f32.mrf.mxu0
    %v2758 = vadd.f32 %v2545, %v2757
    %v2759 = vpop.f32.mrf.mxu0
    %v2760 = vpop.f32.mrf.mxu0
    %v2761 = vadd.f32 %v2545, %v2760
    %v2762 = vpop.f32.mrf.mxu0
    %2763 = vmatprep.mubr.bf16.mxu0 0
    %2764 = vmatmul.mubr.bf16.gmra.mxu0 %v2509
    %v2765 = vpop.f32.mrf.mxu0
    %v2766 = vadd.f32 %v2545, %v2765
    %v2767 = vpop.f32.mrf.mxu0
    %v2768 = vpop.f32.mrf.mxu0
    %v2769 = vadd.f32 %v2545, %v2768
    %v2770 = vpop.f32.mrf.mxu0
    %2771 = vmatprep.mubr.bf16.mxu0 0
    %2772 = vmatmul.mubr.bf16.gmra.mxu0 %v2510
    %v2773 = vpop.f32.mrf.mxu0
    %v2774 = vadd.f32 %v2545, %v2773
    %v2775 = vpop.f32.mrf.mxu0
    %v2776 = vpop.f32.mrf.mxu0
    %v2777 = vadd.f32 %v2545, %v2776
    %v2778 = vpop.f32.mrf.mxu0
    %2779 = vmatprep.mubr.bf16.mxu0 0
    %2780 = vmatmul.mubr.bf16.gmra.mxu0 %v2511
    %v2781 = vpop.f32.mrf.mxu0
    %v2782 = vadd.f32 %v2545, %v2781
    %v2783 = vpop.f32.mrf.mxu0
    %v2784 = vpop.f32.mrf.mxu0
    %v2785 = vadd.f32 %v2545, %v2784
    %v2786 = vpop.f32.mrf.mxu0
    %2787 = vmatprep.mubr.bf16.mxu0 0
    %2788 = vmatmul.mubr.bf16.gmra.mxu0 %v2512
    %v2789 = vpop.f32.mrf.mxu0
    %v2790 = vadd.f32 %v2545, %v2789
    %v2791 = vpop.f32.mrf.mxu0
    %v2792 = vpop.f32.mrf.mxu0
    %v2793 = vadd.f32 %v2545, %v2792
    %v2794 = vpop.f32.mrf.mxu0
    %2795 = vmatprep.mubr.bf16.mxu0 0
    %2796 = vmatmul.mubr.bf16.gmra.mxu0 %v2513
    %v2797 = vpop.f32.mrf.mxu0
    %v2798 = vadd.f32 %v2545, %v2797
    %v2799 = vpop.f32.mrf.mxu0
    %v2800 = vpop.f32.mrf.mxu0
    %v2801 = vadd.f32 %v2545, %v2800
    %v2802 = vpop.f32.mrf.mxu0
    %2803 = vmatprep.mubr.bf16.mxu0 0
    %2804 = vmatmul.mubr.bf16.gmra.mxu0 %v2514
    %v2805 = vpop.f32.mrf.mxu0
    %v2806 = vadd.f32 %v2545, %v2805
    %v2807 = vpop.f32.mrf.mxu0
    %v2808 = vpop.f32.mrf.mxu0
    %v2809 = vadd.f32 %v2545, %v2808
    %v2810 = vpop.f32.mrf.mxu0
    %2811 = vmatprep.mubr.bf16.mxu0 0
    %2812 = vmatmul.mubr.bf16.gmra.mxu0 %v2515
    %v2813 = vpop.f32.mrf.mxu0
    %v2814 = vadd.f32 %v2545, %v2813
    %v2815 = vpop.f32.mrf.mxu0
    %v2816 = vpop.f32.mrf.mxu0
    %v2817 = vadd.f32 %v2545, %v2816
    %v2818 = vpop.f32.mrf.mxu0
    %2819 = vmatprep.mubr.bf16.mxu0 0
    %2820 = vmatmul.mubr.bf16.gmra.mxu0 %v2516
    %v2821 = vpop.f32.mrf.mxu0
    %v2822 = vadd.f32 %v2545, %v2821
    %v2823 = vpop.f32.mrf.mxu0
    %v2824 = vpop.f32.mrf.mxu0
    %v2825 = vadd.f32 %v2545, %v2824
    %v2826 = vpop.f32.mrf.mxu0
    %2827 = vmatprep.mubr.bf16.mxu0 0
    %2828 = vmatmul.mubr.bf16.gmra.mxu0 %v2517
    %v2829 = vpop.f32.mrf.mxu0
    %v2830 = vadd.f32 %v2545, %v2829
    %v2831 = vpop.f32.mrf.mxu0
    %v2832 = vpop.f32.mrf.mxu0
    %v2833 = vadd.f32 %v2545, %v2832
    %v2834 = vpop.f32.mrf.mxu0
    %2835 = vmatprep.mubr.bf16.mxu0 0
    %2836 = vmatmul.mubr.bf16.gmra.mxu0 %v2518
    %v2837 = vpop.f32.mrf.mxu0
    %v2838 = vadd.f32 %v2545, %v2837
    %v2839 = vpop.f32.mrf.mxu0
    %v2840 = vpop.f32.mrf.mxu0
    %v2841 = vadd.f32 %v2545, %v2840
    %v2842 = vpop.f32.mrf.mxu0
    %2843 = vmatprep.mubr.bf16.mxu0 0
    %2844 = vmatmul.mubr.bf16.gmra.mxu0 %v2519
    %v2845 = vpop.f32.mrf.mxu0
    %v2846 = vadd.f32 %v2545, %v2845
    %v2847 = vpop.f32.mrf.mxu0
    %v2848 = vpop.f32.mrf.mxu0
    %v2849 = vadd.f32 %v2545, %v2848
    %v2850 = vpop.f32.mrf.mxu0
    %2851 = vmatprep.mubr.bf16.mxu0 0
    %2852 = vmatmul.mubr.bf16.gmra.mxu0 %v2520
    %v2853 = vpop.f32.mrf.mxu0
    %v2854 = vadd.f32 %v2545, %v2853
    %v2855 = vpop.f32.mrf.mxu0
    %v2856 = vpop.f32.mrf.mxu0
    %v2857 = vadd.f32 %v2545, %v2856
    %v2858 = vpop.f32.mrf.mxu0
    %2859 = vmatprep.mubr.bf16.mxu0 0
    %2860 = vmatmul.mubr.bf16.gmra.mxu0 %v2521
    %v2861 = vpop.f32.mrf.mxu0
    %v2862 = vadd.f32 %v2545, %v2861
    %v2863 = vpop.f32.mrf.mxu0
    %v2864 = vpop.f32.mrf.mxu0
    %v2865 = vadd.f32 %v2545, %v2864
    %v2866 = vpop.f32.mrf.mxu0
    %2867 = vmatprep.mubr.bf16.mxu0 0
    %2868 = vmatmul.mubr.bf16.gmra.mxu0 %v2522
    %v2869 = vpop.f32.mrf.mxu0
    %v2870 = vadd.f32 %v2545, %v2869
    %v2871 = vpop.f32.mrf.mxu0
    %v2872 = vpop.f32.mrf.mxu0
    %v2873 = vadd.f32 %v2545, %v2872
    %v2874 = vpop.f32.mrf.mxu0
    %2875 = vmatprep.mubr.bf16.mxu0 0
    %2876 = vmatmul.mubr.bf16.gmra.mxu0 %v2523
    %v2877 = vpop.f32.mrf.mxu0
    %v2878 = vadd.f32 %v2545, %v2877
    %v2879 = vpop.f32.mrf.mxu0
    %v2880 = vpop.f32.mrf.mxu0
    %v2881 = vadd.f32 %v2545, %v2880
    %v2882 = vpop.f32.mrf.mxu0
    %2883 = vdwg.mxu0
    %v2884 = vpack.c.bf16 %v2633, %v2630
    %v2885 = vpack.c.bf16 %v2641, %v2638
    %v2886 = vpack.c.bf16 %v2649, %v2646
    %v2887 = vpack.c.bf16 %v2657, %v2654
    %v2888 = vpack.c.bf16 %v2665, %v2662
    %v2889 = vpack.c.bf16 %v2673, %v2670
    %v2890 = vpack.c.bf16 %v2681, %v2678
    %v2891 = vpack.c.bf16 %v2689, %v2686
    %v2892 = vpack.c.bf16 %v2697, %v2694
    %v2893 = vpack.c.bf16 %v2705, %v2702
    %v2894 = vpack.c.bf16 %v2713, %v2710
    %v2895 = vpack.c.bf16 %v2721, %v2718
    %v2896 = vpack.c.bf16 %v2729, %v2726
    %v2897 = vpack.c.bf16 %v2737, %v2734
    %v2898 = vpack.c.bf16 %v2745, %v2742
    %v2899 = vpack.c.bf16 %v2753, %v2750
    %v2900 = vpack.c.bf16 %v2761, %v2758
    %v2901 = vpack.c.bf16 %v2769, %v2766
    %v2902 = vpack.c.bf16 %v2777, %v2774
    %v2903 = vpack.c.bf16 %v2785, %v2782
    %v2904 = vpack.c.bf16 %v2793, %v2790
    %v2905 = vpack.c.bf16 %v2801, %v2798
    %v2906 = vpack.c.bf16 %v2809, %v2806
    %v2907 = vpack.c.bf16 %v2817, %v2814
    %v2908 = vpack.c.bf16 %v2825, %v2822
    %v2909 = vpack.c.bf16 %v2833, %v2830
    %v2910 = vpack.c.bf16 %v2841, %v2838
    %v2911 = vpack.c.bf16 %v2849, %v2846
    %v2912 = vpack.c.bf16 %v2857, %v2854
    %v2913 = vpack.c.bf16 %v2865, %v2862
    %v2914 = vpack.c.bf16 %v2873, %v2870
    %v2915 = vpack.c.bf16 %v2881, %v2878
    %v2916 = vmax.bf16 %v2884, 0
    %v2917 = vmax.bf16 %v2885, 0
    %v2918 = vmax.bf16 %v2886, 0
    %v2919 = vmax.bf16 %v2887, 0
    %v2920 = vmax.bf16 %v2888, 0
    %v2921 = vmax.bf16 %v2889, 0
    %v2922 = vmax.bf16 %v2890, 0
    %v2923 = vmax.bf16 %v2891, 0
    %v2924 = vmax.bf16 %v2892, 0
    %v2925 = vmax.bf16 %v2893, 0
    %v2926 = vmax.bf16 %v2894, 0
    %v2927 = vmax.bf16 %v2895, 0
    %v2928 = vmax.bf16 %v2896, 0
    %v2929 = vmax.bf16 %v2897, 0
    %v2930 = vmax.bf16 %v2898, 0
    %v2931 = vmax.bf16 %v2899, 0
    %v2932 = vmax.bf16 %v2900, 0
    %v2933 = vmax.bf16 %v2901, 0
    %v2934 = vmax.bf16 %v2902, 0
    %v2935 = vmax.bf16 %v2903, 0
    %v2936 = vmax.bf16 %v2904, 0
    %v2937 = vmax.bf16 %v2905, 0
    %v2938 = vmax.bf16 %v2906, 0
    %v2939 = vmax.bf16 %v2907, 0
    %v2940 = vmax.bf16 %v2908, 0
    %v2941 = vmax.bf16 %v2909, 0
    %v2942 = vmax.bf16 %v2910, 0
    %v2943 = vmax.bf16 %v2911, 0
    %v2944 = vmax.bf16 %v2912, 0
    %v2945 = vmax.bf16 %v2913, 0
    %v2946 = vmax.bf16 %v2914, 0
    %v2947 = vmax.bf16 %v2915, 0
    %v2948 = vld [vmem:[#allocation14] sm:$0xf]
    %v2949 = vld [vmem:[#allocation14 + $0x4] sm:$0xf]
    %v2950 = vld [vmem:[#allocation14 + $0x8] sm:$0xf]
    %v2951 = vld [vmem:[#allocation14 + $0xc] sm:$0xf]
    %v2952 = vld [vmem:[#allocation14 + $0x10] sm:$0xf]
    %v2953 = vld [vmem:[#allocation14 + $0x14] sm:$0xf]
    %v2954 = vld [vmem:[#allocation14 + $0x18] sm:$0xf]
    %v2955 = vld [vmem:[#allocation14 + $0x1c] sm:$0xf]
    %v2956 = vld [vmem:[#allocation14 + $0x20] sm:$0xf]
    %v2957 = vld [vmem:[#allocation14 + $0x24] sm:$0xf]
    %v2958 = vld [vmem:[#allocation14 + $0x28] sm:$0xf]
    %v2959 = vld [vmem:[#allocation14 + $0x2c] sm:$0xf]
    %v2960 = vld [vmem:[#allocation14 + $0x30] sm:$0xf]
    %v2961 = vld [vmem:[#allocation14 + $0x34] sm:$0xf]
    %v2962 = vld [vmem:[#allocation14 + $0x38] sm:$0xf]
    %v2963 = vld [vmem:[#allocation14 + $0x3c] sm:$0xf]
    %v2964 = vld [vmem:[%s14] sm:$0x1]
    %v2966 = vlaneseq
    %v2967 = vshrl.u32 %v2966, 7
    %v2968 = vsub.s32 0, %v2967
    %v2969 = vrot.slane %v2964, %v2968
    %v2987 = vunpack.c.l.b16 %v2948
    %v2988 = vunpack.c.l.b16 %v2949
    %v2989 = vunpack.c.l.b16 %v2950
    %v2990 = vunpack.c.l.b16 %v2951
    %v2991 = vunpack.c.l.b16 %v2952
    %v2992 = vunpack.c.l.b16 %v2953
    %v2993 = vunpack.c.l.b16 %v2954
    %v2994 = vunpack.c.l.b16 %v2955
    %v2995 = vunpack.c.l.b16 %v2956
    %v2996 = vunpack.c.l.b16 %v2957
    %v2997 = vunpack.c.l.b16 %v2958
    %v2998 = vunpack.c.l.b16 %v2959
    %v2999 = vunpack.c.l.b16 %v2960
    %v3000 = vunpack.c.l.b16 %v2961
    %v3001 = vunpack.c.l.b16 %v2962
    %v3002 = vunpack.c.l.b16 %v2963
    %v3003 = vpack.c.b16 %v2988, %v2987
    %v3004 = vpack.c.b16 %v2990, %v2989
    %v3005 = vpack.c.b16 %v2992, %v2991
    %v3006 = vpack.c.b16 %v2994, %v2993
    %v3007 = vpack.c.b16 %v2996, %v2995
    %v3008 = vpack.c.b16 %v2998, %v2997
    %v3009 = vpack.c.b16 %v3000, %v2999
    %v3010 = vpack.c.b16 %v3002, %v3001
    %3019 = vmatprep.subr.bf16.mxu0 0
    %3020 = vmatpush1.bf16.msra.mxu0 %v3010
    %3021 = vmatprep.subr.bf16.mxu0 0
    %3022 = vmatpush1.bf16.msra.mxu0 %v3009
    %3023 = vmatprep.subr.bf16.mxu0 0
    %3024 = vmatpush1.bf16.msra.mxu0 %v3008
    %3025 = vmatprep.subr.bf16.mxu0 0
    %3026 = vmatpush1.bf16.msra.mxu0 %v3007
    %3027 = vmatprep.subr.bf16.mxu0 0
    %3028 = vmatpush1.bf16.msra.mxu0 %v3006
    %3029 = vmatprep.subr.bf16.mxu0 0
    %3030 = vmatpush1.bf16.msra.mxu0 %v3005
    %3031 = vmatprep.subr.bf16.mxu0 0
    %3032 = vmatpush1.bf16.msra.mxu0 %v3004
    %3033 = vmatprep.subr.bf16.mxu0 0
    %3034 = vmatpush1.bf16.msra.mxu0 %v3003
    %3035 = vmatprep.subr.bf16.mxu0 0
    %3036 = vmatpush2.bf16.msra.mxu0 0
    %3037 = vmatprep.subr.bf16.mxu0 0
    %3038 = vmatpush2.bf16.msra.mxu0 0
    %3039 = vmatprep.subr.bf16.mxu0 0
    %3040 = vmatpush2.bf16.msra.mxu0 0
    %3041 = vmatprep.subr.bf16.mxu0 0
    %3042 = vmatpush2.bf16.msra.mxu0 0
    %3043 = vmatprep.subr.bf16.mxu0 0
    %3044 = vmatpush2.bf16.msra.mxu0 0
    %3045 = vmatprep.subr.bf16.mxu0 0
    %3046 = vmatpush2.bf16.msra.mxu0 0
    %3047 = vmatprep.subr.bf16.mxu0 0
    %3048 = vmatpush2.bf16.msra.mxu0 0
    %3049 = vmatprep.subr.bf16.mxu0 0
    %3050 = vmatpush2.bf16.msra.mxu0 0
    %3051 = vmatprep.mubr.bf16.mxu0 0
    %3052 = vmatmul.mubr.bf16.gmra.mxu0 %v2916
    %v3053 = vpop.f32.mrf.mxu0
    %v3054 = vadd.f32 %v2969, %v3053
    %v3055 = vpop.f32.mrf.mxu0
    %v3056 = vpop.f32.mrf.mxu0
    %v3057 = vadd.f32 %v2969, %v3056
    %v3058 = vpop.f32.mrf.mxu0
    %3059 = vmatprep.mubr.bf16.mxu0 0
    %3060 = vmatmul.mubr.bf16.gmra.mxu0 %v2917
    %v3061 = vpop.f32.mrf.mxu0
    %v3062 = vadd.f32 %v2969, %v3061
    %v3063 = vpop.f32.mrf.mxu0
    %v3064 = vpop.f32.mrf.mxu0
    %v3065 = vadd.f32 %v2969, %v3064
    %v3066 = vpop.f32.mrf.mxu0
    %3067 = vmatprep.mubr.bf16.mxu0 0
    %3068 = vmatmul.mubr.bf16.gmra.mxu0 %v2918
    %v3069 = vpop.f32.mrf.mxu0
    %v3070 = vadd.f32 %v2969, %v3069
    %v3071 = vpop.f32.mrf.mxu0
    %v3072 = vpop.f32.mrf.mxu0
    %v3073 = vadd.f32 %v2969, %v3072
    %v3074 = vpop.f32.mrf.mxu0
    %3075 = vmatprep.mubr.bf16.mxu0 0
    %3076 = vmatmul.mubr.bf16.gmra.mxu0 %v2919
    %v3077 = vpop.f32.mrf.mxu0
    %v3078 = vadd.f32 %v2969, %v3077
    %v3079 = vpop.f32.mrf.mxu0
    %v3080 = vpop.f32.mrf.mxu0
    %v3081 = vadd.f32 %v2969, %v3080
    %v3082 = vpop.f32.mrf.mxu0
    %3083 = vmatprep.mubr.bf16.mxu0 0
    %3084 = vmatmul.mubr.bf16.gmra.mxu0 %v2920
    %v3085 = vpop.f32.mrf.mxu0
    %v3086 = vadd.f32 %v2969, %v3085
    %v3087 = vpop.f32.mrf.mxu0
    %v3088 = vpop.f32.mrf.mxu0
    %v3089 = vadd.f32 %v2969, %v3088
    %v3090 = vpop.f32.mrf.mxu0
    %3091 = vmatprep.mubr.bf16.mxu0 0
    %3092 = vmatmul.mubr.bf16.gmra.mxu0 %v2921
    %v3093 = vpop.f32.mrf.mxu0
    %v3094 = vadd.f32 %v2969, %v3093
    %v3095 = vpop.f32.mrf.mxu0
    %v3096 = vpop.f32.mrf.mxu0
    %v3097 = vadd.f32 %v2969, %v3096
    %v3098 = vpop.f32.mrf.mxu0
    %3099 = vmatprep.mubr.bf16.mxu0 0
    %3100 = vmatmul.mubr.bf16.gmra.mxu0 %v2922
    %v3101 = vpop.f32.mrf.mxu0
    %v3102 = vadd.f32 %v2969, %v3101
    %v3103 = vpop.f32.mrf.mxu0
    %v3104 = vpop.f32.mrf.mxu0
    %v3105 = vadd.f32 %v2969, %v3104
    %v3106 = vpop.f32.mrf.mxu0
    %3107 = vmatprep.mubr.bf16.mxu0 0
    %3108 = vmatmul.mubr.bf16.gmra.mxu0 %v2923
    %v3109 = vpop.f32.mrf.mxu0
    %v3110 = vadd.f32 %v2969, %v3109
    %v3111 = vpop.f32.mrf.mxu0
    %v3112 = vpop.f32.mrf.mxu0
    %v3113 = vadd.f32 %v2969, %v3112
    %v3114 = vpop.f32.mrf.mxu0
    %3115 = vmatprep.mubr.bf16.mxu0 0
    %3116 = vmatmul.mubr.bf16.gmra.mxu0 %v2924
    %v3117 = vpop.f32.mrf.mxu0
    %v3118 = vadd.f32 %v2969, %v3117
    %v3119 = vpop.f32.mrf.mxu0
    %v3120 = vpop.f32.mrf.mxu0
    %v3121 = vadd.f32 %v2969, %v3120
    %v3122 = vpop.f32.mrf.mxu0
    %3123 = vmatprep.mubr.bf16.mxu0 0
    %3124 = vmatmul.mubr.bf16.gmra.mxu0 %v2925
    %v3125 = vpop.f32.mrf.mxu0
    %v3126 = vadd.f32 %v2969, %v3125
    %v3127 = vpop.f32.mrf.mxu0
    %v3128 = vpop.f32.mrf.mxu0
    %v3129 = vadd.f32 %v2969, %v3128
    %v3130 = vpop.f32.mrf.mxu0
    %3131 = vmatprep.mubr.bf16.mxu0 0
    %3132 = vmatmul.mubr.bf16.gmra.mxu0 %v2926
    %v3133 = vpop.f32.mrf.mxu0
    %v3134 = vadd.f32 %v2969, %v3133
    %v3135 = vpop.f32.mrf.mxu0
    %v3136 = vpop.f32.mrf.mxu0
    %v3137 = vadd.f32 %v2969, %v3136
    %v3138 = vpop.f32.mrf.mxu0
    %3139 = vmatprep.mubr.bf16.mxu0 0
    %3140 = vmatmul.mubr.bf16.gmra.mxu0 %v2927
    %v3141 = vpop.f32.mrf.mxu0
    %v3142 = vadd.f32 %v2969, %v3141
    %v3143 = vpop.f32.mrf.mxu0
    %v3144 = vpop.f32.mrf.mxu0
    %v3145 = vadd.f32 %v2969, %v3144
    %v3146 = vpop.f32.mrf.mxu0
    %3147 = vmatprep.mubr.bf16.mxu0 0
    %3148 = vmatmul.mubr.bf16.gmra.mxu0 %v2928
    %v3149 = vpop.f32.mrf.mxu0
    %v3150 = vadd.f32 %v2969, %v3149
    %v3151 = vpop.f32.mrf.mxu0
    %v3152 = vpop.f32.mrf.mxu0
    %v3153 = vadd.f32 %v2969, %v3152
    %v3154 = vpop.f32.mrf.mxu0
    %3155 = vmatprep.mubr.bf16.mxu0 0
    %3156 = vmatmul.mubr.bf16.gmra.mxu0 %v2929
    %v3157 = vpop.f32.mrf.mxu0
    %v3158 = vadd.f32 %v2969, %v3157
    %v3159 = vpop.f32.mrf.mxu0
    %v3160 = vpop.f32.mrf.mxu0
    %v3161 = vadd.f32 %v2969, %v3160
    %v3162 = vpop.f32.mrf.mxu0
    %3163 = vmatprep.mubr.bf16.mxu0 0
    %3164 = vmatmul.mubr.bf16.gmra.mxu0 %v2930
    %v3165 = vpop.f32.mrf.mxu0
    %v3166 = vadd.f32 %v2969, %v3165
    %v3167 = vpop.f32.mrf.mxu0
    %v3168 = vpop.f32.mrf.mxu0
    %v3169 = vadd.f32 %v2969, %v3168
    %v3170 = vpop.f32.mrf.mxu0
    %3171 = vmatprep.mubr.bf16.mxu0 0
    %3172 = vmatmul.mubr.bf16.gmra.mxu0 %v2931
    %v3173 = vpop.f32.mrf.mxu0
    %v3174 = vadd.f32 %v2969, %v3173
    %v3175 = vpop.f32.mrf.mxu0
    %v3176 = vpop.f32.mrf.mxu0
    %v3177 = vadd.f32 %v2969, %v3176
    %v3178 = vpop.f32.mrf.mxu0
    %3179 = vmatprep.mubr.bf16.mxu0 0
    %3180 = vmatmul.mubr.bf16.gmra.mxu0 %v2932
    %v3181 = vpop.f32.mrf.mxu0
    %v3182 = vadd.f32 %v2969, %v3181
    %v3183 = vpop.f32.mrf.mxu0
    %v3184 = vpop.f32.mrf.mxu0
    %v3185 = vadd.f32 %v2969, %v3184
    %v3186 = vpop.f32.mrf.mxu0
    %3187 = vmatprep.mubr.bf16.mxu0 0
    %3188 = vmatmul.mubr.bf16.gmra.mxu0 %v2933
    %v3189 = vpop.f32.mrf.mxu0
    %v3190 = vadd.f32 %v2969, %v3189
    %v3191 = vpop.f32.mrf.mxu0
    %v3192 = vpop.f32.mrf.mxu0
    %v3193 = vadd.f32 %v2969, %v3192
    %v3194 = vpop.f32.mrf.mxu0
    %3195 = vmatprep.mubr.bf16.mxu0 0
    %3196 = vmatmul.mubr.bf16.gmra.mxu0 %v2934
    %v3197 = vpop.f32.mrf.mxu0
    %v3198 = vadd.f32 %v2969, %v3197
    %v3199 = vpop.f32.mrf.mxu0
    %v3200 = vpop.f32.mrf.mxu0
    %v3201 = vadd.f32 %v2969, %v3200
    %v3202 = vpop.f32.mrf.mxu0
    %3203 = vmatprep.mubr.bf16.mxu0 0
    %3204 = vmatmul.mubr.bf16.gmra.mxu0 %v2935
    %v3205 = vpop.f32.mrf.mxu0
    %v3206 = vadd.f32 %v2969, %v3205
    %v3207 = vpop.f32.mrf.mxu0
    %v3208 = vpop.f32.mrf.mxu0
    %v3209 = vadd.f32 %v2969, %v3208
    %v3210 = vpop.f32.mrf.mxu0
    %3211 = vmatprep.mubr.bf16.mxu0 0
    %3212 = vmatmul.mubr.bf16.gmra.mxu0 %v2936
    %v3213 = vpop.f32.mrf.mxu0
    %v3214 = vadd.f32 %v2969, %v3213
    %v3215 = vpop.f32.mrf.mxu0
    %v3216 = vpop.f32.mrf.mxu0
    %v3217 = vadd.f32 %v2969, %v3216
    %v3218 = vpop.f32.mrf.mxu0
    %3219 = vmatprep.mubr.bf16.mxu0 0
    %3220 = vmatmul.mubr.bf16.gmra.mxu0 %v2937
    %v3221 = vpop.f32.mrf.mxu0
    %v3222 = vadd.f32 %v2969, %v3221
    %v3223 = vpop.f32.mrf.mxu0
    %v3224 = vpop.f32.mrf.mxu0
    %v3225 = vadd.f32 %v2969, %v3224
    %v3226 = vpop.f32.mrf.mxu0
    %3227 = vmatprep.mubr.bf16.mxu0 0
    %3228 = vmatmul.mubr.bf16.gmra.mxu0 %v2938
    %v3229 = vpop.f32.mrf.mxu0
    %v3230 = vadd.f32 %v2969, %v3229
    %v3231 = vpop.f32.mrf.mxu0
    %v3232 = vpop.f32.mrf.mxu0
    %v3233 = vadd.f32 %v2969, %v3232
    %v3234 = vpop.f32.mrf.mxu0
    %3235 = vmatprep.mubr.bf16.mxu0 0
    %3236 = vmatmul.mubr.bf16.gmra.mxu0 %v2939
    %v3237 = vpop.f32.mrf.mxu0
    %v3238 = vadd.f32 %v2969, %v3237
    %v3239 = vpop.f32.mrf.mxu0
    %v3240 = vpop.f32.mrf.mxu0
    %v3241 = vadd.f32 %v2969, %v3240
    %v3242 = vpop.f32.mrf.mxu0
    %3243 = vmatprep.mubr.bf16.mxu0 0
    %3244 = vmatmul.mubr.bf16.gmra.mxu0 %v2940
    %v3245 = vpop.f32.mrf.mxu0
    %v3246 = vadd.f32 %v2969, %v3245
    %v3247 = vpop.f32.mrf.mxu0
    %v3248 = vpop.f32.mrf.mxu0
    %v3249 = vadd.f32 %v2969, %v3248
    %v3250 = vpop.f32.mrf.mxu0
    %3251 = vmatprep.mubr.bf16.mxu0 0
    %3252 = vmatmul.mubr.bf16.gmra.mxu0 %v2941
    %v3253 = vpop.f32.mrf.mxu0
    %v3254 = vadd.f32 %v2969, %v3253
    %v3255 = vpop.f32.mrf.mxu0
    %v3256 = vpop.f32.mrf.mxu0
    %v3257 = vadd.f32 %v2969, %v3256
    %v3258 = vpop.f32.mrf.mxu0
    %3259 = vmatprep.mubr.bf16.mxu0 0
    %3260 = vmatmul.mubr.bf16.gmra.mxu0 %v2942
    %v3261 = vpop.f32.mrf.mxu0
    %v3262 = vadd.f32 %v2969, %v3261
    %v3263 = vpop.f32.mrf.mxu0
    %v3264 = vpop.f32.mrf.mxu0
    %v3265 = vadd.f32 %v2969, %v3264
    %v3266 = vpop.f32.mrf.mxu0
    %3267 = vmatprep.mubr.bf16.mxu0 0
    %3268 = vmatmul.mubr.bf16.gmra.mxu0 %v2943
    %v3269 = vpop.f32.mrf.mxu0
    %v3270 = vadd.f32 %v2969, %v3269
    %v3271 = vpop.f32.mrf.mxu0
    %v3272 = vpop.f32.mrf.mxu0
    %v3273 = vadd.f32 %v2969, %v3272
    %v3274 = vpop.f32.mrf.mxu0
    %3275 = vmatprep.mubr.bf16.mxu0 0
    %3276 = vmatmul.mubr.bf16.gmra.mxu0 %v2944
    %v3277 = vpop.f32.mrf.mxu0
    %v3278 = vadd.f32 %v2969, %v3277
    %v3279 = vpop.f32.mrf.mxu0
    %v3280 = vpop.f32.mrf.mxu0
    %v3281 = vadd.f32 %v2969, %v3280
    %v3282 = vpop.f32.mrf.mxu0
    %3283 = vmatprep.mubr.bf16.mxu0 0
    %3284 = vmatmul.mubr.bf16.gmra.mxu0 %v2945
    %v3285 = vpop.f32.mrf.mxu0
    %v3286 = vadd.f32 %v2969, %v3285
    %v3287 = vpop.f32.mrf.mxu0
    %v3288 = vpop.f32.mrf.mxu0
    %v3289 = vadd.f32 %v2969, %v3288
    %v3290 = vpop.f32.mrf.mxu0
    %3291 = vmatprep.mubr.bf16.mxu0 0
    %3292 = vmatmul.mubr.bf16.gmra.mxu0 %v2946
    %v3293 = vpop.f32.mrf.mxu0
    %v3294 = vadd.f32 %v2969, %v3293
    %v3295 = vpop.f32.mrf.mxu0
    %v3296 = vpop.f32.mrf.mxu0
    %v3297 = vadd.f32 %v2969, %v3296
    %v3298 = vpop.f32.mrf.mxu0
    %3299 = vmatprep.mubr.bf16.mxu0 0
    %3300 = vmatmul.mubr.bf16.gmra.mxu0 %v2947
    %v3301 = vpop.f32.mrf.mxu0
    %v3302 = vadd.f32 %v2969, %v3301
    %v3303 = vpop.f32.mrf.mxu0
    %v3304 = vpop.f32.mrf.mxu0
    %v3305 = vadd.f32 %v2969, %v3304
    %v3306 = vpop.f32.mrf.mxu0
    %3307 = vdwg.mxu0
    %v3308 = vpack.c.bf16 %v3057, %v3054
    %v3309 = vpack.c.bf16 %v3065, %v3062
    %v3310 = vpack.c.bf16 %v3073, %v3070
    %v3311 = vpack.c.bf16 %v3081, %v3078
    %v3312 = vpack.c.bf16 %v3089, %v3086
    %v3313 = vpack.c.bf16 %v3097, %v3094
    %v3314 = vpack.c.bf16 %v3105, %v3102
    %v3315 = vpack.c.bf16 %v3113, %v3110
    %v3316 = vpack.c.bf16 %v3121, %v3118
    %v3317 = vpack.c.bf16 %v3129, %v3126
    %v3318 = vpack.c.bf16 %v3137, %v3134
    %v3319 = vpack.c.bf16 %v3145, %v3142
    %v3320 = vpack.c.bf16 %v3153, %v3150
    %v3321 = vpack.c.bf16 %v3161, %v3158
    %v3322 = vpack.c.bf16 %v3169, %v3166
    %v3323 = vpack.c.bf16 %v3177, %v3174
    %v3324 = vpack.c.bf16 %v3185, %v3182
    %v3325 = vpack.c.bf16 %v3193, %v3190
    %v3326 = vpack.c.bf16 %v3201, %v3198
    %v3327 = vpack.c.bf16 %v3209, %v3206
    %v3328 = vpack.c.bf16 %v3217, %v3214
    %v3329 = vpack.c.bf16 %v3225, %v3222
    %v3330 = vpack.c.bf16 %v3233, %v3230
    %v3331 = vpack.c.bf16 %v3241, %v3238
    %v3332 = vpack.c.bf16 %v3249, %v3246
    %v3333 = vpack.c.bf16 %v3257, %v3254
    %v3334 = vpack.c.bf16 %v3265, %v3262
    %v3335 = vpack.c.bf16 %v3273, %v3270
    %v3336 = vpack.c.bf16 %v3281, %v3278
    %v3337 = vpack.c.bf16 %v3289, %v3286
    %v3338 = vpack.c.bf16 %v3297, %v3294
    %v3339 = vpack.c.bf16 %v3305, %v3302
    %v3340 = vmax.bf16 %v3308, 0
    %v3341 = vmax.bf16 %v3309, 0
    %v3342 = vmax.bf16 %v3310, 0
    %v3343 = vmax.bf16 %v3311, 0
    %v3344 = vmax.bf16 %v3312, 0
    %v3345 = vmax.bf16 %v3313, 0
    %v3346 = vmax.bf16 %v3314, 0
    %v3347 = vmax.bf16 %v3315, 0
    %v3348 = vmax.bf16 %v3316, 0
    %v3349 = vmax.bf16 %v3317, 0
    %v3350 = vmax.bf16 %v3318, 0
    %v3351 = vmax.bf16 %v3319, 0
    %v3352 = vmax.bf16 %v3320, 0
    %v3353 = vmax.bf16 %v3321, 0
    %v3354 = vmax.bf16 %v3322, 0
    %v3355 = vmax.bf16 %v3323, 0
    %v3356 = vmax.bf16 %v3324, 0
    %v3357 = vmax.bf16 %v3325, 0
    %v3358 = vmax.bf16 %v3326, 0
    %v3359 = vmax.bf16 %v3327, 0
    %v3360 = vmax.bf16 %v3328, 0
    %v3361 = vmax.bf16 %v3329, 0
    %v3362 = vmax.bf16 %v3330, 0
    %v3363 = vmax.bf16 %v3331, 0
    %v3364 = vmax.bf16 %v3332, 0
    %v3365 = vmax.bf16 %v3333, 0
    %v3366 = vmax.bf16 %v3334, 0
    %v3367 = vmax.bf16 %v3335, 0
    %v3368 = vmax.bf16 %v3336, 0
    %v3369 = vmax.bf16 %v3337, 0
    %v3370 = vmax.bf16 %v3338, 0
    %v3371 = vmax.bf16 %v3339, 0
    %v3372 = vld [vmem:[#allocation16] sm:$0xf]
    %v3373 = vld [vmem:[#allocation16 + $0x4] sm:$0xf]
    %v3374 = vld [vmem:[#allocation16 + $0x8] sm:$0xf]
    %v3375 = vld [vmem:[#allocation16 + $0xc] sm:$0xf]
    %v3376 = vld [vmem:[#allocation16 + $0x10] sm:$0xf]
    %v3377 = vld [vmem:[#allocation16 + $0x14] sm:$0xf]
    %v3378 = vld [vmem:[#allocation16 + $0x18] sm:$0xf]
    %v3379 = vld [vmem:[#allocation16 + $0x1c] sm:$0xf]
    %v3380 = vld [vmem:[#allocation16 + $0x20] sm:$0xf]
    %v3381 = vld [vmem:[#allocation16 + $0x24] sm:$0xf]
    %v3382 = vld [vmem:[#allocation16 + $0x28] sm:$0xf]
    %v3383 = vld [vmem:[#allocation16 + $0x2c] sm:$0xf]
    %v3384 = vld [vmem:[#allocation16 + $0x30] sm:$0xf]
    %v3385 = vld [vmem:[#allocation16 + $0x34] sm:$0xf]
    %v3386 = vld [vmem:[#allocation16 + $0x38] sm:$0xf]
    %v3387 = vld [vmem:[#allocation16 + $0x3c] sm:$0xf]
    %v3388 = vld [vmem:[%s16] sm:$0x1]
    %v3390 = vlaneseq
    %v3391 = vshrl.u32 %v3390, 7
    %v3392 = vsub.s32 0, %v3391
    %v3393 = vrot.slane %v3388, %v3392
    %v3411 = vunpack.c.l.b16 %v3372
    %v3412 = vunpack.c.l.b16 %v3373
    %v3413 = vunpack.c.l.b16 %v3374
    %v3414 = vunpack.c.l.b16 %v3375
    %v3415 = vunpack.c.l.b16 %v3376
    %v3416 = vunpack.c.l.b16 %v3377
    %v3417 = vunpack.c.l.b16 %v3378
    %v3418 = vunpack.c.l.b16 %v3379
    %v3419 = vunpack.c.l.b16 %v3380
    %v3420 = vunpack.c.l.b16 %v3381
    %v3421 = vunpack.c.l.b16 %v3382
    %v3422 = vunpack.c.l.b16 %v3383
    %v3423 = vunpack.c.l.b16 %v3384
    %v3424 = vunpack.c.l.b16 %v3385
    %v3425 = vunpack.c.l.b16 %v3386
    %v3426 = vunpack.c.l.b16 %v3387
    %v3427 = vpack.c.b16 %v3412, %v3411
    %v3428 = vpack.c.b16 %v3414, %v3413
    %v3429 = vpack.c.b16 %v3416, %v3415
    %v3430 = vpack.c.b16 %v3418, %v3417
    %v3431 = vpack.c.b16 %v3420, %v3419
    %v3432 = vpack.c.b16 %v3422, %v3421
    %v3433 = vpack.c.b16 %v3424, %v3423
    %v3434 = vpack.c.b16 %v3426, %v3425
    %3443 = vmatprep.subr.bf16.mxu0 0
    %3444 = vmatpush1.bf16.msra.mxu0 %v3434
    %3445 = vmatprep.subr.bf16.mxu0 0
    %3446 = vmatpush1.bf16.msra.mxu0 %v3433
    %3447 = vmatprep.subr.bf16.mxu0 0
    %3448 = vmatpush1.bf16.msra.mxu0 %v3432
    %3449 = vmatprep.subr.bf16.mxu0 0
    %3450 = vmatpush1.bf16.msra.mxu0 %v3431
    %3451 = vmatprep.subr.bf16.mxu0 0
    %3452 = vmatpush1.bf16.msra.mxu0 %v3430
    %3453 = vmatprep.subr.bf16.mxu0 0
    %3454 = vmatpush1.bf16.msra.mxu0 %v3429
    %3455 = vmatprep.subr.bf16.mxu0 0
    %3456 = vmatpush1.bf16.msra.mxu0 %v3428
    %3457 = vmatprep.subr.bf16.mxu0 0
    %3458 = vmatpush1.bf16.msra.mxu0 %v3427
    %3459 = vmatprep.subr.bf16.mxu0 0
    %3460 = vmatpush2.bf16.msra.mxu0 0
    %3461 = vmatprep.subr.bf16.mxu0 0
    %3462 = vmatpush2.bf16.msra.mxu0 0
    %3463 = vmatprep.subr.bf16.mxu0 0
    %3464 = vmatpush2.bf16.msra.mxu0 0
    %3465 = vmatprep.subr.bf16.mxu0 0
    %3466 = vmatpush2.bf16.msra.mxu0 0
    %3467 = vmatprep.subr.bf16.mxu0 0
    %3468 = vmatpush2.bf16.msra.mxu0 0
    %3469 = vmatprep.subr.bf16.mxu0 0
    %3470 = vmatpush2.bf16.msra.mxu0 0
    %3471 = vmatprep.subr.bf16.mxu0 0
    %3472 = vmatpush2.bf16.msra.mxu0 0
    %3473 = vmatprep.subr.bf16.mxu0 0
    %3474 = vmatpush2.bf16.msra.mxu0 0
    %3475 = vmatprep.mubr.bf16.mxu0 0
    %3476 = vmatmul.mubr.bf16.gmra.mxu0 %v3340
    %v3477 = vpop.f32.mrf.mxu0
    %v3478 = vadd.f32 %v3393, %v3477
    %v3479 = vpop.f32.mrf.mxu0
    %v3480 = vpop.f32.mrf.mxu0
    %v3481 = vadd.f32 %v3393, %v3480
    %v3482 = vpop.f32.mrf.mxu0
    %3483 = vmatprep.mubr.bf16.mxu0 0
    %3484 = vmatmul.mubr.bf16.gmra.mxu0 %v3341
    %v3485 = vpop.f32.mrf.mxu0
    %v3486 = vadd.f32 %v3393, %v3485
    %v3487 = vpop.f32.mrf.mxu0
    %v3488 = vpop.f32.mrf.mxu0
    %v3489 = vadd.f32 %v3393, %v3488
    %v3490 = vpop.f32.mrf.mxu0
    %3491 = vmatprep.mubr.bf16.mxu0 0
    %3492 = vmatmul.mubr.bf16.gmra.mxu0 %v3342
    %v3493 = vpop.f32.mrf.mxu0
    %v3494 = vadd.f32 %v3393, %v3493
    %v3495 = vpop.f32.mrf.mxu0
    %v3496 = vpop.f32.mrf.mxu0
    %v3497 = vadd.f32 %v3393, %v3496
    %v3498 = vpop.f32.mrf.mxu0
    %3499 = vmatprep.mubr.bf16.mxu0 0
    %3500 = vmatmul.mubr.bf16.gmra.mxu0 %v3343
    %v3501 = vpop.f32.mrf.mxu0
    %v3502 = vadd.f32 %v3393, %v3501
    %v3503 = vpop.f32.mrf.mxu0
    %v3504 = vpop.f32.mrf.mxu0
    %v3505 = vadd.f32 %v3393, %v3504
    %v3506 = vpop.f32.mrf.mxu0
    %3507 = vmatprep.mubr.bf16.mxu0 0
    %3508 = vmatmul.mubr.bf16.gmra.mxu0 %v3344
    %v3509 = vpop.f32.mrf.mxu0
    %v3510 = vadd.f32 %v3393, %v3509
    %v3511 = vpop.f32.mrf.mxu0
    %v3512 = vpop.f32.mrf.mxu0
    %v3513 = vadd.f32 %v3393, %v3512
    %v3514 = vpop.f32.mrf.mxu0
    %3515 = vmatprep.mubr.bf16.mxu0 0
    %3516 = vmatmul.mubr.bf16.gmra.mxu0 %v3345
    %v3517 = vpop.f32.mrf.mxu0
    %v3518 = vadd.f32 %v3393, %v3517
    %v3519 = vpop.f32.mrf.mxu0
    %v3520 = vpop.f32.mrf.mxu0
    %v3521 = vadd.f32 %v3393, %v3520
    %v3522 = vpop.f32.mrf.mxu0
    %3523 = vmatprep.mubr.bf16.mxu0 0
    %3524 = vmatmul.mubr.bf16.gmra.mxu0 %v3346
    %v3525 = vpop.f32.mrf.mxu0
    %v3526 = vadd.f32 %v3393, %v3525
    %v3527 = vpop.f32.mrf.mxu0
    %v3528 = vpop.f32.mrf.mxu0
    %v3529 = vadd.f32 %v3393, %v3528
    %v3530 = vpop.f32.mrf.mxu0
    %3531 = vmatprep.mubr.bf16.mxu0 0
    %3532 = vmatmul.mubr.bf16.gmra.mxu0 %v3347
    %v3533 = vpop.f32.mrf.mxu0
    %v3534 = vadd.f32 %v3393, %v3533
    %v3535 = vpop.f32.mrf.mxu0
    %v3536 = vpop.f32.mrf.mxu0
    %v3537 = vadd.f32 %v3393, %v3536
    %v3538 = vpop.f32.mrf.mxu0
    %3539 = vmatprep.mubr.bf16.mxu0 0
    %3540 = vmatmul.mubr.bf16.gmra.mxu0 %v3348
    %v3541 = vpop.f32.mrf.mxu0
    %v3542 = vadd.f32 %v3393, %v3541
    %v3543 = vpop.f32.mrf.mxu0
    %v3544 = vpop.f32.mrf.mxu0
    %v3545 = vadd.f32 %v3393, %v3544
    %v3546 = vpop.f32.mrf.mxu0
    %3547 = vmatprep.mubr.bf16.mxu0 0
    %3548 = vmatmul.mubr.bf16.gmra.mxu0 %v3349
    %v3549 = vpop.f32.mrf.mxu0
    %v3550 = vadd.f32 %v3393, %v3549
    %v3551 = vpop.f32.mrf.mxu0
    %v3552 = vpop.f32.mrf.mxu0
    %v3553 = vadd.f32 %v3393, %v3552
    %v3554 = vpop.f32.mrf.mxu0
    %3555 = vmatprep.mubr.bf16.mxu0 0
    %3556 = vmatmul.mubr.bf16.gmra.mxu0 %v3350
    %v3557 = vpop.f32.mrf.mxu0
    %v3558 = vadd.f32 %v3393, %v3557
    %v3559 = vpop.f32.mrf.mxu0
    %v3560 = vpop.f32.mrf.mxu0
    %v3561 = vadd.f32 %v3393, %v3560
    %v3562 = vpop.f32.mrf.mxu0
    %3563 = vmatprep.mubr.bf16.mxu0 0
    %3564 = vmatmul.mubr.bf16.gmra.mxu0 %v3351
    %v3565 = vpop.f32.mrf.mxu0
    %v3566 = vadd.f32 %v3393, %v3565
    %v3567 = vpop.f32.mrf.mxu0
    %v3568 = vpop.f32.mrf.mxu0
    %v3569 = vadd.f32 %v3393, %v3568
    %v3570 = vpop.f32.mrf.mxu0
    %3571 = vmatprep.mubr.bf16.mxu0 0
    %3572 = vmatmul.mubr.bf16.gmra.mxu0 %v3352
    %v3573 = vpop.f32.mrf.mxu0
    %v3574 = vadd.f32 %v3393, %v3573
    %v3575 = vpop.f32.mrf.mxu0
    %v3576 = vpop.f32.mrf.mxu0
    %v3577 = vadd.f32 %v3393, %v3576
    %v3578 = vpop.f32.mrf.mxu0
    %3579 = vmatprep.mubr.bf16.mxu0 0
    %3580 = vmatmul.mubr.bf16.gmra.mxu0 %v3353
    %v3581 = vpop.f32.mrf.mxu0
    %v3582 = vadd.f32 %v3393, %v3581
    %v3583 = vpop.f32.mrf.mxu0
    %v3584 = vpop.f32.mrf.mxu0
    %v3585 = vadd.f32 %v3393, %v3584
    %v3586 = vpop.f32.mrf.mxu0
    %3587 = vmatprep.mubr.bf16.mxu0 0
    %3588 = vmatmul.mubr.bf16.gmra.mxu0 %v3354
    %v3589 = vpop.f32.mrf.mxu0
    %v3590 = vadd.f32 %v3393, %v3589
    %v3591 = vpop.f32.mrf.mxu0
    %v3592 = vpop.f32.mrf.mxu0
    %v3593 = vadd.f32 %v3393, %v3592
    %v3594 = vpop.f32.mrf.mxu0
    %3595 = vmatprep.mubr.bf16.mxu0 0
    %3596 = vmatmul.mubr.bf16.gmra.mxu0 %v3355
    %v3597 = vpop.f32.mrf.mxu0
    %v3598 = vadd.f32 %v3393, %v3597
    %v3599 = vpop.f32.mrf.mxu0
    %v3600 = vpop.f32.mrf.mxu0
    %v3601 = vadd.f32 %v3393, %v3600
    %v3602 = vpop.f32.mrf.mxu0
    %3603 = vmatprep.mubr.bf16.mxu0 0
    %3604 = vmatmul.mubr.bf16.gmra.mxu0 %v3356
    %v3605 = vpop.f32.mrf.mxu0
    %v3606 = vadd.f32 %v3393, %v3605
    %v3607 = vpop.f32.mrf.mxu0
    %v3608 = vpop.f32.mrf.mxu0
    %v3609 = vadd.f32 %v3393, %v3608
    %v3610 = vpop.f32.mrf.mxu0
    %3611 = vmatprep.mubr.bf16.mxu0 0
    %3612 = vmatmul.mubr.bf16.gmra.mxu0 %v3357
    %v3613 = vpop.f32.mrf.mxu0
    %v3614 = vadd.f32 %v3393, %v3613
    %v3615 = vpop.f32.mrf.mxu0
    %v3616 = vpop.f32.mrf.mxu0
    %v3617 = vadd.f32 %v3393, %v3616
    %v3618 = vpop.f32.mrf.mxu0
    %3619 = vmatprep.mubr.bf16.mxu0 0
    %3620 = vmatmul.mubr.bf16.gmra.mxu0 %v3358
    %v3621 = vpop.f32.mrf.mxu0
    %v3622 = vadd.f32 %v3393, %v3621
    %v3623 = vpop.f32.mrf.mxu0
    %v3624 = vpop.f32.mrf.mxu0
    %v3625 = vadd.f32 %v3393, %v3624
    %v3626 = vpop.f32.mrf.mxu0
    %3627 = vmatprep.mubr.bf16.mxu0 0
    %3628 = vmatmul.mubr.bf16.gmra.mxu0 %v3359
    %v3629 = vpop.f32.mrf.mxu0
    %v3630 = vadd.f32 %v3393, %v3629
    %v3631 = vpop.f32.mrf.mxu0
    %v3632 = vpop.f32.mrf.mxu0
    %v3633 = vadd.f32 %v3393, %v3632
    %v3634 = vpop.f32.mrf.mxu0
    %3635 = vmatprep.mubr.bf16.mxu0 0
    %3636 = vmatmul.mubr.bf16.gmra.mxu0 %v3360
    %v3637 = vpop.f32.mrf.mxu0
    %v3638 = vadd.f32 %v3393, %v3637
    %v3639 = vpop.f32.mrf.mxu0
    %v3640 = vpop.f32.mrf.mxu0
    %v3641 = vadd.f32 %v3393, %v3640
    %v3642 = vpop.f32.mrf.mxu0
    %3643 = vmatprep.mubr.bf16.mxu0 0
    %3644 = vmatmul.mubr.bf16.gmra.mxu0 %v3361
    %v3645 = vpop.f32.mrf.mxu0
    %v3646 = vadd.f32 %v3393, %v3645
    %v3647 = vpop.f32.mrf.mxu0
    %v3648 = vpop.f32.mrf.mxu0
    %v3649 = vadd.f32 %v3393, %v3648
    %v3650 = vpop.f32.mrf.mxu0
    %3651 = vmatprep.mubr.bf16.mxu0 0
    %3652 = vmatmul.mubr.bf16.gmra.mxu0 %v3362
    %v3653 = vpop.f32.mrf.mxu0
    %v3654 = vadd.f32 %v3393, %v3653
    %v3655 = vpop.f32.mrf.mxu0
    %v3656 = vpop.f32.mrf.mxu0
    %v3657 = vadd.f32 %v3393, %v3656
    %v3658 = vpop.f32.mrf.mxu0
    %3659 = vmatprep.mubr.bf16.mxu0 0
    %3660 = vmatmul.mubr.bf16.gmra.mxu0 %v3363
    %v3661 = vpop.f32.mrf.mxu0
    %v3662 = vadd.f32 %v3393, %v3661
    %v3663 = vpop.f32.mrf.mxu0
    %v3664 = vpop.f32.mrf.mxu0
    %v3665 = vadd.f32 %v3393, %v3664
    %v3666 = vpop.f32.mrf.mxu0
    %3667 = vmatprep.mubr.bf16.mxu0 0
    %3668 = vmatmul.mubr.bf16.gmra.mxu0 %v3364
    %v3669 = vpop.f32.mrf.mxu0
    %v3670 = vadd.f32 %v3393, %v3669
    %v3671 = vpop.f32.mrf.mxu0
    %v3672 = vpop.f32.mrf.mxu0
    %v3673 = vadd.f32 %v3393, %v3672
    %v3674 = vpop.f32.mrf.mxu0
    %3675 = vmatprep.mubr.bf16.mxu0 0
    %3676 = vmatmul.mubr.bf16.gmra.mxu0 %v3365
    %v3677 = vpop.f32.mrf.mxu0
    %v3678 = vadd.f32 %v3393, %v3677
    %v3679 = vpop.f32.mrf.mxu0
    %v3680 = vpop.f32.mrf.mxu0
    %v3681 = vadd.f32 %v3393, %v3680
    %v3682 = vpop.f32.mrf.mxu0
    %3683 = vmatprep.mubr.bf16.mxu0 0
    %3684 = vmatmul.mubr.bf16.gmra.mxu0 %v3366
    %v3685 = vpop.f32.mrf.mxu0
    %v3686 = vadd.f32 %v3393, %v3685
    %v3687 = vpop.f32.mrf.mxu0
    %v3688 = vpop.f32.mrf.mxu0
    %v3689 = vadd.f32 %v3393, %v3688
    %v3690 = vpop.f32.mrf.mxu0
    %3691 = vmatprep.mubr.bf16.mxu0 0
    %3692 = vmatmul.mubr.bf16.gmra.mxu0 %v3367
    %v3693 = vpop.f32.mrf.mxu0
    %v3694 = vadd.f32 %v3393, %v3693
    %v3695 = vpop.f32.mrf.mxu0
    %v3696 = vpop.f32.mrf.mxu0
    %v3697 = vadd.f32 %v3393, %v3696
    %v3698 = vpop.f32.mrf.mxu0
    %3699 = vmatprep.mubr.bf16.mxu0 0
    %3700 = vmatmul.mubr.bf16.gmra.mxu0 %v3368
    %v3701 = vpop.f32.mrf.mxu0
    %v3702 = vadd.f32 %v3393, %v3701
    %v3703 = vpop.f32.mrf.mxu0
    %v3704 = vpop.f32.mrf.mxu0
    %v3705 = vadd.f32 %v3393, %v3704
    %v3706 = vpop.f32.mrf.mxu0
    %3707 = vmatprep.mubr.bf16.mxu0 0
    %3708 = vmatmul.mubr.bf16.gmra.mxu0 %v3369
    %v3709 = vpop.f32.mrf.mxu0
    %v3710 = vadd.f32 %v3393, %v3709
    %v3711 = vpop.f32.mrf.mxu0
    %v3712 = vpop.f32.mrf.mxu0
    %v3713 = vadd.f32 %v3393, %v3712
    %v3714 = vpop.f32.mrf.mxu0
    %3715 = vmatprep.mubr.bf16.mxu0 0
    %3716 = vmatmul.mubr.bf16.gmra.mxu0 %v3370
    %v3717 = vpop.f32.mrf.mxu0
    %v3718 = vadd.f32 %v3393, %v3717
    %v3719 = vpop.f32.mrf.mxu0
    %v3720 = vpop.f32.mrf.mxu0
    %v3721 = vadd.f32 %v3393, %v3720
    %v3722 = vpop.f32.mrf.mxu0
    %3723 = vmatprep.mubr.bf16.mxu0 0
    %3724 = vmatmul.mubr.bf16.gmra.mxu0 %v3371
    %v3725 = vpop.f32.mrf.mxu0
    %v3726 = vadd.f32 %v3393, %v3725
    %v3727 = vpop.f32.mrf.mxu0
    %v3728 = vpop.f32.mrf.mxu0
    %v3729 = vadd.f32 %v3393, %v3728
    %v3730 = vpop.f32.mrf.mxu0
    %3731 = vdwg.mxu0
    %3732 = vst [vmem:[#allocation17] sm:$0xff] %v3478
    %3733 = vst [vmem:[#allocation17 + $0x8] sm:$0xff] %v3481
    %3734 = vst [vmem:[#allocation17 + $0x10] sm:$0xff] %v3486
    %3735 = vst [vmem:[#allocation17 + $0x18] sm:$0xff] %v3489
    %3736 = vst [vmem:[#allocation17 + $0x20] sm:$0xff] %v3494
    %3737 = vst [vmem:[#allocation17 + $0x28] sm:$0xff] %v3497
    %3738 = vst [vmem:[#allocation17 + $0x30] sm:$0xff] %v3502
    %3739 = vst [vmem:[#allocation17 + $0x38] sm:$0xff] %v3505
    %3740 = vst [vmem:[#allocation17 + $0x40] sm:$0xff] %v3510
    %3741 = vst [vmem:[#allocation17 + $0x48] sm:$0xff] %v3513
    %3742 = vst [vmem:[#allocation17 + $0x50] sm:$0xff] %v3518
    %3743 = vst [vmem:[#allocation17 + $0x58] sm:$0xff] %v3521
    %3744 = vst [vmem:[#allocation17 + $0x60] sm:$0xff] %v3526
    %3745 = vst [vmem:[#allocation17 + $0x68] sm:$0xff] %v3529
    %3746 = vst [vmem:[#allocation17 + $0x70] sm:$0xff] %v3534
    %3747 = vst [vmem:[#allocation17 + $0x78] sm:$0xff] %v3537
    %3748 = vst [vmem:[#allocation17 + $0x80] sm:$0xff] %v3542
    %3749 = vst [vmem:[#allocation17 + $0x88] sm:$0xff] %v3545
    %3750 = vst [vmem:[#allocation17 + $0x90] sm:$0xff] %v3550
    %3751 = vst [vmem:[#allocation17 + $0x98] sm:$0xff] %v3553
    %3752 = vst [vmem:[#allocation17 + $0xa0] sm:$0xff] %v3558
    %3753 = vst [vmem:[#allocation17 + $0xa8] sm:$0xff] %v3561
    %3754 = vst [vmem:[#allocation17 + $0xb0] sm:$0xff] %v3566
    %3755 = vst [vmem:[#allocation17 + $0xb8] sm:$0xff] %v3569
    %3756 = vst [vmem:[#allocation17 + $0xc0] sm:$0xff] %v3574
    %3757 = vst [vmem:[#allocation17 + $0xc8] sm:$0xff] %v3577
    %3758 = vst [vmem:[#allocation17 + $0xd0] sm:$0xff] %v3582
    %3759 = vst [vmem:[#allocation17 + $0xd8] sm:$0xff] %v3585
    %3760 = vst [vmem:[#allocation17 + $0xe0] sm:$0xff] %v3590
    %3761 = vst [vmem:[#allocation17 + $0xe8] sm:$0xff] %v3593
    %3762 = vst [vmem:[#allocation17 + $0xf0] sm:$0xff] %v3598
    %3763 = vst [vmem:[#allocation17 + $0xf8] sm:$0xff] %v3601
    %3764 = vst [vmem:[#allocation17 + $0x100] sm:$0xff] %v3606
    %3765 = vst [vmem:[#allocation17 + $0x108] sm:$0xff] %v3609
    %3766 = vst [vmem:[#allocation17 + $0x110] sm:$0xff] %v3614
    %3767 = vst [vmem:[#allocation17 + $0x118] sm:$0xff] %v3617
    %3768 = vst [vmem:[#allocation17 + $0x120] sm:$0xff] %v3622
    %3769 = vst [vmem:[#allocation17 + $0x128] sm:$0xff] %v3625
    %3770 = vst [vmem:[#allocation17 + $0x130] sm:$0xff] %v3630
    %3771 = vst [vmem:[#allocation17 + $0x138] sm:$0xff] %v3633
    %3772 = vst [vmem:[#allocation17 + $0x140] sm:$0xff] %v3638
    %3773 = vst [vmem:[#allocation17 + $0x148] sm:$0xff] %v3641
    %3774 = vst [vmem:[#allocation17 + $0x150] sm:$0xff] %v3646
    %3775 = vst [vmem:[#allocation17 + $0x158] sm:$0xff] %v3649
    %3776 = vst [vmem:[#allocation17 + $0x160] sm:$0xff] %v3654
    %3777 = vst [vmem:[#allocation17 + $0x168] sm:$0xff] %v3657
    %3778 = vst [vmem:[#allocation17 + $0x170] sm:$0xff] %v3662
    %3779 = vst [vmem:[#allocation17 + $0x178] sm:$0xff] %v3665
    %3780 = vst [vmem:[#allocation17 + $0x180] sm:$0xff] %v3670
    %3781 = vst [vmem:[#allocation17 + $0x188] sm:$0xff] %v3673
    %3782 = vst [vmem:[#allocation17 + $0x190] sm:$0xff] %v3678
    %3783 = vst [vmem:[#allocation17 + $0x198] sm:$0xff] %v3681
    %3784 = vst [vmem:[#allocation17 + $0x1a0] sm:$0xff] %v3686
    %3785 = vst [vmem:[#allocation17 + $0x1a8] sm:$0xff] %v3689
    %3786 = vst [vmem:[#allocation17 + $0x1b0] sm:$0xff] %v3694
    %3787 = vst [vmem:[#allocation17 + $0x1b8] sm:$0xff] %v3697
    %3788 = vst [vmem:[#allocation17 + $0x1c0] sm:$0xff] %v3702
    %3789 = vst [vmem:[#allocation17 + $0x1c8] sm:$0xff] %v3705
    %3790 = vst [vmem:[#allocation17 + $0x1d0] sm:$0xff] %v3710
    %3791 = vst [vmem:[#allocation17 + $0x1d8] sm:$0xff] %v3713
    %3792 = vst [vmem:[#allocation17 + $0x1e0] sm:$0xff] %v3718
    %3793 = vst [vmem:[#allocation17 + $0x1e8] sm:$0xff] %v3721
    %3794 = vst [vmem:[#allocation17 + $0x1f0] sm:$0xff] %v3726
    %3795 = vst [vmem:[#allocation17 + $0x1f8] sm:$0xff] %v3729
    // Predicated region
    $region106: #{tpu_custom_call.1} parent=1 // pred_check
      _
    $region107: #{tpu_custom_call.1} parent=1 // pred_check_branch
      %3797 = sbr.rel (0) target = $region109
    $region108: #{tpu_custom_call.1} parent=1 // pred_region
      %s3799 = ssub.s32 8192, 8192
      %3800 = vsyncadd [#allocation4], %s3799
      %s3801 = sshll.u32 [#allocation17], 4
      %s3802 = int_to_ptr.vmem [resolvable:$true] %s3801
      %3807 = dma.vmem_to_hbm [thread:$0]  %s3802, 8192, %s17, [#allocation4], 128, 128, 8
    $region109: #{tpu_custom_call.1} parent=1 // pred_fallthru
      _
    // Predicated region
    $region110: #{tpu_custom_call.1} parent=1 // pred_check
      _
    $region111: #{tpu_custom_call.1} parent=1 // pred_check_branch
      %3809 = sbr.rel (0) target = $region113
    $region112: #{tpu_custom_call.1} parent=1 // pred_region
      %3810 = dma.done [#allocation4], 8192
    $region113: #{tpu_custom_call.1} parent=1 // pred_fallthru
      _
    %3811 = vsyncpa [#allocation3], 1
    %3812 = vsyncpa [#allocation6], 1
    %3813 = vsyncpa [#allocation9], 1
    %3814 = vsyncpa [#allocation12], 1
    %3815 = vsyncpa [#allocation15], 1
    %3816 = vsyncpa [#allocation4], 1

</llo_original>
